<compile_context>
chip_gen: v7x
topology: tpu7x:2x2x1
jax: 0.10.0
libtpu: 0.0.40
codegen_flags: <defaults>
</compile_context>

<pallas_src>
import jax
import jax.numpy as jnp
from jax import lax
from jax.experimental import pallas as pl
from jax.experimental.pallas import tpu as pltpu

_BN_EPS = 1e-5
_LANES = 128
_TN_TARGET = 2048              # upper bound on lane-tile width
_TILE_VMEM_BUDGET = 24 << 20   # bytes for double-buffered streamed blocks


# ---------------------------------------------------------------------------
# Small helpers (layout / tiling / VMEM budgeting)
# ---------------------------------------------------------------------------
def _pad_lanes(x3):
    """Zero-pad the last (lane) axis of (B, C, N) up to a multiple of 128."""
    n = x3.shape[-1]
    npad = ((n + _LANES - 1) // _LANES) * _LANES
    if npad == n:
        return x3
    return jnp.pad(x3, ((0, 0), (0, 0), (0, npad - n)))


def _n_tile(n_pad, stream_bytes_per_col, target=_TN_TARGET):
    """Largest 128-multiple tile dividing n_pad that fits the VMEM budget.

    stream_bytes_per_col: bytes per lane column across all streamed blocks
    (single-buffered); double-buffering is accounted for here.
    """
    cap = _TILE_VMEM_BUDGET // (2 * max(stream_bytes_per_col, 1))
    cap = max(_LANES, min(target, (cap // _LANES) * _LANES))
    if n_pad <= cap:
        return n_pad
    t = cap
    while t >= _LANES:
        if n_pad % t == 0:
            return t
        t -= _LANES
    return _LANES


def _vmem_limit(stream_block_bytes, const_bytes):
    """Scoped-VMEM request: double-buffered streamed blocks + resident consts."""
    need = 2 * stream_block_bytes + 2 * const_bytes + (2 << 20)
    return int(min(max(need, 16 << 20), 64 << 20))


# ---------------------------------------------------------------------------
# Pallas kernels
# ---------------------------------------------------------------------------
def _conv_stats_kernel(x_ref, w_ref, y_ref, s1_ref, s2_ref):
    """y = W @ x (1x1 conv, f32 MXU accum) + per-batch per-channel sum/sum-sq."""
    n = pl.program_id(1)
    y = jnp.dot(w_ref[...], x_ref[0], preferred_element_type=jnp.float32)
    y_ref[0] = y.astype(y_ref.dtype)

    @pl.when(n == 0)
    def _():
        s1_ref[...] = jnp.zeros_like(s1_ref)
        s2_ref[...] = jnp.zeros_like(s2_ref)

    s1_ref[0] += jnp.sum(y, axis=1, keepdims=True)
    s2_ref[0] += jnp.sum(y * y, axis=1, keepdims=True)


def _bn_relu_kernel(y_ref, scale_ref, shift_ref, o_ref):
    """Per-channel affine (precomputed BN scale/shift, f32) + ReLU."""
    y = y_ref[0].astype(jnp.float32)
    o_ref[0] = jnp.maximum(y * scale_ref[...] + shift_ref[...], 0.0
                           ).astype(o_ref.dtype)


def _add3_conv_kernel(a_ref, b_ref, c_ref, w_ref, o_ref):
    s = a_ref[0] + b_ref[0] + c_ref[0]
    o_ref[0] = jnp.dot(w_ref[...], s, preferred_element_type=jnp.float32
                       ).astype(o_ref.dtype)


def _add2_conv_kernel(a_ref, b_ref, w_ref, o_ref):
    s = a_ref[0] + b_ref[0]
    o_ref[0] = jnp.dot(w_ref[...], s, preferred_element_type=jnp.float32
                       ).astype(o_ref.dtype)


# ---------------------------------------------------------------------------
# Wrappers (pallas_call plumbing)
# ---------------------------------------------------------------------------
def _conv_stats(x3, w):
    """x3:(B,Cin,Np) bf16, w:(Cout,Cin) bf16 -> y(B,Cout,Np) bf16, s1,s2(B,Cout,1) f32."""
    B, Cin, Np = x3.shape
    Cout = w.shape[0]
    bpc = 2 * (Cin + Cout)                      # bf16 in + bf16 out per lane col
    tn = _n_tile(Np, bpc)
    xs = pl.BlockSpec((1, Cin, tn), lambda b, n: (b, 0, n))
    ws = pl.BlockSpec((Cout, Cin), lambda b, n: (0, 0))
    ys = pl.BlockSpec((1, Cout, tn), lambda b, n: (b, 0, n))
    ss = pl.BlockSpec((1, Cout, 1), lambda b, n: (b, 0, 0))
    ce = pl.CostEstimate(
        flops=2 * B * Np * Cin * Cout + 4 * B * Np * Cout,
        transcendentals=0,
        bytes_accessed=2 * (B * Cin * Np + B * Cout * Np + Cin * Cout)
        + 4 * 2 * B * Cout)
    return pl.pallas_call(
        _conv_stats_kernel,
        out_shape=(jax.ShapeDtypeStruct((B, Cout, Np), jnp.bfloat16),
                   jax.ShapeDtypeStruct((B, Cout, 1), jnp.float32),
                   jax.ShapeDtypeStruct((B, Cout, 1), jnp.float32)),
        grid=(B, Np // tn),
        in_specs=[xs, ws],
        out_specs=(ys, ss, ss),
        compiler_params=pltpu.CompilerParams(
            # batch axis is parallel (per-batch stats blocks); lane axis holds
            # the resident accumulator so it stays arbitrary.
            dimension_semantics=("parallel", "arbitrary"),
            vmem_limit_bytes=_vmem_limit(bpc * tn, 2 * Cin * Cout + 8 * Cout)),
        cost_estimate=ce,
    )(x3, w)


def _bn_scale_shift(s1, s2, gamma, beta, count):
    """Fold per-batch partial stats into per-channel scale/shift (f32, tiny)."""
    s1 = jnp.sum(s1, axis=0)                    # (C, 1)
    s2 = jnp.sum(s2, axis=0)
    mean = s1 / count
    var = jnp.maximum(s2 / count - mean * mean, 0.0)
    inv = lax.rsqrt(var + _BN_EPS)
    g = gamma.reshape(-1, 1).astype(jnp.float32)
    b = beta.reshape(-1, 1).astype(jnp.float32)
    scale = g * inv
    shift = b - mean * scale
    return scale, shift


def _bn_relu(y3, scale, shift):
    B, C, Np = y3.shape
    bpc = 2 * (C + C)                           # bf16 in + bf16 out per lane col
    tn = _n_tile(Np, bpc)
    cs = pl.BlockSpec((1, C, tn), lambda b, n: (b, 0, n))
    ps = pl.BlockSpec((C, 1), lambda b, n: (0, 0))
    ce = pl.CostEstimate(flops=3 * B * C * Np, transcendentals=0,
                         bytes_accessed=2 * 2 * B * C * Np + 4 * 2 * C)
    return pl.pallas_call(
        _bn_relu_kernel,
        out_shape=jax.ShapeDtypeStruct((B, C, Np), jnp.bfloat16),
        grid=(B, Np // tn),
        in_specs=[cs, ps, ps],
        out_specs=cs,
        compiler_params=pltpu.CompilerParams(
            dimension_semantics=("parallel", "parallel"),
            vmem_limit_bytes=_vmem_limit(bpc * tn, 8 * C)),
        cost_estimate=ce,
    )(y3, scale, shift)


def _conv_bn_relu_flat(x3, w, gamma, beta, n_valid):
    """1x1 conv + train-mode BatchNorm + ReLU on channel-flattened (B,C,Np)."""
    y, s1, s2 = _conv_stats(x3, w)
    scale, shift = _bn_scale_shift(s1, s2, gamma, beta, x3.shape[0] * n_valid)
    return _bn_relu(y, scale, shift)


def conv1x1_bn_relu(x, w, gamma, beta):
    """1x1 conv (no bias) + BatchNorm2d (batch stats) + ReLU; NCHW in, bf16 NCHW out."""
    B, Cin, H, W = x.shape
    Cout = w.shape[0]
    N = H * W
    x3 = _pad_lanes(x.reshape(B, Cin, N).astype(jnp.bfloat16))
    out = _conv_bn_relu_flat(x3, w.astype(jnp.bfloat16), gamma, beta, N)
    return out[..., :N].reshape(B, Cout, H, W)


def fourier_unit(x, w, gamma, beta):
    """FourierUnit.forward: rfft2 -> 1x1 conv/BN/ReLU on [real;imag] -> irfft2."""
    B, C, H, W = x.shape
    # TODO(synk): rfft2/irfft2 have no Pallas primitive; they stay in XLA (jnp.fft).
    z = jnp.fft.rfft2(x.astype(jnp.float32), norm="ortho")       # (B,C,H,Wf) c64
    Wf = z.shape[-1]
    N = H * Wf
    # Stack [real; imag] along channels (one fused XLA write): a single
    # (2C,2C)x(2C,tn) MXU dot per tile and BatchNorm2d(2C), exactly as in torch.
    xcat = jnp.concatenate([jnp.real(z), jnp.imag(z)], axis=1)   # (B,2C,H,Wf)
    xcat = _pad_lanes(xcat.reshape(B, 2 * C, N).astype(jnp.bfloat16))
    y = _conv_bn_relu_flat(xcat, w.astype(jnp.bfloat16), gamma, beta, N)
    y = y[..., :N].astype(jnp.float32).reshape(B, 2 * C, H, Wf)
    zc = lax.complex(y[:, :C], y[:, C:])
    return jnp.fft.irfft2(zc, s=(H, W), norm="ortho")


def add_conv1x1(inputs, w):
    """conv2( sum(inputs) ): fused elementwise add + 1x1 conv (no bias), f32 out."""
    B, C, H, W = inputs[0].shape
    Cout = w.shape[0]
    N = H * W
    xs3 = [_pad_lanes(t.reshape(B, C, N).astype(jnp.bfloat16)) for t in inputs]
    Np = xs3[0].shape[-1]
    k = len(inputs)
    bpc = 2 * k * C + 4 * Cout                  # bf16 inputs + f32 output per col
    tn = _n_tile(Np, bpc)
    kernel = _add3_conv_kernel if k == 3 else _add2_conv_kernel
    cs = pl.BlockSpec((1, C, tn), lambda b, n: (b, 0, n))
    ws = pl.BlockSpec((Cout, C), lambda b, n: (0, 0))
    os = pl.BlockSpec((1, Cout, tn), lambda b, n: (b, 0, n))
    ce = pl.CostEstimate(
        flops=2 * B * Np * C * Cout + (k - 1) * B * C * Np,
        transcendentals=0,
        bytes_accessed=2 * (k * B * C * Np + C * Cout) + 4 * B * Cout * Np)
    out = pl.pallas_call(
        kernel,
        out_shape=jax.ShapeDtypeStruct((B, Cout, Np), jnp.float32),
        grid=(B, Np // tn),
        in_specs=[cs] * k + [ws],
        out_specs=os,
        compiler_params=pltpu.CompilerParams(
            dimension_semantics=("parallel", "parallel"),
            vmem_limit_bytes=_vmem_limit(bpc * tn, 2 * C * Cout)),
        cost_estimate=ce,
    )(*xs3, w.astype(jnp.bfloat16))
    return out[..., :N].reshape(B, Cout, H, W)


def spectral_transform(x, params, stride=1, enable_lfu=True):
    """SpectralTransform.forward, NCHW f32 in / NCHW f32 out."""
    if stride == 2:
        B, C, H, W = x.shape
        x = x.reshape(B, C, H // 2, 2, W // 2, 2).mean(axis=(3, 5))  # AvgPool2d(2)
    x1 = conv1x1_bn_relu(x, params["conv1_w"], params["bn1_g"], params["bn1_b"])
    output = fourier_unit(x1, params["fu_w"], params["fu_g"], params["fu_b"])
    if enable_lfu:
        B, C, H, W = x1.shape
        xsub = x1[:, : C // 4]
        xs = jnp.concatenate(jnp.split(xsub, 2, axis=2), axis=1)
        xs = jnp.concatenate(jnp.split(xs, 2, axis=3), axis=1)       # (B,C,H/2,W/2)
        xs = fourier_unit(xs, params["lfu_w"], params["lfu_g"], params["lfu_b"])
        # TODO(synk): replicate the quarter-size LFU output inside add_conv1x1 via a
        # quadrant-periodic BlockSpec index_map instead of materializing the tile;
        # for small W the 2-D spatial tiling that requires would break 128-lane stores.
        xs = jnp.tile(xs, (1, 1, 2, 2))                              # repeat(1,1,2,2)
        return add_conv1x1([x1, output, xs], params["conv2_w"])
    return add_conv1x1([x1, output], params["conv2_w"])


# ---------------------------------------------------------------------------
# Pure-JAX f32 reference (mirrors the PyTorch module) for a sanity check
# ---------------------------------------------------------------------------
def _ref_conv_bn_relu(x, w, g, b):
    y = jnp.einsum("oi,bihw->bohw", w, x, precision=lax.Precision.HIGHEST)
    mean = y.mean(axis=(0, 2, 3), keepdims=True)
    var = ((y - mean) ** 2).mean(axis=(0, 2, 3), keepdims=True)
    y = (y - mean) * lax.rsqrt(var + _BN_EPS) * g.reshape(1, -1, 1, 1) \
        + b.reshape(1, -1, 1, 1)
    return jnp.maximum(y, 0.0)


def _ref_fourier_unit(x, w, g, b):
    B, C, H, W = x.shape
    z = jnp.fft.rfft2(x, norm="ortho")
    zc = jnp.concatenate([z.real, z.imag], axis=1)
    y = _ref_conv_bn_relu(zc, w, g, b)
    r, i = jnp.split(y, 2, axis=1)
    return jnp.fft.irfft2(lax.complex(r, i), s=(H, W), norm="ortho")


def _ref_spectral_transform(x, p, stride=1, enable_lfu=True):
    if stride == 2:
        B, C, H, W = x.shape
        x = x.reshape(B, C, H // 2, 2, W // 2, 2).mean(axis=(3, 5))
    x1 = _ref_conv_bn_relu(x, p["conv1_w"], p["bn1_g"], p["bn1_b"])
    out = _ref_fourier_unit(x1, p["fu_w"], p["fu_g"], p["fu_b"])
    if enable_lfu:
        B, C, H, W = x1.shape
        xs = x1[:, : C // 4]
        xs = jnp.concatenate(jnp.split(xs, 2, axis=2), axis=1)
        xs = jnp.concatenate(jnp.split(xs, 2, axis=3), axis=1)
        xs = _ref_fourier_unit(xs, p["lfu_w"], p["lfu_g"], p["lfu_b"])
        xs = jnp.tile(xs, (1, 1, 2, 2))
    else:
        xs = 0.0
    return jnp.einsum("oi,bihw->bohw", p["conv2_w"], x1 + out + xs,
                      precision=lax.Precision.HIGHEST)


# ---------------------------------------------------------------------------
# Deterministic parameter initialization (synthetic, matching module shapes)
# ---------------------------------------------------------------------------
def init_params(key, in_channels, out_channels):
    c = out_channels // 2
    ks = jax.random.split(key, 10)

    def conv_w(k, co, ci):  # 1x1 conv weight, stored as (Cout, Cin)
        return jax.random.normal(k, (co, ci), jnp.float32) / jnp.sqrt(ci)

    return dict(
        conv1_w=conv_w(ks[0], c, in_channels),
        bn1_g=1.0 + 0.1 * jax.random.normal(ks[1], (c,), jnp.float32),
        bn1_b=0.1 * jax.random.normal(ks[2], (c,), jnp.float32),
        fu_w=conv_w(ks[3], 2 * c, 2 * c),
        fu_g=1.0 + 0.1 * jax.random.normal(ks[4], (2 * c,), jnp.float32),
        fu_b=0.1 * jax.random.normal(ks[5], (2 * c,), jnp.float32),
        lfu_w=conv_w(ks[6], 2 * c, 2 * c),
        lfu_g=1.0 + 0.1 * jax.random.normal(ks[7], (2 * c,), jnp.float32),
        lfu_b=0.1 * jax.random.normal(ks[8], (2 * c,), jnp.float32),
        conv2_w=conv_w(ks[9], out_channels, c),
    )


if __name__ == "__main__":
    key = jax.random.PRNGKey(0)
    k_x, k_p = jax.random.split(key)

    in_channels, out_channels = 4, 8
    B, H, W = 2, 16, 16
    x = jax.random.normal(k_x, (B, in_channels, H, W), jnp.float32)
    params = init_params(k_p, in_channels, out_channels)

    fwd = jax.jit(spectral_transform, static_argnames=("stride", "enable_lfu"))
    out = jax.block_until_ready(fwd(x, params, stride=1, enable_lfu=True))

    assert out.shape == (B, out_channels, H, W), out.shape
    assert out.dtype == jnp.float32
    assert bool(jnp.all(jnp.isfinite(out)))

    # bf16 activations/weights vs. f32 HIGHEST-precision reference: allow a few
    # percent of the output dynamic range (still catches any structural bug).
    ref = _ref_spectral_transform(x, params, stride=1, enable_lfu=True)
    err = float(jnp.max(jnp.abs(out - ref)))
    scale = float(jnp.max(jnp.abs(ref)))
    assert err <= 0.08 * scale + 0.08, (err, scale)

    print("KERNEL_OK")
</pallas_src>

<mosaic_0001>
module attributes {stable_mosaic.version = 11 : i64} {
  func.func @_conv_stats_kernel(%arg0: i32, %arg1: i32, %arg2: memref<1x4x256xbf16, #tpu.memory_space<vmem>>, %arg3: memref<4x4xbf16, #tpu.memory_space<vmem>>, %arg4: memref<1x4x256xbf16, #tpu.memory_space<vmem>>, %arg5: memref<1x4x1xf32, #tpu.memory_space<vmem>>, %arg6: memref<1x4x1xf32, #tpu.memory_space<vmem>>) attributes {dimension_semantics = [#tpu.dimension_semantics<parallel>, #tpu.dimension_semantics<arbitrary>], iteration_bounds = array<i64: 2, 1>, scalar_prefetch = 0 : i64, scratch_operands = 0 : i64, tpu.core_type = #tpu.core_type<tc>, window_params = [{transform_indices = @transform_0, window_bounds = array<i64: 1, 4, 256>}, {pipeline_mode = #tpu.pipeline_mode<synchronous>, transform_indices = @transform_1, window_bounds = array<i64: 4, 4>}, {transform_indices = @transform_2, window_bounds = array<i64: 1, 4, 256>}, {transform_indices = @transform_3, window_bounds = array<i64: 1, 4, 1>}, {transform_indices = @transform_4, window_bounds = array<i64: 1, 4, 1>}]} {
    %c0 = arith.constant 0 : index
    %c0_0 = arith.constant 0 : index
    %0 = vector.load %arg3[%c0, %c0_0] : memref<4x4xbf16, #tpu.memory_space<vmem>>, vector<4x4xbf16>
    %c0_1 = arith.constant 0 : index
    %c0_2 = arith.constant 0 : index
    %c0_3 = arith.constant 0 : index
    %1 = vector.load %arg2[%c0_1, %c0_2, %c0_3] : memref<1x4x256xbf16, #tpu.memory_space<vmem>>, vector<1x4x256xbf16>
    %2 = vector.shape_cast %1 : vector<1x4x256xbf16> to vector<4x256xbf16>
    %cst = arith.constant dense<0.000000e+00> : vector<4x256xf32>
    %3 = tpu.matmul %0, %2, %cst {dimension_numbers = #tpu.dot_dimension_numbers<[1], [0], [0], [1], [0, 0, 1, 1], [], []>} : vector<4x4xbf16>, vector<4x256xbf16>, vector<4x256xf32> -> vector<4x256xf32>
    %4 = arith.truncf %3 : vector<4x256xf32> to vector<4x256xbf16>
    %c0_4 = arith.constant 0 : index
    %c0_5 = arith.constant 0 : index
    %c0_6 = arith.constant 0 : index
    %5 = vector.load %arg4[%c0_4, %c0_5, %c0_6] : memref<1x4x256xbf16, #tpu.memory_space<vmem>>, vector<1x4x256xbf16>
    %6 = vector.shape_cast %5 : vector<1x4x256xbf16> to vector<4x256xbf16>
    %7 = vector.shape_cast %4 : vector<4x256xbf16> to vector<1x4x256xbf16>
    tpu.vector_store %arg4[%c0_4, %c0_5, %c0_6], %7 {strides = array<i32>} : memref<1x4x256xbf16, #tpu.memory_space<vmem>>, vector<1x4x256xbf16>,
    %c0_i32 = arith.constant 0 : i32
    %8 = arith.cmpi eq, %arg1, %c0_i32 : i32
    %9 = arith.extui %8 : i1 to i32
    %c0_i32_7 = arith.constant 0 : i32
    %10 = arith.cmpi ne, %9, %c0_i32_7 : i32
    scf.if %10 {
      %cst_22 = arith.constant 0.000000e+00 : f32
      %28 = vector.broadcast %cst_22 : f32 to vector<1x4x1xf32>
      %c0_23 = arith.constant 0 : index
      %c0_24 = arith.constant 0 : index
      %c0_25 = arith.constant 0 : index
      %29 = vector.load %arg5[%c0_23, %c0_24, %c0_25] : memref<1x4x1xf32, #tpu.memory_space<vmem>>, vector<1x4x1xf32>
      tpu.vector_store %arg5[%c0_23, %c0_24, %c0_25], %28 {strides = array<i32>} : memref<1x4x1xf32, #tpu.memory_space<vmem>>, vector<1x4x1xf32>,
      %cst_26 = arith.constant 0.000000e+00 : f32
      %30 = vector.broadcast %cst_26 : f32 to vector<1x4x1xf32>
      %c0_27 = arith.constant 0 : index
      %c0_28 = arith.constant 0 : index
      %c0_29 = arith.constant 0 : index
      %31 = vector.load %arg6[%c0_27, %c0_28, %c0_29] : memref<1x4x1xf32, #tpu.memory_space<vmem>>, vector<1x4x1xf32>
      tpu.vector_store %arg6[%c0_27, %c0_28, %c0_29], %30 {strides = array<i32>} : memref<1x4x1xf32, #tpu.memory_space<vmem>>, vector<1x4x1xf32>,
    } else {
    }
    %c0_8 = arith.constant 0 : index
    %c0_9 = arith.constant 0 : index
    %c0_10 = arith.constant 0 : index
    %11 = vector.load %arg5[%c0_8, %c0_9, %c0_10] : memref<1x4x1xf32, #tpu.memory_space<vmem>>, vector<1x4x1xf32>
    %12 = vector.shape_cast %11 : vector<1x4x1xf32> to vector<4x1xf32>
    %cst_11 = arith.constant dense<0.000000e+00> : vector<4xf32>
    %13 = vector.multi_reduction <add>, %3, %cst_11 [1] : vector<4x256xf32> to vector<4xf32>
    %14 = vector.shape_cast %13 : vector<4xf32> to vector<4x1xf32>
    %15 = arith.addf %12, %14 : vector<4x1xf32>
    %c0_12 = arith.constant 0 : index
    %c0_13 = arith.constant 0 : index
    %c0_14 = arith.constant 0 : index
    %16 = vector.load %arg5[%c0_12, %c0_13, %c0_14] : memref<1x4x1xf32, #tpu.memory_space<vmem>>, vector<1x4x1xf32>
    %17 = vector.shape_cast %16 : vector<1x4x1xf32> to vector<4x1xf32>
    %18 = vector.shape_cast %15 : vector<4x1xf32> to vector<1x4x1xf32>
    tpu.vector_store %arg5[%c0_12, %c0_13, %c0_14], %18 {strides = array<i32>} : memref<1x4x1xf32, #tpu.memory_space<vmem>>, vector<1x4x1xf32>,
    %c0_15 = arith.constant 0 : index
    %c0_16 = arith.constant 0 : index
    %c0_17 = arith.constant 0 : index
    %19 = vector.load %arg6[%c0_15, %c0_16, %c0_17] : memref<1x4x1xf32, #tpu.memory_space<vmem>>, vector<1x4x1xf32>
    %20 = vector.shape_cast %19 : vector<1x4x1xf32> to vector<4x1xf32>
    %21 = arith.mulf %3, %3 : vector<4x256xf32>
    %cst_18 = arith.constant dense<0.000000e+00> : vector<4xf32>
    %22 = vector.multi_reduction <add>, %21, %cst_18 [1] : vector<4x256xf32> to vector<4xf32>
    %23 = vector.shape_cast %22 : vector<4xf32> to vector<4x1xf32>
    %24 = arith.addf %20, %23 : vector<4x1xf32>
    %c0_19 = arith.constant 0 : index
    %c0_20 = arith.constant 0 : index
    %c0_21 = arith.constant 0 : index
    %25 = vector.load %arg6[%c0_19, %c0_20, %c0_21] : memref<1x4x1xf32, #tpu.memory_space<vmem>>, vector<1x4x1xf32>
    %26 = vector.shape_cast %25 : vector<1x4x1xf32> to vector<4x1xf32>
    %27 = vector.shape_cast %24 : vector<4x1xf32> to vector<1x4x1xf32>
    tpu.vector_store %arg6[%c0_19, %c0_20, %c0_21], %27 {strides = array<i32>} : memref<1x4x1xf32, #tpu.memory_space<vmem>>, vector<1x4x1xf32>,
    return
  }
  func.func @transform_0(%arg0: i32, %arg1: i32) -> (i32, i32, i32) {
    %c0_i32 = arith.constant 0 : i32
    %c0_i32_0 = arith.constant 0 : i32
    return %arg0, %c0_i32, %arg1 : i32, i32, i32
  }
  func.func @transform_1(%arg0: i32, %arg1: i32) -> (i32, i32) {
    %c0_i32 = arith.constant 0 : i32
    %c0_i32_0 = arith.constant 0 : i32
    %c0_i32_1 = arith.constant 0 : i32
    return %c0_i32, %c0_i32_0 : i32, i32
  }
  func.func @transform_2(%arg0: i32, %arg1: i32) -> (i32, i32, i32) {
    %c0_i32 = arith.constant 0 : i32
    %c0_i32_0 = arith.constant 0 : i32
    return %arg0, %c0_i32, %arg1 : i32, i32, i32
  }
  func.func @transform_3(%arg0: i32, %arg1: i32) -> (i32, i32, i32) {
    %c0_i32 = arith.constant 0 : i32
    %c0_i32_0 = arith.constant 0 : i32
    %c0_i32_1 = arith.constant 0 : i32
    return %arg0, %c0_i32, %c0_i32_0 : i32, i32, i32
  }
  func.func @transform_4(%arg0: i32, %arg1: i32) -> (i32, i32, i32) {
    %c0_i32 = arith.constant 0 : i32
    %c0_i32_0 = arith.constant 0 : i32
    %c0_i32_1 = arith.constant 0 : i32
    return %arg0, %c0_i32, %c0_i32_0 : i32, i32, i32
  }
}

module attributes {stable_mosaic.version = 11 : i64} {
  func.func @_bn_relu_kernel(%arg0: i32, %arg1: i32, %arg2: memref<1x4x256xbf16, #tpu.memory_space<vmem>>, %arg3: memref<4x1xf32, #tpu.memory_space<vmem>>, %arg4: memref<4x1xf32, #tpu.memory_space<vmem>>, %arg5: memref<1x4x256xbf16, #tpu.memory_space<vmem>>) attributes {dimension_semantics = [#tpu.dimension_semantics<parallel>, #tpu.dimension_semantics<parallel>], iteration_bounds = array<i64: 2, 1>, scalar_prefetch = 0 : i64, scratch_operands = 0 : i64, tpu.core_type = #tpu.core_type<tc>, window_params = [{transform_indices = @transform_0, window_bounds = array<i64: 1, 4, 256>}, {pipeline_mode = #tpu.pipeline_mode<synchronous>, transform_indices = @transform_1, window_bounds = array<i64: 4, 1>}, {pipeline_mode = #tpu.pipeline_mode<synchronous>, transform_indices = @transform_2, window_bounds = array<i64: 4, 1>}, {transform_indices = @transform_3, window_bounds = array<i64: 1, 4, 256>}]} {
    %c0 = arith.constant 0 : index
    %c0_0 = arith.constant 0 : index
    %c0_1 = arith.constant 0 : index
    %0 = vector.load %arg2[%c0, %c0_0, %c0_1] : memref<1x4x256xbf16, #tpu.memory_space<vmem>>, vector<1x4x256xbf16>
    %1 = vector.shape_cast %0 : vector<1x4x256xbf16> to vector<4x256xbf16>
    %2 = arith.extf %1 : vector<4x256xbf16> to vector<4x256xf32>
    %c0_2 = arith.constant 0 : index
    %c0_3 = arith.constant 0 : index
    %3 = vector.load %arg3[%c0_2, %c0_3] : memref<4x1xf32, #tpu.memory_space<vmem>>, vector<4x1xf32>
    %4 = vector.broadcast %3 : vector<4x1xf32> to vector<4x256xf32>
    %5 = arith.mulf %2, %4 : vector<4x256xf32>
    %c0_4 = arith.constant 0 : index
    %c0_5 = arith.constant 0 : index
    %6 = vector.load %arg4[%c0_4, %c0_5] : memref<4x1xf32, #tpu.memory_space<vmem>>, vector<4x1xf32>
    %7 = vector.broadcast %6 : vector<4x1xf32> to vector<4x256xf32>
    %8 = arith.addf %5, %7 : vector<4x256xf32>
    %cst = arith.constant 0.000000e+00 : f32
    %9 = vector.broadcast %cst : f32 to vector<4x256xf32>
    %10 = arith.maximumf %8, %9 : vector<4x256xf32>
    %11 = arith.truncf %10 : vector<4x256xf32> to vector<4x256xbf16>
    %c0_6 = arith.constant 0 : index
    %c0_7 = arith.constant 0 : index
    %c0_8 = arith.constant 0 : index
    %12 = vector.load %arg5[%c0_6, %c0_7, %c0_8] : memref<1x4x256xbf16, #tpu.memory_space<vmem>>, vector<1x4x256xbf16>
    %13 = vector.shape_cast %12 : vector<1x4x256xbf16> to vector<4x256xbf16>
    %14 = vector.shape_cast %11 : vector<4x256xbf16> to vector<1x4x256xbf16>
    tpu.vector_store %arg5[%c0_6, %c0_7, %c0_8], %14 {strides = array<i32>} : memref<1x4x256xbf16, #tpu.memory_space<vmem>>, vector<1x4x256xbf16>,
    return
  }
  func.func @transform_0(%arg0: i32, %arg1: i32) -> (i32, i32, i32) {
    %c0_i32 = arith.constant 0 : i32
    %c0_i32_0 = arith.constant 0 : i32
    return %arg0, %c0_i32, %arg1 : i32, i32, i32
  }
  func.func @transform_1(%arg0: i32, %arg1: i32) -> (i32, i32) {
    %c0_i32 = arith.constant 0 : i32
    %c0_i32_0 = arith.constant 0 : i32
    %c0_i32_1 = arith.constant 0 : i32
    return %c0_i32, %c0_i32_0 : i32, i32
  }
  func.func @transform_2(%arg0: i32, %arg1: i32) -> (i32, i32) {
    %c0_i32 = arith.constant 0 : i32
    %c0_i32_0 = arith.constant 0 : i32
    %c0_i32_1 = arith.constant 0 : i32
    return %c0_i32, %c0_i32_0 : i32, i32
  }
  func.func @transform_3(%arg0: i32, %arg1: i32) -> (i32, i32, i32) {
    %c0_i32 = arith.constant 0 : i32
    %c0_i32_0 = arith.constant 0 : i32
    return %arg0, %c0_i32, %arg1 : i32, i32, i32
  }
}

module attributes {stable_mosaic.version = 11 : i64} {
  func.func @_conv_stats_kernel(%arg0: i32, %arg1: i32, %arg2: memref<1x8x128xbf16, #tpu.memory_space<vmem>>, %arg3: memref<8x8xbf16, #tpu.memory_space<vmem>>, %arg4: memref<1x8x128xbf16, #tpu.memory_space<vmem>>, %arg5: memref<1x8x1xf32, #tpu.memory_space<vmem>>, %arg6: memref<1x8x1xf32, #tpu.memory_space<vmem>>) attributes {dimension_semantics = [#tpu.dimension_semantics<parallel>, #tpu.dimension_semantics<arbitrary>], iteration_bounds = array<i64: 2, 1>, scalar_prefetch = 0 : i64, scratch_operands = 0 : i64, tpu.core_type = #tpu.core_type<tc>, window_params = [{transform_indices = @transform_0, window_bounds = array<i64: 1, 8, 128>}, {pipeline_mode = #tpu.pipeline_mode<synchronous>, transform_indices = @transform_1, window_bounds = array<i64: 8, 8>}, {transform_indices = @transform_2, window_bounds = array<i64: 1, 8, 128>}, {transform_indices = @transform_3, window_bounds = array<i64: 1, 8, 1>}, {transform_indices = @transform_4, window_bounds = array<i64: 1, 8, 1>}]} {
    %c0 = arith.constant 0 : index
    %c0_0 = arith.constant 0 : index
    %0 = vector.load %arg3[%c0, %c0_0] : memref<8x8xbf16, #tpu.memory_space<vmem>>, vector<8x8xbf16>
    %c0_1 = arith.constant 0 : index
    %c0_2 = arith.constant 0 : index
    %c0_3 = arith.constant 0 : index
    %1 = vector.load %arg2[%c0_1, %c0_2, %c0_3] : memref<1x8x128xbf16, #tpu.memory_space<vmem>>, vector<1x8x128xbf16>
    %2 = vector.shape_cast %1 : vector<1x8x128xbf16> to vector<8x128xbf16>
    %cst = arith.constant dense<0.000000e+00> : vector<8x128xf32>
    %3 = tpu.matmul %0, %2, %cst {dimension_numbers = #tpu.dot_dimension_numbers<[1], [0], [0], [1], [0, 0, 1, 1], [], []>} : vector<8x8xbf16>, vector<8x128xbf16>, vector<8x128xf32> -> vector<8x128xf32>
    %4 = arith.truncf %3 : vector<8x128xf32> to vector<8x128xbf16>
    %c0_4 = arith.constant 0 : index
    %c0_5 = arith.constant 0 : index
    %c0_6 = arith.constant 0 : index
    %5 = vector.load %arg4[%c0_4, %c0_5, %c0_6] : memref<1x8x128xbf16, #tpu.memory_space<vmem>>, vector<1x8x128xbf16>
    %6 = vector.shape_cast %5 : vector<1x8x128xbf16> to vector<8x128xbf16>
    %7 = vector.shape_cast %4 : vector<8x128xbf16> to vector<1x8x128xbf16>
    tpu.vector_store %arg4[%c0_4, %c0_5, %c0_6], %7 {strides = array<i32>} : memref<1x8x128xbf16, #tpu.memory_space<vmem>>, vector<1x8x128xbf16>,
    %c0_i32 = arith.constant 0 : i32
    %8 = arith.cmpi eq, %arg1, %c0_i32 : i32
    %9 = arith.extui %8 : i1 to i32
    %c0_i32_7 = arith.constant 0 : i32
    %10 = arith.cmpi ne, %9, %c0_i32_7 : i32
    scf.if %10 {
      %cst_22 = arith.constant 0.000000e+00 : f32
      %28 = vector.broadcast %cst_22 : f32 to vector<1x8x1xf32>
      %c0_23 = arith.constant 0 : index
      %c0_24 = arith.constant 0 : index
      %c0_25 = arith.constant 0 : index
      %29 = vector.load %arg5[%c0_23, %c0_24, %c0_25] : memref<1x8x1xf32, #tpu.memory_space<vmem>>, vector<1x8x1xf32>
      tpu.vector_store %arg5[%c0_23, %c0_24, %c0_25], %28 {strides = array<i32>} : memref<1x8x1xf32, #tpu.memory_space<vmem>>, vector<1x8x1xf32>,
      %cst_26 = arith.constant 0.000000e+00 : f32
      %30 = vector.broadcast %cst_26 : f32 to vector<1x8x1xf32>
      %c0_27 = arith.constant 0 : index
      %c0_28 = arith.constant 0 : index
      %c0_29 = arith.constant 0 : index
      %31 = vector.load %arg6[%c0_27, %c0_28, %c0_29] : memref<1x8x1xf32, #tpu.memory_space<vmem>>, vector<1x8x1xf32>
      tpu.vector_store %arg6[%c0_27, %c0_28, %c0_29], %30 {strides = array<i32>} : memref<1x8x1xf32, #tpu.memory_space<vmem>>, vector<1x8x1xf32>,
    } else {
    }
    %c0_8 = arith.constant 0 : index
    %c0_9 = arith.constant 0 : index
    %c0_10 = arith.constant 0 : index
    %11 = vector.load %arg5[%c0_8, %c0_9, %c0_10] : memref<1x8x1xf32, #tpu.memory_space<vmem>>, vector<1x8x1xf32>
    %12 = vector.shape_cast %11 : vector<1x8x1xf32> to vector<8x1xf32>
    %cst_11 = arith.constant dense<0.000000e+00> : vector<8xf32>
    %13 = vector.multi_reduction <add>, %3, %cst_11 [1] : vector<8x128xf32> to vector<8xf32>
    %14 = vector.shape_cast %13 : vector<8xf32> to vector<8x1xf32>
    %15 = arith.addf %12, %14 : vector<8x1xf32>
    %c0_12 = arith.constant 0 : index
    %c0_13 = arith.constant 0 : index
    %c0_14 = arith.constant 0 : index
    %16 = vector.load %arg5[%c0_12, %c0_13, %c0_14] : memref<1x8x1xf32, #tpu.memory_space<vmem>>, vector<1x8x1xf32>
    %17 = vector.shape_cast %16 : vector<1x8x1xf32> to vector<8x1xf32>
    %18 = vector.shape_cast %15 : vector<8x1xf32> to vector<1x8x1xf32>
    tpu.vector_store %arg5[%c0_12, %c0_13, %c0_14], %18 {strides = array<i32>} : memref<1x8x1xf32, #tpu.memory_space<vmem>>, vector<1x8x1xf32>,
    %c0_15 = arith.constant 0 : index
    %c0_16 = arith.constant 0 : index
    %c0_17 = arith.constant 0 : index
    %19 = vector.load %arg6[%c0_15, %c0_16, %c0_17] : memref<1x8x1xf32, #tpu.memory_space<vmem>>, vector<1x8x1xf32>
    %20 = vector.shape_cast %19 : vector<1x8x1xf32> to vector<8x1xf32>
    %21 = arith.mulf %3, %3 : vector<8x128xf32>
    %cst_18 = arith.constant dense<0.000000e+00> : vector<8xf32>
    %22 = vector.multi_reduction <add>, %21, %cst_18 [1] : vector<8x128xf32> to vector<8xf32>
    %23 = vector.shape_cast %22 : vector<8xf32> to vector<8x1xf32>
    %24 = arith.addf %20, %23 : vector<8x1xf32>
    %c0_19 = arith.constant 0 : index
    %c0_20 = arith.constant 0 : index
    %c0_21 = arith.constant 0 : index
    %25 = vector.load %arg6[%c0_19, %c0_20, %c0_21] : memref<1x8x1xf32, #tpu.memory_space<vmem>>, vector<1x8x1xf32>
    %26 = vector.shape_cast %25 : vector<1x8x1xf32> to vector<8x1xf32>
    %27 = vector.shape_cast %24 : vector<8x1xf32> to vector<1x8x1xf32>
    tpu.vector_store %arg6[%c0_19, %c0_20, %c0_21], %27 {strides = array<i32>} : memref<1x8x1xf32, #tpu.memory_space<vmem>>, vector<1x8x1xf32>,
    return
  }
  func.func @transform_0(%arg0: i32, %arg1: i32) -> (i32, i32, i32) {
    %c0_i32 = arith.constant 0 : i32
    %c0_i32_0 = arith.constant 0 : i32
    return %arg0, %c0_i32, %arg1 : i32, i32, i32
  }
  func.func @transform_1(%arg0: i32, %arg1: i32) -> (i32, i32) {
    %c0_i32 = arith.constant 0 : i32
    %c0_i32_0 = arith.constant 0 : i32
    %c0_i32_1 = arith.constant 0 : i32
    return %c0_i32, %c0_i32_0 : i32, i32
  }
  func.func @transform_2(%arg0: i32, %arg1: i32) -> (i32, i32, i32) {
    %c0_i32 = arith.constant 0 : i32
    %c0_i32_0 = arith.constant 0 : i32
    return %arg0, %c0_i32, %arg1 : i32, i32, i32
  }
  func.func @transform_3(%arg0: i32, %arg1: i32) -> (i32, i32, i32) {
    %c0_i32 = arith.constant 0 : i32
    %c0_i32_0 = arith.constant 0 : i32
    %c0_i32_1 = arith.constant 0 : i32
    return %arg0, %c0_i32, %c0_i32_0 : i32, i32, i32
  }
  func.func @transform_4(%arg0: i32, %arg1: i32) -> (i32, i32, i32) {
    %c0_i32 = arith.constant 0 : i32
    %c0_i32_0 = arith.constant 0 : i32
    %c0_i32_1 = arith.constant 0 : i32
    return %arg0, %c0_i32, %c0_i32_0 : i32, i32, i32
  }
}

module attributes {stable_mosaic.version = 11 : i64} {
  func.func @_bn_relu_kernel(%arg0: i32, %arg1: i32, %arg2: memref<1x8x128xbf16, #tpu.memory_space<vmem>>, %arg3: memref<8x1xf32, #tpu.memory_space<vmem>>, %arg4: memref<8x1xf32, #tpu.memory_space<vmem>>, %arg5: memref<1x8x128xbf16, #tpu.memory_space<vmem>>) attributes {dimension_semantics = [#tpu.dimension_semantics<parallel>, #tpu.dimension_semantics<parallel>], iteration_bounds = array<i64: 2, 1>, scalar_prefetch = 0 : i64, scratch_operands = 0 : i64, tpu.core_type = #tpu.core_type<tc>, window_params = [{transform_indices = @transform_0, window_bounds = array<i64: 1, 8, 128>}, {pipeline_mode = #tpu.pipeline_mode<synchronous>, transform_indices = @transform_1, window_bounds = array<i64: 8, 1>}, {pipeline_mode = #tpu.pipeline_mode<synchronous>, transform_indices = @transform_2, window_bounds = array<i64: 8, 1>}, {transform_indices = @transform_3, window_bounds = array<i64: 1, 8, 128>}]} {
    %c0 = arith.constant 0 : index
    %c0_0 = arith.constant 0 : index
    %c0_1 = arith.constant 0 : index
    %0 = vector.load %arg2[%c0, %c0_0, %c0_1] : memref<1x8x128xbf16, #tpu.memory_space<vmem>>, vector<1x8x128xbf16>
    %1 = vector.shape_cast %0 : vector<1x8x128xbf16> to vector<8x128xbf16>
    %2 = arith.extf %1 : vector<8x128xbf16> to vector<8x128xf32>
    %c0_2 = arith.constant 0 : index
    %c0_3 = arith.constant 0 : index
    %3 = vector.load %arg3[%c0_2, %c0_3] : memref<8x1xf32, #tpu.memory_space<vmem>>, vector<8x1xf32>
    %4 = vector.broadcast %3 : vector<8x1xf32> to vector<8x128xf32>
    %5 = arith.mulf %2, %4 : vector<8x128xf32>
    %c0_4 = arith.constant 0 : index
    %c0_5 = arith.constant 0 : index
    %6 = vector.load %arg4[%c0_4, %c0_5] : memref<8x1xf32, #tpu.memory_space<vmem>>, vector<8x1xf32>
    %7 = vector.broadcast %6 : vector<8x1xf32> to vector<8x128xf32>
    %8 = arith.addf %5, %7 : vector<8x128xf32>
    %cst = arith.constant 0.000000e+00 : f32
    %9 = vector.broadcast %cst : f32 to vector<8x128xf32>
    %10 = arith.maximumf %8, %9 : vector<8x128xf32>
    %11 = arith.truncf %10 : vector<8x128xf32> to vector<8x128xbf16>
    %c0_6 = arith.constant 0 : index
    %c0_7 = arith.constant 0 : index
    %c0_8 = arith.constant 0 : index
    %12 = vector.load %arg5[%c0_6, %c0_7, %c0_8] : memref<1x8x128xbf16, #tpu.memory_space<vmem>>, vector<1x8x128xbf16>
    %13 = vector.shape_cast %12 : vector<1x8x128xbf16> to vector<8x128xbf16>
    %14 = vector.shape_cast %11 : vector<8x128xbf16> to vector<1x8x128xbf16>
    tpu.vector_store %arg5[%c0_6, %c0_7, %c0_8], %14 {strides = array<i32>} : memref<1x8x128xbf16, #tpu.memory_space<vmem>>, vector<1x8x128xbf16>,
    return
  }
  func.func @transform_0(%arg0: i32, %arg1: i32) -> (i32, i32, i32) {
    %c0_i32 = arith.constant 0 : i32
    %c0_i32_0 = arith.constant 0 : i32
    return %arg0, %c0_i32, %arg1 : i32, i32, i32
  }
  func.func @transform_1(%arg0: i32, %arg1: i32) -> (i32, i32) {
    %c0_i32 = arith.constant 0 : i32
    %c0_i32_0 = arith.constant 0 : i32
    %c0_i32_1 = arith.constant 0 : i32
    return %c0_i32, %c0_i32_0 : i32, i32
  }
  func.func @transform_2(%arg0: i32, %arg1: i32) -> (i32, i32) {
    %c0_i32 = arith.constant 0 : i32
    %c0_i32_0 = arith.constant 0 : i32
    %c0_i32_1 = arith.constant 0 : i32
    return %c0_i32, %c0_i32_0 : i32, i32
  }
  func.func @transform_3(%arg0: i32, %arg1: i32) -> (i32, i32, i32) {
    %c0_i32 = arith.constant 0 : i32
    %c0_i32_0 = arith.constant 0 : i32
    return %arg0, %c0_i32, %arg1 : i32, i32, i32
  }
}

module attributes {stable_mosaic.version = 11 : i64} {
  func.func @_conv_stats_kernel(%arg0: i32, %arg1: i32, %arg2: memref<1x8x256xbf16, #tpu.memory_space<vmem>>, %arg3: memref<8x8xbf16, #tpu.memory_space<vmem>>, %arg4: memref<1x8x256xbf16, #tpu.memory_space<vmem>>, %arg5: memref<1x8x1xf32, #tpu.memory_space<vmem>>, %arg6: memref<1x8x1xf32, #tpu.memory_space<vmem>>) attributes {dimension_semantics = [#tpu.dimension_semantics<parallel>, #tpu.dimension_semantics<arbitrary>], iteration_bounds = array<i64: 2, 1>, scalar_prefetch = 0 : i64, scratch_operands = 0 : i64, tpu.core_type = #tpu.core_type<tc>, window_params = [{transform_indices = @transform_0, window_bounds = array<i64: 1, 8, 256>}, {pipeline_mode = #tpu.pipeline_mode<synchronous>, transform_indices = @transform_1, window_bounds = array<i64: 8, 8>}, {transform_indices = @transform_2, window_bounds = array<i64: 1, 8, 256>}, {transform_indices = @transform_3, window_bounds = array<i64: 1, 8, 1>}, {transform_indices = @transform_4, window_bounds = array<i64: 1, 8, 1>}]} {
    %c0 = arith.constant 0 : index
    %c0_0 = arith.constant 0 : index
    %0 = vector.load %arg3[%c0, %c0_0] : memref<8x8xbf16, #tpu.memory_space<vmem>>, vector<8x8xbf16>
    %c0_1 = arith.constant 0 : index
    %c0_2 = arith.constant 0 : index
    %c0_3 = arith.constant 0 : index
    %1 = vector.load %arg2[%c0_1, %c0_2, %c0_3] : memref<1x8x256xbf16, #tpu.memory_space<vmem>>, vector<1x8x256xbf16>
    %2 = vector.shape_cast %1 : vector<1x8x256xbf16> to vector<8x256xbf16>
    %cst = arith.constant dense<0.000000e+00> : vector<8x256xf32>
    %3 = tpu.matmul %0, %2, %cst {dimension_numbers = #tpu.dot_dimension_numbers<[1], [0], [0], [1], [0, 0, 1, 1], [], []>} : vector<8x8xbf16>, vector<8x256xbf16>, vector<8x256xf32> -> vector<8x256xf32>
    %4 = arith.truncf %3 : vector<8x256xf32> to vector<8x256xbf16>
    %c0_4 = arith.constant 0 : index
    %c0_5 = arith.constant 0 : index
    %c0_6 = arith.constant 0 : index
    %5 = vector.load %arg4[%c0_4, %c0_5, %c0_6] : memref<1x8x256xbf16, #tpu.memory_space<vmem>>, vector<1x8x256xbf16>
    %6 = vector.shape_cast %5 : vector<1x8x256xbf16> to vector<8x256xbf16>
    %7 = vector.shape_cast %4 : vector<8x256xbf16> to vector<1x8x256xbf16>
    tpu.vector_store %arg4[%c0_4, %c0_5, %c0_6], %7 {strides = array<i32>} : memref<1x8x256xbf16, #tpu.memory_space<vmem>>, vector<1x8x256xbf16>,
    %c0_i32 = arith.constant 0 : i32
    %8 = arith.cmpi eq, %arg1, %c0_i32 : i32
    %9 = arith.extui %8 : i1 to i32
    %c0_i32_7 = arith.constant 0 : i32
    %10 = arith.cmpi ne, %9, %c0_i32_7 : i32
    scf.if %10 {
      %cst_22 = arith.constant 0.000000e+00 : f32
      %28 = vector.broadcast %cst_22 : f32 to vector<1x8x1xf32>
      %c0_23 = arith.constant 0 : index
      %c0_24 = arith.constant 0 : index
      %c0_25 = arith.constant 0 : index
      %29 = vector.load %arg5[%c0_23, %c0_24, %c0_25] : memref<1x8x1xf32, #tpu.memory_space<vmem>>, vector<1x8x1xf32>
      tpu.vector_store %arg5[%c0_23, %c0_24, %c0_25], %28 {strides = array<i32>} : memref<1x8x1xf32, #tpu.memory_space<vmem>>, vector<1x8x1xf32>,
      %cst_26 = arith.constant 0.000000e+00 : f32
      %30 = vector.broadcast %cst_26 : f32 to vector<1x8x1xf32>
      %c0_27 = arith.constant 0 : index
      %c0_28 = arith.constant 0 : index
      %c0_29 = arith.constant 0 : index
      %31 = vector.load %arg6[%c0_27, %c0_28, %c0_29] : memref<1x8x1xf32, #tpu.memory_space<vmem>>, vector<1x8x1xf32>
      tpu.vector_store %arg6[%c0_27, %c0_28, %c0_29], %30 {strides = array<i32>} : memref<1x8x1xf32, #tpu.memory_space<vmem>>, vector<1x8x1xf32>,
    } else {
    }
    %c0_8 = arith.constant 0 : index
    %c0_9 = arith.constant 0 : index
    %c0_10 = arith.constant 0 : index
    %11 = vector.load %arg5[%c0_8, %c0_9, %c0_10] : memref<1x8x1xf32, #tpu.memory_space<vmem>>, vector<1x8x1xf32>
    %12 = vector.shape_cast %11 : vector<1x8x1xf32> to vector<8x1xf32>
    %cst_11 = arith.constant dense<0.000000e+00> : vector<8xf32>
    %13 = vector.multi_reduction <add>, %3, %cst_11 [1] : vector<8x256xf32> to vector<8xf32>
    %14 = vector.shape_cast %13 : vector<8xf32> to vector<8x1xf32>
    %15 = arith.addf %12, %14 : vector<8x1xf32>
    %c0_12 = arith.constant 0 : index
    %c0_13 = arith.constant 0 : index
    %c0_14 = arith.constant 0 : index
    %16 = vector.load %arg5[%c0_12, %c0_13, %c0_14] : memref<1x8x1xf32, #tpu.memory_space<vmem>>, vector<1x8x1xf32>
    %17 = vector.shape_cast %16 : vector<1x8x1xf32> to vector<8x1xf32>
    %18 = vector.shape_cast %15 : vector<8x1xf32> to vector<1x8x1xf32>
    tpu.vector_store %arg5[%c0_12, %c0_13, %c0_14], %18 {strides = array<i32>} : memref<1x8x1xf32, #tpu.memory_space<vmem>>, vector<1x8x1xf32>,
    %c0_15 = arith.constant 0 : index
    %c0_16 = arith.constant 0 : index
    %c0_17 = arith.constant 0 : index
    %19 = vector.load %arg6[%c0_15, %c0_16, %c0_17] : memref<1x8x1xf32, #tpu.memory_space<vmem>>, vector<1x8x1xf32>
    %20 = vector.shape_cast %19 : vector<1x8x1xf32> to vector<8x1xf32>
    %21 = arith.mulf %3, %3 : vector<8x256xf32>
    %cst_18 = arith.constant dense<0.000000e+00> : vector<8xf32>
    %22 = vector.multi_reduction <add>, %21, %cst_18 [1] : vector<8x256xf32> to vector<8xf32>
    %23 = vector.shape_cast %22 : vector<8xf32> to vector<8x1xf32>
    %24 = arith.addf %20, %23 : vector<8x1xf32>
    %c0_19 = arith.constant 0 : index
    %c0_20 = arith.constant 0 : index
    %c0_21 = arith.constant 0 : index
    %25 = vector.load %arg6[%c0_19, %c0_20, %c0_21] : memref<1x8x1xf32, #tpu.memory_space<vmem>>, vector<1x8x1xf32>
    %26 = vector.shape_cast %25 : vector<1x8x1xf32> to vector<8x1xf32>
    %27 = vector.shape_cast %24 : vector<8x1xf32> to vector<1x8x1xf32>
    tpu.vector_store %arg6[%c0_19, %c0_20, %c0_21], %27 {strides = array<i32>} : memref<1x8x1xf32, #tpu.memory_space<vmem>>, vector<1x8x1xf32>,
    return
  }
  func.func @transform_0(%arg0: i32, %arg1: i32) -> (i32, i32, i32) {
    %c0_i32 = arith.constant 0 : i32
    %c0_i32_0 = arith.constant 0 : i32
    return %arg0, %c0_i32, %arg1 : i32, i32, i32
  }
  func.func @transform_1(%arg0: i32, %arg1: i32) -> (i32, i32) {
    %c0_i32 = arith.constant 0 : i32
    %c0_i32_0 = arith.constant 0 : i32
    %c0_i32_1 = arith.constant 0 : i32
    return %c0_i32, %c0_i32_0 : i32, i32
  }
  func.func @transform_2(%arg0: i32, %arg1: i32) -> (i32, i32, i32) {
    %c0_i32 = arith.constant 0 : i32
    %c0_i32_0 = arith.constant 0 : i32
    return %arg0, %c0_i32, %arg1 : i32, i32, i32
  }
  func.func @transform_3(%arg0: i32, %arg1: i32) -> (i32, i32, i32) {
    %c0_i32 = arith.constant 0 : i32
    %c0_i32_0 = arith.constant 0 : i32
    %c0_i32_1 = arith.constant 0 : i32
    return %arg0, %c0_i32, %c0_i32_0 : i32, i32, i32
  }
  func.func @transform_4(%arg0: i32, %arg1: i32) -> (i32, i32, i32) {
    %c0_i32 = arith.constant 0 : i32
    %c0_i32_0 = arith.constant 0 : i32
    %c0_i32_1 = arith.constant 0 : i32
    return %arg0, %c0_i32, %c0_i32_0 : i32, i32, i32
  }
}

module attributes {stable_mosaic.version = 11 : i64} {
  func.func @_bn_relu_kernel(%arg0: i32, %arg1: i32, %arg2: memref<1x8x256xbf16, #tpu.memory_space<vmem>>, %arg3: memref<8x1xf32, #tpu.memory_space<vmem>>, %arg4: memref<8x1xf32, #tpu.memory_space<vmem>>, %arg5: memref<1x8x256xbf16, #tpu.memory_space<vmem>>) attributes {dimension_semantics = [#tpu.dimension_semantics<parallel>, #tpu.dimension_semantics<parallel>], iteration_bounds = array<i64: 2, 1>, scalar_prefetch = 0 : i64, scratch_operands = 0 : i64, tpu.core_type = #tpu.core_type<tc>, window_params = [{transform_indices = @transform_0, window_bounds = array<i64: 1, 8, 256>}, {pipeline_mode = #tpu.pipeline_mode<synchronous>, transform_indices = @transform_1, window_bounds = array<i64: 8, 1>}, {pipeline_mode = #tpu.pipeline_mode<synchronous>, transform_indices = @transform_2, window_bounds = array<i64: 8, 1>}, {transform_indices = @transform_3, window_bounds = array<i64: 1, 8, 256>}]} {
    %c0 = arith.constant 0 : index
    %c0_0 = arith.constant 0 : index
    %c0_1 = arith.constant 0 : index
    %0 = vector.load %arg2[%c0, %c0_0, %c0_1] : memref<1x8x256xbf16, #tpu.memory_space<vmem>>, vector<1x8x256xbf16>
    %1 = vector.shape_cast %0 : vector<1x8x256xbf16> to vector<8x256xbf16>
    %2 = arith.extf %1 : vector<8x256xbf16> to vector<8x256xf32>
    %c0_2 = arith.constant 0 : index
    %c0_3 = arith.constant 0 : index
    %3 = vector.load %arg3[%c0_2, %c0_3] : memref<8x1xf32, #tpu.memory_space<vmem>>, vector<8x1xf32>
    %4 = vector.broadcast %3 : vector<8x1xf32> to vector<8x256xf32>
    %5 = arith.mulf %2, %4 : vector<8x256xf32>
    %c0_4 = arith.constant 0 : index
    %c0_5 = arith.constant 0 : index
    %6 = vector.load %arg4[%c0_4, %c0_5] : memref<8x1xf32, #tpu.memory_space<vmem>>, vector<8x1xf32>
    %7 = vector.broadcast %6 : vector<8x1xf32> to vector<8x256xf32>
    %8 = arith.addf %5, %7 : vector<8x256xf32>
    %cst = arith.constant 0.000000e+00 : f32
    %9 = vector.broadcast %cst : f32 to vector<8x256xf32>
    %10 = arith.maximumf %8, %9 : vector<8x256xf32>
    %11 = arith.truncf %10 : vector<8x256xf32> to vector<8x256xbf16>
    %c0_6 = arith.constant 0 : index
    %c0_7 = arith.constant 0 : index
    %c0_8 = arith.constant 0 : index
    %12 = vector.load %arg5[%c0_6, %c0_7, %c0_8] : memref<1x8x256xbf16, #tpu.memory_space<vmem>>, vector<1x8x256xbf16>
    %13 = vector.shape_cast %12 : vector<1x8x256xbf16> to vector<8x256xbf16>
    %14 = vector.shape_cast %11 : vector<8x256xbf16> to vector<1x8x256xbf16>
    tpu.vector_store %arg5[%c0_6, %c0_7, %c0_8], %14 {strides = array<i32>} : memref<1x8x256xbf16, #tpu.memory_space<vmem>>, vector<1x8x256xbf16>,
    return
  }
  func.func @transform_0(%arg0: i32, %arg1: i32) -> (i32, i32, i32) {
    %c0_i32 = arith.constant 0 : i32
    %c0_i32_0 = arith.constant 0 : i32
    return %arg0, %c0_i32, %arg1 : i32, i32, i32
  }
  func.func @transform_1(%arg0: i32, %arg1: i32) -> (i32, i32) {
    %c0_i32 = arith.constant 0 : i32
    %c0_i32_0 = arith.constant 0 : i32
    %c0_i32_1 = arith.constant 0 : i32
    return %c0_i32, %c0_i32_0 : i32, i32
  }
  func.func @transform_2(%arg0: i32, %arg1: i32) -> (i32, i32) {
    %c0_i32 = arith.constant 0 : i32
    %c0_i32_0 = arith.constant 0 : i32
    %c0_i32_1 = arith.constant 0 : i32
    return %c0_i32, %c0_i32_0 : i32, i32
  }
  func.func @transform_3(%arg0: i32, %arg1: i32) -> (i32, i32, i32) {
    %c0_i32 = arith.constant 0 : i32
    %c0_i32_0 = arith.constant 0 : i32
    return %arg0, %c0_i32, %arg1 : i32, i32, i32
  }
}

module attributes {stable_mosaic.version = 11 : i64} {
  func.func @_add3_conv_kernel(%arg0: i32, %arg1: i32, %arg2: memref<1x4x256xbf16, #tpu.memory_space<vmem>>, %arg3: memref<1x4x256xbf16, #tpu.memory_space<vmem>>, %arg4: memref<1x4x256xbf16, #tpu.memory_space<vmem>>, %arg5: memref<8x4xbf16, #tpu.memory_space<vmem>>, %arg6: memref<1x8x256xf32, #tpu.memory_space<vmem>>) attributes {dimension_semantics = [#tpu.dimension_semantics<parallel>, #tpu.dimension_semantics<parallel>], iteration_bounds = array<i64: 2, 1>, scalar_prefetch = 0 : i64, scratch_operands = 0 : i64, tpu.core_type = #tpu.core_type<tc>, window_params = [{transform_indices = @transform_0, window_bounds = array<i64: 1, 4, 256>}, {transform_indices = @transform_1, window_bounds = array<i64: 1, 4, 256>}, {transform_indices = @transform_2, window_bounds = array<i64: 1, 4, 256>}, {pipeline_mode = #tpu.pipeline_mode<synchronous>, transform_indices = @transform_3, window_bounds = array<i64: 8, 4>}, {transform_indices = @transform_4, window_bounds = array<i64: 1, 8, 256>}]} {
    %c0 = arith.constant 0 : index
    %c0_0 = arith.constant 0 : index
    %c0_1 = arith.constant 0 : index
    %0 = vector.load %arg2[%c0, %c0_0, %c0_1] : memref<1x4x256xbf16, #tpu.memory_space<vmem>>, vector<1x4x256xbf16>
    %1 = vector.shape_cast %0 : vector<1x4x256xbf16> to vector<4x256xbf16>
    %c0_2 = arith.constant 0 : index
    %c0_3 = arith.constant 0 : index
    %c0_4 = arith.constant 0 : index
    %2 = vector.load %arg3[%c0_2, %c0_3, %c0_4] : memref<1x4x256xbf16, #tpu.memory_space<vmem>>, vector<1x4x256xbf16>
    %3 = vector.shape_cast %2 : vector<1x4x256xbf16> to vector<4x256xbf16>
    %4 = arith.addf %1, %3 : vector<4x256xbf16>
    %c0_5 = arith.constant 0 : index
    %c0_6 = arith.constant 0 : index
    %c0_7 = arith.constant 0 : index
    %5 = vector.load %arg4[%c0_5, %c0_6, %c0_7] : memref<1x4x256xbf16, #tpu.memory_space<vmem>>, vector<1x4x256xbf16>
    %6 = vector.shape_cast %5 : vector<1x4x256xbf16> to vector<4x256xbf16>
    %7 = arith.addf %4, %6 : vector<4x256xbf16>
    %c0_8 = arith.constant 0 : index
    %c0_9 = arith.constant 0 : index
    %8 = vector.load %arg5[%c0_8, %c0_9] : memref<8x4xbf16, #tpu.memory_space<vmem>>, vector<8x4xbf16>
    %cst = arith.constant dense<0.000000e+00> : vector<8x256xf32>
    %9 = tpu.matmul %8, %7, %cst {dimension_numbers = #tpu.dot_dimension_numbers<[1], [0], [0], [1], [0, 0, 1, 1], [], []>} : vector<8x4xbf16>, vector<4x256xbf16>, vector<8x256xf32> -> vector<8x256xf32>
    %c0_10 = arith.constant 0 : index
    %c0_11 = arith.constant 0 : index
    %c0_12 = arith.constant 0 : index
    %10 = vector.load %arg6[%c0_10, %c0_11, %c0_12] : memref<1x8x256xf32, #tpu.memory_space<vmem>>, vector<1x8x256xf32>
    %11 = vector.shape_cast %10 : vector<1x8x256xf32> to vector<8x256xf32>
    %12 = vector.shape_cast %9 : vector<8x256xf32> to vector<1x8x256xf32>
    tpu.vector_store %arg6[%c0_10, %c0_11, %c0_12], %12 {strides = array<i32>} : memref<1x8x256xf32, #tpu.memory_space<vmem>>, vector<1x8x256xf32>,
    return
  }
  func.func @transform_0(%arg0: i32, %arg1: i32) -> (i32, i32, i32) {
    %c0_i32 = arith.constant 0 : i32
    %c0_i32_0 = arith.constant 0 : i32
    return %arg0, %c0_i32, %arg1 : i32, i32, i32
  }
  func.func @transform_1(%arg0: i32, %arg1: i32) -> (i32, i32, i32) {
    %c0_i32 = arith.constant 0 : i32
    %c0_i32_0 = arith.constant 0 : i32
    return %arg0, %c0_i32, %arg1 : i32, i32, i32
  }
  func.func @transform_2(%arg0: i32, %arg1: i32) -> (i32, i32, i32) {
    %c0_i32 = arith.constant 0 : i32
    %c0_i32_0 = arith.constant 0 : i32
    return %arg0, %c0_i32, %arg1 : i32, i32, i32
  }
  func.func @transform_3(%arg0: i32, %arg1: i32) -> (i32, i32) {
    %c0_i32 = arith.constant 0 : i32
    %c0_i32_0 = arith.constant 0 : i32
    %c0_i32_1 = arith.constant 0 : i32
    return %c0_i32, %c0_i32_0 : i32, i32
  }
  func.func @transform_4(%arg0: i32, %arg1: i32) -> (i32, i32, i32) {
    %c0_i32 = arith.constant 0 : i32
    %c0_i32_0 = arith.constant 0 : i32
    return %arg0, %c0_i32, %arg1 : i32, i32, i32
  }
}

</mosaic_0001>

<llo_original>
// kernel: spectral_transform.7
$region0: #{spectral_transform.7}
  #allocation0 [shape = 'u32[]', space=smem, size = 0x4, offset = 0x4, fixed_abs, tag = 'smem constant byte address 0x4 - core index']
  #allocation1 [shape = 'u32[144,128]{1,0:T(1,128)}', space=vmem, size = 0x12000, scoped, tag = 'internal scratch']
  %s0 = inlined_call_operand.vmem [shape: bf16[2,4,256], index: 0, kind: input, shape index: {}]
  %s1 = inlined_call_operand.vmem [shape: bf16[4,4], index: 1, kind: input, shape index: {}]
  %s2 = inlined_call_operand.vmem [shape: bf16[2,4,256], index: 2, kind: output, shape index: {0}]
  %s3 = inlined_call_operand.vmem [shape: f32[2,4,1], index: 3, kind: output, shape index: {1}]
  %s4 = inlined_call_operand.vmem [shape: f32[2,4,1], index: 4, kind: output, shape index: {2}]
  %5 = xla_tuple %s2, %s3, %s4
  %s6 = sld [smem:[#allocation0]]
  $region61: #{spectral_transform.7} parent=0
    _
  %s8 = ssub.s32 1, %s6
  %s9 = scalar_select 0, %s8, %s6
  loop: start=0, step=1, limit=4
  $region2: #{spectral_transform.7} parent=0 // loop_pre_header
    _
  $region3: #{spectral_transform.7} parent=0 // loop_header
    %s11 = sphi 0, %s15
    %p12 = scmp.ge.s32.totalorder %s11, 4
    %s18 = sphi 0, %s30
    %s19 = sphi 0, %s26
    %s20 = sphi 0, %s18
    %s21 = sphi 0, %s19
    %s22 = sphi 0, %s20
    %s23 = sphi 0, %s21
    %s35 = sphi 0, %s37
    %s38 = sphi 0, %s35
    %s39 = sphi 0, %s38
    %s55 = sphi 0, %s39
    %s59 = sphi 0, %s59
    %s61 = sphi 0, %s59
    %s62 = sphi 0, %s61
    %s76 = sphi 0, %s62
    %s84 = sphi 0, %s86
    %s87 = sphi 0, %s84
    %s88 = sphi 0, %s87
    %s104 = sphi 0, %s88
    %s110 = sphi 0, %s112
    %s113 = sphi 0, %s110
    %s114 = sphi 0, %s113
    %s130 = sphi 0, %s114
    %s136 = sphi 0, %s138
    %s139 = sphi 0, %s136
    %s140 = sphi 0, %s139
    %s156 = sphi 0, %s140
  $region4: #{spectral_transform.7} parent=0 // loop_header_branch
    %14 = sbr.rel (%p12) target = $region8
  $region5: #{spectral_transform.7} parent=0 // loop_body
    %s16 = ssub.s32 %s11, 1
    %s17 = ssub.s32 %s11, 2
    %s24 = sadd.s32 1, %s19
    %p25 = scmp.ge.s32.totalorder %s24, 1
    %s26 = scalar_select %p25, 0, %s24
    %s27 = sadd.s32 1, %s18
    %s28 = scalar_select %p25, %s27, %s18
    %p29 = scmp.ge.s32.totalorder %s28, 2
    %s30 = scalar_select %p29, 0, %s28
    %s31 = ssub.s32 %s18, %s30
    %s32 = ssub.s32 %s19, %s26
    %s33 = sor.u32 %s31, %s32
    %p34 = scmp.eq.s32.totalorder %s33, 0
    %s36 = sadd.s32 %s35, 1
    %s37 = scalar_select %p34, %s35, %s36
    %p40 = pneg %p34
    %p41 = scmp.eq.s32.totalorder %s11, 1
    %p42 = por %p40, %p41
    %p43 = scmp.ne.s32.totalorder %s35, %s38
    %p44 = scmp.eq.s32.totalorder %s11, 0
    %p45 = por %p43, %p44
    %p46 = scmp.ne.s32.totalorder %s35, %s38
    %p47 = scmp.eq.s32.totalorder %s16, 1
    %p48 = por %p46, %p47
    %p49 = scmp.ne.s32.totalorder %s38, %s39
    %p50 = scmp.eq.s32.totalorder %s16, 0
    %p51 = por %p49, %p50
    %p52 = scmp.ne.s32.totalorder %s38, %s39
    %p53 = scmp.eq.s32.totalorder %s17, 1
    %p54 = por %p52, %p53
    %p56 = scmp.ne.s32.totalorder %s39, %s55
    %p57 = scmp.eq.s32.totalorder %s17, 0
    %p58 = por %p56, %p57
    %s60 = sadd.s32 %s59, 1
    %p63 = scmp.eq.s32.totalorder %s11, 1
    %p64 = scmp.ne.s32.totalorder %s59, %s61
    %p65 = scmp.eq.s32.totalorder %s11, 0
    %p66 = por %p64, %p65
    %p67 = scmp.ne.s32.totalorder %s59, %s61
    %p68 = scmp.eq.s32.totalorder %s16, 1
    %p69 = por %p67, %p68
    %p70 = scmp.ne.s32.totalorder %s61, %s62
    %p71 = scmp.eq.s32.totalorder %s16, 0
    %p72 = por %p70, %p71
    %p73 = scmp.ne.s32.totalorder %s61, %s62
    %p74 = scmp.eq.s32.totalorder %s17, 1
    %p75 = por %p73, %p74
    %p77 = scmp.ne.s32.totalorder %s62, %s76
    %p78 = scmp.eq.s32.totalorder %s17, 0
    %p79 = por %p77, %p78
    %s80 = ssub.s32 %s18, %s30
    %s81 = ssub.s32 %s19, %s26
    %s82 = sor.u32 %s80, %s81
    %p83 = scmp.eq.s32.totalorder %s82, 0
    %s85 = sadd.s32 %s84, 1
    %s86 = scalar_select %p83, %s84, %s85
    %p89 = pneg %p83
    %p90 = scmp.eq.s32.totalorder %s11, 1
    %p91 = por %p89, %p90
    %p92 = scmp.ne.s32.totalorder %s84, %s87
    %p93 = scmp.eq.s32.totalorder %s11, 0
    %p94 = por %p92, %p93
    %p95 = scmp.ne.s32.totalorder %s84, %s87
    %p96 = scmp.eq.s32.totalorder %s16, 1
    %p97 = por %p95, %p96
    %p98 = scmp.ne.s32.totalorder %s87, %s88
    %p99 = scmp.eq.s32.totalorder %s16, 0
    %p100 = por %p98, %p99
    %p101 = scmp.ne.s32.totalorder %s87, %s88
    %p102 = scmp.eq.s32.totalorder %s17, 1
    %p103 = por %p101, %p102
    %p105 = scmp.ne.s32.totalorder %s88, %s104
    %p106 = scmp.eq.s32.totalorder %s17, 0
    %p107 = por %p105, %p106
    %s108 = ssub.s32 %s18, %s30
    %p109 = scmp.eq.s32.totalorder %s108, 0
    %s111 = sadd.s32 %s110, 1
    %s112 = scalar_select %p109, %s110, %s111
    %p115 = pneg %p109
    %p116 = scmp.eq.s32.totalorder %s11, 1
    %p117 = por %p115, %p116
    %p118 = scmp.ne.s32.totalorder %s110, %s113
    %p119 = scmp.eq.s32.totalorder %s11, 0
    %p120 = por %p118, %p119
    %p121 = scmp.ne.s32.totalorder %s110, %s113
    %p122 = scmp.eq.s32.totalorder %s16, 1
    %p123 = por %p121, %p122
    %p124 = scmp.ne.s32.totalorder %s113, %s114
    %p125 = scmp.eq.s32.totalorder %s16, 0
    %p126 = por %p124, %p125
    %p127 = scmp.ne.s32.totalorder %s113, %s114
    %p128 = scmp.eq.s32.totalorder %s17, 1
    %p129 = por %p127, %p128
    %p131 = scmp.ne.s32.totalorder %s114, %s130
    %p132 = scmp.eq.s32.totalorder %s17, 0
    %p133 = por %p131, %p132
    %s134 = ssub.s32 %s18, %s30
    %p135 = scmp.eq.s32.totalorder %s134, 0
    %s137 = sadd.s32 %s136, 1
    %s138 = scalar_select %p135, %s136, %s137
    %p141 = pneg %p135
    %p142 = scmp.eq.s32.totalorder %s11, 1
    %p143 = por %p141, %p142
    %p144 = scmp.ne.s32.totalorder %s136, %s139
    %p145 = scmp.eq.s32.totalorder %s11, 0
    %p146 = por %p144, %p145
    %p147 = scmp.ne.s32.totalorder %s136, %s139
    %p148 = scmp.eq.s32.totalorder %s16, 1
    %p149 = por %p147, %p148
    %p150 = scmp.ne.s32.totalorder %s139, %s140
    %p151 = scmp.eq.s32.totalorder %s16, 0
    %p152 = por %p150, %p151
    %p153 = scmp.ne.s32.totalorder %s139, %s140
    %p154 = scmp.eq.s32.totalorder %s17, 1
    %p155 = por %p153, %p154
    %p157 = scmp.ne.s32.totalorder %s140, %s156
    %p158 = scmp.eq.s32.totalorder %s17, 0
    %p159 = por %p157, %p158
    %p160 = scmp.le.s32.totalorder 1, %s11
    %p161 = scmp.lt.s32.totalorder %s11, 3
    %p162 = pnand %p160, %p161
    %p163 = pneg %p162
    // Predicated region
    $region9: #{spectral_transform.7} parent=5 // pred_check
      _
    $region10: #{spectral_transform.7} parent=5 // pred_check_branch
      %165 = sbr.rel (%p162) target = $region12
    $region11: #{spectral_transform.7} parent=5 // pred_region
      %s166 = ssub.s32 %s11, 1
      // Predicated region
      $region13: #{spectral_transform.7} parent=11 // pred_check
        %p167 = pneg %p72
      $region14: #{spectral_transform.7} parent=11 // pred_check_branch
        %169 = sbr.rel (%p167) target = $region16
      $region15: #{spectral_transform.7} parent=11 // pred_region
        _
      $region16: #{spectral_transform.7} parent=11 // pred_fallthru
        _
    $region12: #{spectral_transform.7} parent=5 // pred_fallthru
      _
    %p170 = scmp.lt.s32.totalorder %s11, 2
    // Predicated region
    $region17: #{spectral_transform.7} parent=5 // pred_check
      %p171 = pneg %p170
    $region18: #{spectral_transform.7} parent=5 // pred_check_branch
      %173 = sbr.rel (%p171) target = $region20
    $region19: #{spectral_transform.7} parent=5 // pred_region
      // Predicated region
      $region21: #{spectral_transform.7} parent=19 // pred_check
        %p174 = pneg %p45
      $region22: #{spectral_transform.7} parent=19 // pred_check_branch
        %176 = sbr.rel (%p174) target = $region24
      $region23: #{spectral_transform.7} parent=19 // pred_region
        %s177 = smul.u32 2, %s19
        %p178 = scmp.lt.s32.totalorder %s18, 1
        %s179 = scalar_select %p178, %s18, 1
        %p180 = scmp.lt.s32.totalorder %s177, 1
        %s181 = scalar_select %p180, %s177, 1
        %s182 = smul.addr %s179, 2
        %s183 = sadd.s32 %s181, %s182
        %s184 = smul.addr %s183, 2
        %s185 = scalar_lea.vmem %s0, %s184
        %s186 = smul.u32 2, %s19
      $region24: #{spectral_transform.7} parent=19 // pred_fallthru
        _
    $region20: #{spectral_transform.7} parent=5 // pred_fallthru
      _
    %p187 = scmp.le.s32.totalorder 1, %s11
    %p188 = scmp.lt.s32.totalorder %s11, 3
    %p189 = pnand %p187, %p188
    %p190 = pneg %p189
    // Predicated region
    $region25: #{spectral_transform.7} parent=5 // pred_check
      _
    $region26: #{spectral_transform.7} parent=5 // pred_check_branch
      %192 = sbr.rel (%p189) target = $region28
    $region27: #{spectral_transform.7} parent=5 // pred_region
      %s193 = ssub.s32 %s11, 1
      %s194 = smul.u32 2, %s21
      %p195 = scmp.lt.s32.totalorder %s20, 1
      %s196 = scalar_select %p195, %s20, 1
      %p197 = scmp.lt.s32.totalorder %s194, 1
      %s198 = scalar_select %p197, %s194, 1
      %s199 = smul.addr %s196, 2
      %s200 = sadd.s32 %s198, %s199
      %s201 = smul.addr %s200, 2
      %s202 = scalar_lea.vmem %s0, %s201
      %p203 = pneg %p51
      %p204 = pneg %p48
      %p205 = pneg %p72
      %p206 = pneg %p69
      %p207 = pneg %p100
      %p208 = pneg %p97
      %s209 = smul.u32 2, %s21
      %p210 = scmp.lt.s32.totalorder %s20, 1
      %s211 = scalar_select %p210, %s20, 1
      %p212 = scmp.lt.s32.totalorder %s209, 1
      %s213 = scalar_select %p212, %s209, 1
      %s214 = smul.addr %s211, 2
      %s215 = sadd.s32 %s213, %s214
      %s216 = smul.addr %s215, 2
      %s217 = scalar_lea.vmem %s2, %s216
      %p218 = pneg %p126
      %p219 = pneg %p123
      %p220 = scmp.lt.s32.totalorder %s20, 1
      %s221 = scalar_select %p220, %s20, 1
      %s222 = smul.addr %s221, 4
      %s223 = scalar_lea.vmem %s3, %s222
      %p224 = pneg %p152
      %p225 = pneg %p149
      %p226 = scmp.lt.s32.totalorder %s20, 1
      %s227 = scalar_select %p226, %s20, 1
      %s228 = smul.addr %s227, 4
      %s229 = scalar_lea.vmem %s4, %s228
      %s230 = smul.u32 2, %s21
      %p231 = scmp.lt.s32.totalorder %s20, 1
      %s232 = scalar_select %p231, %s20, 1
      %p233 = scmp.lt.s32.totalorder %s230, 1
      %s234 = scalar_select %p233, %s230, 1
      %s235 = smul.addr %s232, 2
      %s236 = sadd.s32 %s234, %s235
      %s237 = smul.addr %s236, 2
      %s238 = scalar_lea.vmem %s0, %s237
      %s239 = smul.u32 2, %s21
      %s240 = smul.u32 2, %s21
      %p241 = scmp.lt.s32.totalorder %s20, 1
      %s242 = scalar_select %p241, %s20, 1
      %p243 = scmp.lt.s32.totalorder %s240, 1
      %s244 = scalar_select %p243, %s240, 1
      %s245 = smul.addr %s242, 2
      %s246 = sadd.s32 %s244, %s245
      %s247 = smul.addr %s246, 2
      %s248 = scalar_lea.vmem %s2, %s247
      %s249 = smul.u32 2, %s21
      %p250 = scmp.lt.s32.totalorder %s20, 1
      %s251 = scalar_select %p250, %s20, 1
      %s252 = smul.addr %s251, 4
      %s253 = scalar_lea.vmem %s3, %s252
      %p254 = scmp.lt.s32.totalorder %s20, 1
      %s255 = scalar_select %p254, %s20, 1
      %s256 = smul.addr %s255, 4
      %s257 = scalar_lea.vmem %s4, %s256
      %v259 = vld [vmem:[%s1] sm:$0x3]
      %v260 = vld [vmem:[%s238] sm:$0xf]
      %v263 = vunpack.c.l.s4 1983009808
      %v264 = vunpack.c.0.s8 %v263
      %v265 = vlaneseq
      %v266 = vshrl.u32 %v265, 7
      %v267 = vsub.s32 %v264, %v266
      %v268 = vrot.slane %v260, %v267
      %v269 = vcombine.high %v268, %v268
      %vm270 = vcmask 31744
      %v272 = vsel %vm270, %v259, 0
      %vm274 = vcmask 1041408
      %v276 = vsel %vm274, %v268, 0
      %v279 = vsel %vm274, %v269, 0
      %281 = vmatprep.subr.bf16.mxu0 %v279
      %282 = vmatpush1.bf16.msra.mxu0 %v276
      %283 = vmatprep.subr.bf16.mxu0 0
      %284 = vmatpush1.bf16.msra.mxu0 0
      %285 = vmatprep.subr.bf16.mxu0 0
      %286 = vmatpush1.bf16.msra.mxu0 0
      %287 = vmatprep.subr.bf16.mxu0 0
      %288 = vmatpush1.bf16.msra.mxu0 0
      %289 = vmatprep.subr.bf16.mxu0 0
      %290 = vmatpush1.bf16.msra.mxu0 0
      %291 = vmatprep.subr.bf16.mxu0 0
      %292 = vmatpush1.bf16.msra.mxu0 0
      %293 = vmatprep.subr.bf16.mxu0 0
      %294 = vmatpush1.bf16.msra.mxu0 0
      %295 = vmatprep.subr.bf16.mxu0 0
      %296 = vmatpush1.bf16.msra.mxu0 0
      %297 = vmatprep.subr.bf16.mxu0 0
      %298 = vmatpush1.bf16.msra.mxu0 0
      %299 = vmatprep.subr.bf16.mxu0 0
      %300 = vmatpush1.bf16.msra.mxu0 0
      %301 = vmatprep.subr.bf16.mxu0 0
      %302 = vmatpush1.bf16.msra.mxu0 0
      %303 = vmatprep.subr.bf16.mxu0 0
      %304 = vmatpush1.bf16.msra.mxu0 0
      %305 = vmatprep.subr.bf16.mxu0 0
      %306 = vmatpush1.bf16.msra.mxu0 0
      %307 = vmatprep.subr.bf16.mxu0 0
      %308 = vmatpush1.bf16.msra.mxu0 0
      %309 = vmatprep.subr.bf16.mxu0 0
      %310 = vmatpush1.bf16.msra.mxu0 0
      %311 = vmatprep.subr.bf16.mxu0 0
      %312 = vmatpush1.bf16.msra.mxu0 0
      %313 = vmatprep.mubr.bf16.mxu0 0
      %314 = vmatmul.mubr.bf16.gmra.mrb[0].mxu0 %v272
      %v315 = vpop.f32.mrb[0].mxu0
      %v316 = vadd.f32 0.0, %v315
      %v317 = vpop.f32.mrb[0].mxu0
      %v318 = vadd.f32 0.0, %v317
      %v319 = vpop.f32.mrb[0].mxu0
      %v320 = vpop.f32.mrb[0].mxu0
      %321 = vdwg.mxu0
      %v322 = vpack.c.bf16 %v316, %v316
      %v323 = vpack.c.bf16 %v318, %v318
      %v326 = vcombine.low %v322, %v323
      %v328 = vunpack.c.l.s4 1983009808
      %v329 = vunpack.c.0.s8 %v328
      %v330 = vlaneseq
      %v331 = vshrl.u32 %v330, 7
      %v332 = vsub.s32 %v329, %v331
      %v333 = vrot.slane %v326, %v332
      %335 = vst [vmem:[%s248] sm:$0xf] %v333
      %p336 = scmp.eq.s32.totalorder %s21, 0
      // Predicated region
      $region29: #{spectral_transform.7} parent=27 // pred_check
        %p337 = pneg %p336
      $region30: #{spectral_transform.7} parent=27 // pred_check_branch
        %339 = sbr.rel (%p337) target = $region32
      $region31: #{spectral_transform.7} parent=27 // pred_region
        %vm340 = vcmask 3072
        %341 = vst.msk [vmem:[%s253] sm:$0xf] %vm340, 0.0
        %342 = vst.msk [vmem:[%s257] sm:$0xf] %vm340, 0.0
      $region32: #{spectral_transform.7} parent=27 // pred_fallthru
        _
      %v343 = vld [vmem:[%s253] sm:$0xf]
      %vm344 = vcmask 1043456
      %v345 = vsel %vm344, %v316, 0.0
      %v346 = vsel %vm344, %v318, 0.0
      %v347 = vadd.f32 %v345, %v346
      %348 = vadd.xlane.f32.xlu0 %v347
      %v349 = vpop.xlane.xlu0 %348
      %v350 = vadd.f32 %v343, %v349
      %vm351 = vcmask 3072
      %352 = vst.msk [vmem:[%s253] sm:$0xf] %vm351, %v350
      %v353 = vld [vmem:[%s257] sm:$0xf]
      %v354 = vmul.f32 %v316, %v316
      %v355 = vmul.f32 %v318, %v318
      %v356 = vsel %vm344, %v354, 0.0
      %v357 = vsel %vm344, %v355, 0.0
      %v358 = vadd.f32 %v356, %v357
      %359 = vadd.xlane.f32.xlu0 %v358
      %v360 = vpop.xlane.xlu0 %359
      %v361 = vadd.f32 %v353, %v360
      %362 = vst.msk [vmem:[%s257] sm:$0xf] %vm351, %v361
      %s363 = smul.u32 2, %s21
      %p364 = scmp.lt.s32.totalorder %s20, 1
      %s365 = scalar_select %p364, %s20, 1
      %p366 = scmp.lt.s32.totalorder %s363, 1
      %s367 = scalar_select %p366, %s363, 1
      %s368 = smul.addr %s365, 2
      %s369 = sadd.s32 %s367, %s368
      %s370 = smul.addr %s369, 2
      %s371 = scalar_lea.vmem %s2, %s370
      %p372 = scmp.lt.s32.totalorder %s20, 1
      %s373 = scalar_select %p372, %s20, 1
      %s374 = smul.addr %s373, 4
      %s375 = scalar_lea.vmem %s3, %s374
      %p376 = scmp.lt.s32.totalorder %s20, 1
      %s377 = scalar_select %p376, %s20, 1
      %s378 = smul.addr %s377, 4
      %s379 = scalar_lea.vmem %s4, %s378
      // Predicated region
      $region33: #{spectral_transform.7} parent=27 // pred_check
        %p380 = pneg %p97
      $region34: #{spectral_transform.7} parent=27 // pred_check_branch
        %382 = sbr.rel (%p380) target = $region36
      $region35: #{spectral_transform.7} parent=27 // pred_region
        %s383 = smul.u32 2, %s21
      $region36: #{spectral_transform.7} parent=27 // pred_fallthru
        _
      // Predicated region
      $region37: #{spectral_transform.7} parent=27 // pred_check
        %p384 = pneg %p123
      $region38: #{spectral_transform.7} parent=27 // pred_check_branch
        %386 = sbr.rel (%p384) target = $region40
      $region39: #{spectral_transform.7} parent=27 // pred_region
        _
      $region40: #{spectral_transform.7} parent=27 // pred_fallthru
        _
      // Predicated region
      $region41: #{spectral_transform.7} parent=27 // pred_check
        %p387 = pneg %p149
      $region42: #{spectral_transform.7} parent=27 // pred_check_branch
        %389 = sbr.rel (%p387) target = $region44
      $region43: #{spectral_transform.7} parent=27 // pred_region
        _
      $region44: #{spectral_transform.7} parent=27 // pred_fallthru
        _
    $region28: #{spectral_transform.7} parent=5 // pred_fallthru
      _
    %p390 = scmp.le.s32.totalorder 2, %s11
    // Predicated region
    $region45: #{spectral_transform.7} parent=5 // pred_check
      %p391 = pneg %p390
    $region46: #{spectral_transform.7} parent=5 // pred_check_branch
      %393 = sbr.rel (%p391) target = $region48
    $region47: #{spectral_transform.7} parent=5 // pred_region
      %s394 = ssub.s32 %s11, 2
      // Predicated region
      $region49: #{spectral_transform.7} parent=47 // pred_check
        %p395 = pneg %p103
      $region50: #{spectral_transform.7} parent=47 // pred_check_branch
        %397 = sbr.rel (%p395) target = $region52
      $region51: #{spectral_transform.7} parent=47 // pred_region
        %s398 = smul.u32 2, %s23
        %p399 = scmp.lt.s32.totalorder %s22, 1
        %s400 = scalar_select %p399, %s22, 1
        %p401 = scmp.lt.s32.totalorder %s398, 1
        %s402 = scalar_select %p401, %s398, 1
        %s403 = smul.addr %s400, 2
        %s404 = sadd.s32 %s402, %s403
        %s405 = smul.addr %s404, 2
        %s406 = scalar_lea.vmem %s2, %s405
      $region52: #{spectral_transform.7} parent=47 // pred_fallthru
        _
      // Predicated region
      $region53: #{spectral_transform.7} parent=47 // pred_check
        %p407 = pneg %p129
      $region54: #{spectral_transform.7} parent=47 // pred_check_branch
        %409 = sbr.rel (%p407) target = $region56
      $region55: #{spectral_transform.7} parent=47 // pred_region
        %p410 = scmp.lt.s32.totalorder %s22, 1
        %s411 = scalar_select %p410, %s22, 1
        %s412 = smul.addr %s411, 4
        %s413 = scalar_lea.vmem %s3, %s412
      $region56: #{spectral_transform.7} parent=47 // pred_fallthru
        _
      // Predicated region
      $region57: #{spectral_transform.7} parent=47 // pred_check
        %p414 = pneg %p155
      $region58: #{spectral_transform.7} parent=47 // pred_check_branch
        %416 = sbr.rel (%p414) target = $region60
      $region59: #{spectral_transform.7} parent=47 // pred_region
        %p417 = scmp.lt.s32.totalorder %s22, 1
        %s418 = scalar_select %p417, %s22, 1
        %s419 = smul.addr %s418, 4
        %s420 = scalar_lea.vmem %s4, %s419
      $region60: #{spectral_transform.7} parent=47 // pred_fallthru
        _
    $region48: #{spectral_transform.7} parent=5 // pred_fallthru
      _
  $region6: #{spectral_transform.7} parent=0 // loop_footer
    %s15 = sadd.s32 1, %s11
  $region7: #{spectral_transform.7} parent=0 // loop_footer_branch
    %10 = sbr.rel target = $region3
  $region8: #{spectral_transform.7} parent=0 // loop_exit
    _

// kernel: spectral_transform.8
$region0: #{spectral_transform.8}
  #allocation0 [shape = 'u32[]', space=smem, size = 0x4, offset = 0x4, fixed_abs, tag = 'smem constant byte address 0x4 - core index']
  #allocation1 [shape = 'u32[144,128]{1,0:T(1,128)}', space=vmem, size = 0x12000, scoped, tag = 'internal scratch']
  %s0 = inlined_call_operand.vmem [shape: bf16[2,4,256], index: 0, kind: input, shape index: {}]
  %s1 = inlined_call_operand.vmem [shape: f32[4,1], index: 1, kind: input, shape index: {}]
  %s2 = inlined_call_operand.vmem [shape: f32[4,1], index: 2, kind: input, shape index: {}]
  %s3 = inlined_call_operand.vmem [shape: bf16[2,4,256], index: 3, kind: output, shape index: {}]
  %s4 = sld [smem:[#allocation0]]
  $region45: #{spectral_transform.8} parent=0
    _
  %s6 = ssub.s32 1, %s4
  %s7 = scalar_select 0, %s6, %s4
  loop: start=0, step=1, limit=4
  $region2: #{spectral_transform.8} parent=0 // loop_pre_header
    _
  $region3: #{spectral_transform.8} parent=0 // loop_header
    %s9 = sphi 0, %s13
    %p10 = scmp.ge.s32.totalorder %s9, 4
    %s16 = sphi 0, %s28
    %s17 = sphi 0, %s24
    %s18 = sphi 0, %s16
    %s19 = sphi 0, %s17
    %s20 = sphi 0, %s18
    %s21 = sphi 0, %s19
    %s33 = sphi 0, %s35
    %s36 = sphi 0, %s33
    %s37 = sphi 0, %s36
    %s53 = sphi 0, %s37
    %s57 = sphi 0, %s57
    %s59 = sphi 0, %s57
    %s60 = sphi 0, %s59
    %s74 = sphi 0, %s60
    %s78 = sphi 0, %s78
    %s80 = sphi 0, %s78
    %s81 = sphi 0, %s80
    %s95 = sphi 0, %s81
    %s103 = sphi 0, %s105
    %s106 = sphi 0, %s103
    %s107 = sphi 0, %s106
    %s123 = sphi 0, %s107
  $region4: #{spectral_transform.8} parent=0 // loop_header_branch
    %12 = sbr.rel (%p10) target = $region8
  $region5: #{spectral_transform.8} parent=0 // loop_body
    %s14 = ssub.s32 %s9, 1
    %s15 = ssub.s32 %s9, 2
    %s22 = sadd.s32 1, %s17
    %p23 = scmp.ge.s32.totalorder %s22, 1
    %s24 = scalar_select %p23, 0, %s22
    %s25 = sadd.s32 1, %s16
    %s26 = scalar_select %p23, %s25, %s16
    %p27 = scmp.ge.s32.totalorder %s26, 2
    %s28 = scalar_select %p27, 0, %s26
    %s29 = ssub.s32 %s16, %s28
    %s30 = ssub.s32 %s17, %s24
    %s31 = sor.u32 %s29, %s30
    %p32 = scmp.eq.s32.totalorder %s31, 0
    %s34 = sadd.s32 %s33, 1
    %s35 = scalar_select %p32, %s33, %s34
    %p38 = pneg %p32
    %p39 = scmp.eq.s32.totalorder %s9, 1
    %p40 = por %p38, %p39
    %p41 = scmp.ne.s32.totalorder %s33, %s36
    %p42 = scmp.eq.s32.totalorder %s9, 0
    %p43 = por %p41, %p42
    %p44 = scmp.ne.s32.totalorder %s33, %s36
    %p45 = scmp.eq.s32.totalorder %s14, 1
    %p46 = por %p44, %p45
    %p47 = scmp.ne.s32.totalorder %s36, %s37
    %p48 = scmp.eq.s32.totalorder %s14, 0
    %p49 = por %p47, %p48
    %p50 = scmp.ne.s32.totalorder %s36, %s37
    %p51 = scmp.eq.s32.totalorder %s15, 1
    %p52 = por %p50, %p51
    %p54 = scmp.ne.s32.totalorder %s37, %s53
    %p55 = scmp.eq.s32.totalorder %s15, 0
    %p56 = por %p54, %p55
    %s58 = sadd.s32 %s57, 1
    %p61 = scmp.eq.s32.totalorder %s9, 1
    %p62 = scmp.ne.s32.totalorder %s57, %s59
    %p63 = scmp.eq.s32.totalorder %s9, 0
    %p64 = por %p62, %p63
    %p65 = scmp.ne.s32.totalorder %s57, %s59
    %p66 = scmp.eq.s32.totalorder %s14, 1
    %p67 = por %p65, %p66
    %p68 = scmp.ne.s32.totalorder %s59, %s60
    %p69 = scmp.eq.s32.totalorder %s14, 0
    %p70 = por %p68, %p69
    %p71 = scmp.ne.s32.totalorder %s59, %s60
    %p72 = scmp.eq.s32.totalorder %s15, 1
    %p73 = por %p71, %p72
    %p75 = scmp.ne.s32.totalorder %s60, %s74
    %p76 = scmp.eq.s32.totalorder %s15, 0
    %p77 = por %p75, %p76
    %s79 = sadd.s32 %s78, 1
    %p82 = scmp.eq.s32.totalorder %s9, 1
    %p83 = scmp.ne.s32.totalorder %s78, %s80
    %p84 = scmp.eq.s32.totalorder %s9, 0
    %p85 = por %p83, %p84
    %p86 = scmp.ne.s32.totalorder %s78, %s80
    %p87 = scmp.eq.s32.totalorder %s14, 1
    %p88 = por %p86, %p87
    %p89 = scmp.ne.s32.totalorder %s80, %s81
    %p90 = scmp.eq.s32.totalorder %s14, 0
    %p91 = por %p89, %p90
    %p92 = scmp.ne.s32.totalorder %s80, %s81
    %p93 = scmp.eq.s32.totalorder %s15, 1
    %p94 = por %p92, %p93
    %p96 = scmp.ne.s32.totalorder %s81, %s95
    %p97 = scmp.eq.s32.totalorder %s15, 0
    %p98 = por %p96, %p97
    %s99 = ssub.s32 %s16, %s28
    %s100 = ssub.s32 %s17, %s24
    %s101 = sor.u32 %s99, %s100
    %p102 = scmp.eq.s32.totalorder %s101, 0
    %s104 = sadd.s32 %s103, 1
    %s105 = scalar_select %p102, %s103, %s104
    %p108 = pneg %p102
    %p109 = scmp.eq.s32.totalorder %s9, 1
    %p110 = por %p108, %p109
    %p111 = scmp.ne.s32.totalorder %s103, %s106
    %p112 = scmp.eq.s32.totalorder %s9, 0
    %p113 = por %p111, %p112
    %p114 = scmp.ne.s32.totalorder %s103, %s106
    %p115 = scmp.eq.s32.totalorder %s14, 1
    %p116 = por %p114, %p115
    %p117 = scmp.ne.s32.totalorder %s106, %s107
    %p118 = scmp.eq.s32.totalorder %s14, 0
    %p119 = por %p117, %p118
    %p120 = scmp.ne.s32.totalorder %s106, %s107
    %p121 = scmp.eq.s32.totalorder %s15, 1
    %p122 = por %p120, %p121
    %p124 = scmp.ne.s32.totalorder %s107, %s123
    %p125 = scmp.eq.s32.totalorder %s15, 0
    %p126 = por %p124, %p125
    %p127 = scmp.le.s32.totalorder 1, %s9
    %p128 = scmp.lt.s32.totalorder %s9, 3
    %p129 = pnand %p127, %p128
    %p130 = pneg %p129
    // Predicated region
    $region9: #{spectral_transform.8} parent=5 // pred_check
      _
    $region10: #{spectral_transform.8} parent=5 // pred_check_branch
      %132 = sbr.rel (%p129) target = $region12
    $region11: #{spectral_transform.8} parent=5 // pred_region
      %s133 = ssub.s32 %s9, 1
      // Predicated region
      $region13: #{spectral_transform.8} parent=11 // pred_check
        %p134 = pneg %p70
      $region14: #{spectral_transform.8} parent=11 // pred_check_branch
        %136 = sbr.rel (%p134) target = $region16
      $region15: #{spectral_transform.8} parent=11 // pred_region
        _
      $region16: #{spectral_transform.8} parent=11 // pred_fallthru
        _
      // Predicated region
      $region17: #{spectral_transform.8} parent=11 // pred_check
        %p137 = pneg %p91
      $region18: #{spectral_transform.8} parent=11 // pred_check_branch
        %139 = sbr.rel (%p137) target = $region20
      $region19: #{spectral_transform.8} parent=11 // pred_region
        _
      $region20: #{spectral_transform.8} parent=11 // pred_fallthru
        _
    $region12: #{spectral_transform.8} parent=5 // pred_fallthru
      _
    %p140 = scmp.lt.s32.totalorder %s9, 2
    // Predicated region
    $region21: #{spectral_transform.8} parent=5 // pred_check
      %p141 = pneg %p140
    $region22: #{spectral_transform.8} parent=5 // pred_check_branch
      %143 = sbr.rel (%p141) target = $region24
    $region23: #{spectral_transform.8} parent=5 // pred_region
      // Predicated region
      $region25: #{spectral_transform.8} parent=23 // pred_check
        %p144 = pneg %p43
      $region26: #{spectral_transform.8} parent=23 // pred_check_branch
        %146 = sbr.rel (%p144) target = $region28
      $region27: #{spectral_transform.8} parent=23 // pred_region
        %s147 = smul.u32 2, %s17
        %p148 = scmp.lt.s32.totalorder %s16, 1
        %s149 = scalar_select %p148, %s16, 1
        %p150 = scmp.lt.s32.totalorder %s147, 1
        %s151 = scalar_select %p150, %s147, 1
        %s152 = smul.addr %s149, 2
        %s153 = sadd.s32 %s151, %s152
        %s154 = smul.addr %s153, 2
        %s155 = scalar_lea.vmem %s0, %s154
        %s156 = smul.u32 2, %s17
      $region28: #{spectral_transform.8} parent=23 // pred_fallthru
        _
    $region24: #{spectral_transform.8} parent=5 // pred_fallthru
      _
    %p157 = scmp.le.s32.totalorder 1, %s9
    %p158 = scmp.lt.s32.totalorder %s9, 3
    %p159 = pnand %p157, %p158
    %p160 = pneg %p159
    // Predicated region
    $region29: #{spectral_transform.8} parent=5 // pred_check
      _
    $region30: #{spectral_transform.8} parent=5 // pred_check_branch
      %162 = sbr.rel (%p159) target = $region32
    $region31: #{spectral_transform.8} parent=5 // pred_region
      %s163 = ssub.s32 %s9, 1
      %s164 = smul.u32 2, %s19
      %p165 = scmp.lt.s32.totalorder %s18, 1
      %s166 = scalar_select %p165, %s18, 1
      %p167 = scmp.lt.s32.totalorder %s164, 1
      %s168 = scalar_select %p167, %s164, 1
      %s169 = smul.addr %s166, 2
      %s170 = sadd.s32 %s168, %s169
      %s171 = smul.addr %s170, 2
      %s172 = scalar_lea.vmem %s0, %s171
      %p173 = pneg %p49
      %p174 = pneg %p46
      %p175 = pneg %p70
      %p176 = pneg %p67
      %p177 = pneg %p91
      %p178 = pneg %p88
      %p179 = pneg %p119
      %p180 = pneg %p116
      %s181 = smul.u32 2, %s19
      %p182 = scmp.lt.s32.totalorder %s18, 1
      %s183 = scalar_select %p182, %s18, 1
      %p184 = scmp.lt.s32.totalorder %s181, 1
      %s185 = scalar_select %p184, %s181, 1
      %s186 = smul.addr %s183, 2
      %s187 = sadd.s32 %s185, %s186
      %s188 = smul.addr %s187, 2
      %s189 = scalar_lea.vmem %s3, %s188
      %s190 = smul.u32 2, %s19
      %p191 = scmp.lt.s32.totalorder %s18, 1
      %s192 = scalar_select %p191, %s18, 1
      %p193 = scmp.lt.s32.totalorder %s190, 1
      %s194 = scalar_select %p193, %s190, 1
      %s195 = smul.addr %s192, 2
      %s196 = sadd.s32 %s194, %s195
      %s197 = smul.addr %s196, 2
      %s198 = scalar_lea.vmem %s0, %s197
      %s199 = smul.u32 2, %s19
      %s200 = smul.u32 2, %s19
      %p201 = scmp.lt.s32.totalorder %s18, 1
      %s202 = scalar_select %p201, %s18, 1
      %p203 = scmp.lt.s32.totalorder %s200, 1
      %s204 = scalar_select %p203, %s200, 1
      %s205 = smul.addr %s202, 2
      %s206 = sadd.s32 %s204, %s205
      %s207 = smul.addr %s206, 2
      %s208 = scalar_lea.vmem %s3, %s207
      %s209 = smul.u32 2, %s19
      %v210 = vld [vmem:[%s198] sm:$0xf]
      %v211 = vunpack.c.l.bf16 %v210
      %v212 = vld [vmem:[%s1] sm:$0xf]
      %214 = vset.pattern.permute.xlu0 0
      %215 = vperm.xlu0 %214, %v212
      %v216 = vpop.permute.xlu0 %215
      %v218 = vunpack.c.l.s4 839922192
      %v219 = vunpack.c.0.s8 %v218
      %v220 = vlaneseq
      %v221 = vshrl.u32 %v220, 7
      %v222 = vsub.s32 %v219, %v221
      %v223 = vrot.slane %v216, %v222
      %v225 = vmul.f32 %v211, %v223
      %v226 = vld [vmem:[%s2] sm:$0xf]
      %228 = vset.pattern.permute.xlu0 0
      %229 = vperm.xlu0 %228, %v226
      %v230 = vpop.permute.xlu0 %229
      %v232 = vunpack.c.l.s4 839922192
      %v233 = vunpack.c.0.s8 %v232
      %v234 = vlaneseq
      %v235 = vshrl.u32 %v234, 7
      %v236 = vsub.s32 %v233, %v235
      %v237 = vrot.slane %v230, %v236
      %v239 = vadd.f32 %v225, %v237
      %v240 = vmax.f32 %v239, 0.0
      %v242 = vcombine.high %v240, %v240
      %v244 = vpack.c.bf16 %v240, %v240
      %v245 = vpack.c.bf16 %v242, %v242
      %v248 = vcombine.low %v244, %v245
      %v250 = vunpack.c.l.s4 1983009808
      %v251 = vunpack.c.0.s8 %v250
      %v252 = vlaneseq
      %v253 = vshrl.u32 %v252, 7
      %v254 = vsub.s32 %v251, %v253
      %v255 = vrot.slane %v248, %v254
      %257 = vst [vmem:[%s208] sm:$0xf] %v255
      %s258 = smul.u32 2, %s19
      %p259 = scmp.lt.s32.totalorder %s18, 1
      %s260 = scalar_select %p259, %s18, 1
      %p261 = scmp.lt.s32.totalorder %s258, 1
      %s262 = scalar_select %p261, %s258, 1
      %s263 = smul.addr %s260, 2
      %s264 = sadd.s32 %s262, %s263
      %s265 = smul.addr %s264, 2
      %s266 = scalar_lea.vmem %s3, %s265
      // Predicated region
      $region33: #{spectral_transform.8} parent=31 // pred_check
        %p267 = pneg %p116
      $region34: #{spectral_transform.8} parent=31 // pred_check_branch
        %269 = sbr.rel (%p267) target = $region36
      $region35: #{spectral_transform.8} parent=31 // pred_region
        %s270 = smul.u32 2, %s19
      $region36: #{spectral_transform.8} parent=31 // pred_fallthru
        _
    $region32: #{spectral_transform.8} parent=5 // pred_fallthru
      _
    %p271 = scmp.le.s32.totalorder 2, %s9
    // Predicated region
    $region37: #{spectral_transform.8} parent=5 // pred_check
      %p272 = pneg %p271
    $region38: #{spectral_transform.8} parent=5 // pred_check_branch
      %274 = sbr.rel (%p272) target = $region40
    $region39: #{spectral_transform.8} parent=5 // pred_region
      %s275 = ssub.s32 %s9, 2
      // Predicated region
      $region41: #{spectral_transform.8} parent=39 // pred_check
        %p276 = pneg %p122
      $region42: #{spectral_transform.8} parent=39 // pred_check_branch
        %278 = sbr.rel (%p276) target = $region44
      $region43: #{spectral_transform.8} parent=39 // pred_region
        %s279 = smul.u32 2, %s21
        %p280 = scmp.lt.s32.totalorder %s20, 1
        %s281 = scalar_select %p280, %s20, 1
        %p282 = scmp.lt.s32.totalorder %s279, 1
        %s283 = scalar_select %p282, %s279, 1
        %s284 = smul.addr %s281, 2
        %s285 = sadd.s32 %s283, %s284
        %s286 = smul.addr %s285, 2
        %s287 = scalar_lea.vmem %s3, %s286
      $region44: #{spectral_transform.8} parent=39 // pred_fallthru
        _
    $region40: #{spectral_transform.8} parent=5 // pred_fallthru
      _
  $region6: #{spectral_transform.8} parent=0 // loop_footer
    %s13 = sadd.s32 1, %s9
  $region7: #{spectral_transform.8} parent=0 // loop_footer_branch
    %8 = sbr.rel target = $region3
  $region8: #{spectral_transform.8} parent=0 // loop_exit
    _

// kernel: spectral_transform.11
$region0: #{spectral_transform.11}
  #allocation0 [shape = 'u32[]', space=smem, size = 0x4, offset = 0x4, fixed_abs, tag = 'smem constant byte address 0x4 - core index']
  #allocation1 [shape = 'u32[144,128]{1,0:T(1,128)}', space=vmem, size = 0x12000, scoped, tag = 'internal scratch']
  %s0 = inlined_call_operand.vmem [shape: bf16[2,8,128], index: 0, kind: input, shape index: {}]
  %s1 = inlined_call_operand.vmem [shape: bf16[8,8], index: 1, kind: input, shape index: {}]
  %s2 = inlined_call_operand.vmem [shape: bf16[2,8,128], index: 2, kind: output, shape index: {0}]
  %s3 = inlined_call_operand.vmem [shape: f32[2,8,1], index: 3, kind: output, shape index: {1}]
  %s4 = inlined_call_operand.vmem [shape: f32[2,8,1], index: 4, kind: output, shape index: {2}]
  %5 = xla_tuple %s2, %s3, %s4
  %s6 = sld [smem:[#allocation0]]
  $region61: #{spectral_transform.11} parent=0
    _
  %s8 = ssub.s32 1, %s6
  %s9 = scalar_select 0, %s8, %s6
  loop: start=0, step=1, limit=4
  $region2: #{spectral_transform.11} parent=0 // loop_pre_header
    _
  $region3: #{spectral_transform.11} parent=0 // loop_header
    %s11 = sphi 0, %s15
    %p12 = scmp.ge.s32.totalorder %s11, 4
    %s18 = sphi 0, %s30
    %s19 = sphi 0, %s26
    %s20 = sphi 0, %s18
    %s21 = sphi 0, %s19
    %s22 = sphi 0, %s20
    %s23 = sphi 0, %s21
    %s35 = sphi 0, %s37
    %s38 = sphi 0, %s35
    %s39 = sphi 0, %s38
    %s55 = sphi 0, %s39
    %s59 = sphi 0, %s59
    %s61 = sphi 0, %s59
    %s62 = sphi 0, %s61
    %s76 = sphi 0, %s62
    %s84 = sphi 0, %s86
    %s87 = sphi 0, %s84
    %s88 = sphi 0, %s87
    %s104 = sphi 0, %s88
    %s110 = sphi 0, %s112
    %s113 = sphi 0, %s110
    %s114 = sphi 0, %s113
    %s130 = sphi 0, %s114
    %s136 = sphi 0, %s138
    %s139 = sphi 0, %s136
    %s140 = sphi 0, %s139
    %s156 = sphi 0, %s140
  $region4: #{spectral_transform.11} parent=0 // loop_header_branch
    %14 = sbr.rel (%p12) target = $region8
  $region5: #{spectral_transform.11} parent=0 // loop_body
    %s16 = ssub.s32 %s11, 1
    %s17 = ssub.s32 %s11, 2
    %s24 = sadd.s32 1, %s19
    %p25 = scmp.ge.s32.totalorder %s24, 1
    %s26 = scalar_select %p25, 0, %s24
    %s27 = sadd.s32 1, %s18
    %s28 = scalar_select %p25, %s27, %s18
    %p29 = scmp.ge.s32.totalorder %s28, 2
    %s30 = scalar_select %p29, 0, %s28
    %s31 = ssub.s32 %s18, %s30
    %s32 = ssub.s32 %s19, %s26
    %s33 = sor.u32 %s31, %s32
    %p34 = scmp.eq.s32.totalorder %s33, 0
    %s36 = sadd.s32 %s35, 1
    %s37 = scalar_select %p34, %s35, %s36
    %p40 = pneg %p34
    %p41 = scmp.eq.s32.totalorder %s11, 1
    %p42 = por %p40, %p41
    %p43 = scmp.ne.s32.totalorder %s35, %s38
    %p44 = scmp.eq.s32.totalorder %s11, 0
    %p45 = por %p43, %p44
    %p46 = scmp.ne.s32.totalorder %s35, %s38
    %p47 = scmp.eq.s32.totalorder %s16, 1
    %p48 = por %p46, %p47
    %p49 = scmp.ne.s32.totalorder %s38, %s39
    %p50 = scmp.eq.s32.totalorder %s16, 0
    %p51 = por %p49, %p50
    %p52 = scmp.ne.s32.totalorder %s38, %s39
    %p53 = scmp.eq.s32.totalorder %s17, 1
    %p54 = por %p52, %p53
    %p56 = scmp.ne.s32.totalorder %s39, %s55
    %p57 = scmp.eq.s32.totalorder %s17, 0
    %p58 = por %p56, %p57
    %s60 = sadd.s32 %s59, 1
    %p63 = scmp.eq.s32.totalorder %s11, 1
    %p64 = scmp.ne.s32.totalorder %s59, %s61
    %p65 = scmp.eq.s32.totalorder %s11, 0
    %p66 = por %p64, %p65
    %p67 = scmp.ne.s32.totalorder %s59, %s61
    %p68 = scmp.eq.s32.totalorder %s16, 1
    %p69 = por %p67, %p68
    %p70 = scmp.ne.s32.totalorder %s61, %s62
    %p71 = scmp.eq.s32.totalorder %s16, 0
    %p72 = por %p70, %p71
    %p73 = scmp.ne.s32.totalorder %s61, %s62
    %p74 = scmp.eq.s32.totalorder %s17, 1
    %p75 = por %p73, %p74
    %p77 = scmp.ne.s32.totalorder %s62, %s76
    %p78 = scmp.eq.s32.totalorder %s17, 0
    %p79 = por %p77, %p78
    %s80 = ssub.s32 %s18, %s30
    %s81 = ssub.s32 %s19, %s26
    %s82 = sor.u32 %s80, %s81
    %p83 = scmp.eq.s32.totalorder %s82, 0
    %s85 = sadd.s32 %s84, 1
    %s86 = scalar_select %p83, %s84, %s85
    %p89 = pneg %p83
    %p90 = scmp.eq.s32.totalorder %s11, 1
    %p91 = por %p89, %p90
    %p92 = scmp.ne.s32.totalorder %s84, %s87
    %p93 = scmp.eq.s32.totalorder %s11, 0
    %p94 = por %p92, %p93
    %p95 = scmp.ne.s32.totalorder %s84, %s87
    %p96 = scmp.eq.s32.totalorder %s16, 1
    %p97 = por %p95, %p96
    %p98 = scmp.ne.s32.totalorder %s87, %s88
    %p99 = scmp.eq.s32.totalorder %s16, 0
    %p100 = por %p98, %p99
    %p101 = scmp.ne.s32.totalorder %s87, %s88
    %p102 = scmp.eq.s32.totalorder %s17, 1
    %p103 = por %p101, %p102
    %p105 = scmp.ne.s32.totalorder %s88, %s104
    %p106 = scmp.eq.s32.totalorder %s17, 0
    %p107 = por %p105, %p106
    %s108 = ssub.s32 %s18, %s30
    %p109 = scmp.eq.s32.totalorder %s108, 0
    %s111 = sadd.s32 %s110, 1
    %s112 = scalar_select %p109, %s110, %s111
    %p115 = pneg %p109
    %p116 = scmp.eq.s32.totalorder %s11, 1
    %p117 = por %p115, %p116
    %p118 = scmp.ne.s32.totalorder %s110, %s113
    %p119 = scmp.eq.s32.totalorder %s11, 0
    %p120 = por %p118, %p119
    %p121 = scmp.ne.s32.totalorder %s110, %s113
    %p122 = scmp.eq.s32.totalorder %s16, 1
    %p123 = por %p121, %p122
    %p124 = scmp.ne.s32.totalorder %s113, %s114
    %p125 = scmp.eq.s32.totalorder %s16, 0
    %p126 = por %p124, %p125
    %p127 = scmp.ne.s32.totalorder %s113, %s114
    %p128 = scmp.eq.s32.totalorder %s17, 1
    %p129 = por %p127, %p128
    %p131 = scmp.ne.s32.totalorder %s114, %s130
    %p132 = scmp.eq.s32.totalorder %s17, 0
    %p133 = por %p131, %p132
    %s134 = ssub.s32 %s18, %s30
    %p135 = scmp.eq.s32.totalorder %s134, 0
    %s137 = sadd.s32 %s136, 1
    %s138 = scalar_select %p135, %s136, %s137
    %p141 = pneg %p135
    %p142 = scmp.eq.s32.totalorder %s11, 1
    %p143 = por %p141, %p142
    %p144 = scmp.ne.s32.totalorder %s136, %s139
    %p145 = scmp.eq.s32.totalorder %s11, 0
    %p146 = por %p144, %p145
    %p147 = scmp.ne.s32.totalorder %s136, %s139
    %p148 = scmp.eq.s32.totalorder %s16, 1
    %p149 = por %p147, %p148
    %p150 = scmp.ne.s32.totalorder %s139, %s140
    %p151 = scmp.eq.s32.totalorder %s16, 0
    %p152 = por %p150, %p151
    %p153 = scmp.ne.s32.totalorder %s139, %s140
    %p154 = scmp.eq.s32.totalorder %s17, 1
    %p155 = por %p153, %p154
    %p157 = scmp.ne.s32.totalorder %s140, %s156
    %p158 = scmp.eq.s32.totalorder %s17, 0
    %p159 = por %p157, %p158
    %p160 = scmp.le.s32.totalorder 1, %s11
    %p161 = scmp.lt.s32.totalorder %s11, 3
    %p162 = pnand %p160, %p161
    %p163 = pneg %p162
    // Predicated region
    $region9: #{spectral_transform.11} parent=5 // pred_check
      _
    $region10: #{spectral_transform.11} parent=5 // pred_check_branch
      %165 = sbr.rel (%p162) target = $region12
    $region11: #{spectral_transform.11} parent=5 // pred_region
      %s166 = ssub.s32 %s11, 1
      // Predicated region
      $region13: #{spectral_transform.11} parent=11 // pred_check
        %p167 = pneg %p72
      $region14: #{spectral_transform.11} parent=11 // pred_check_branch
        %169 = sbr.rel (%p167) target = $region16
      $region15: #{spectral_transform.11} parent=11 // pred_region
        _
      $region16: #{spectral_transform.11} parent=11 // pred_fallthru
        _
    $region12: #{spectral_transform.11} parent=5 // pred_fallthru
      _
    %p170 = scmp.lt.s32.totalorder %s11, 2
    // Predicated region
    $region17: #{spectral_transform.11} parent=5 // pred_check
      %p171 = pneg %p170
    $region18: #{spectral_transform.11} parent=5 // pred_check_branch
      %173 = sbr.rel (%p171) target = $region20
    $region19: #{spectral_transform.11} parent=5 // pred_region
      // Predicated region
      $region21: #{spectral_transform.11} parent=19 // pred_check
        %p174 = pneg %p45
      $region22: #{spectral_transform.11} parent=19 // pred_check_branch
        %176 = sbr.rel (%p174) target = $region24
      $region23: #{spectral_transform.11} parent=19 // pred_region
        %p177 = scmp.lt.s32.totalorder %s18, 1
        %s178 = scalar_select %p177, %s18, 1
        %p179 = scmp.lt.s32.totalorder %s19, 0
        %s180 = scalar_select %p179, %s19, 0
        %s181 = sadd.s32 %s180, %s178
        %s182 = smul.addr %s181, 4
        %s183 = scalar_lea.vmem %s0, %s182
      $region24: #{spectral_transform.11} parent=19 // pred_fallthru
        _
    $region20: #{spectral_transform.11} parent=5 // pred_fallthru
      _
    %p184 = scmp.le.s32.totalorder 1, %s11
    %p185 = scmp.lt.s32.totalorder %s11, 3
    %p186 = pnand %p184, %p185
    %p187 = pneg %p186
    // Predicated region
    $region25: #{spectral_transform.11} parent=5 // pred_check
      _
    $region26: #{spectral_transform.11} parent=5 // pred_check_branch
      %189 = sbr.rel (%p186) target = $region28
    $region27: #{spectral_transform.11} parent=5 // pred_region
      %s190 = ssub.s32 %s11, 1
      %p191 = scmp.lt.s32.totalorder %s20, 1
      %s192 = scalar_select %p191, %s20, 1
      %p193 = scmp.lt.s32.totalorder %s21, 0
      %s194 = scalar_select %p193, %s21, 0
      %s195 = sadd.s32 %s194, %s192
      %s196 = smul.addr %s195, 4
      %s197 = scalar_lea.vmem %s0, %s196
      %p198 = pneg %p51
      %p199 = pneg %p48
      %p200 = pneg %p72
      %p201 = pneg %p69
      %p202 = pneg %p100
      %p203 = pneg %p97
      %p204 = scmp.lt.s32.totalorder %s20, 1
      %s205 = scalar_select %p204, %s20, 1
      %p206 = scmp.lt.s32.totalorder %s21, 0
      %s207 = scalar_select %p206, %s21, 0
      %s208 = sadd.s32 %s207, %s205
      %s209 = smul.addr %s208, 4
      %s210 = scalar_lea.vmem %s2, %s209
      %p211 = pneg %p126
      %p212 = pneg %p123
      %p213 = scmp.lt.s32.totalorder %s20, 1
      %s214 = scalar_select %p213, %s20, 1
      %s215 = smul.addr %s214, 8
      %s216 = scalar_lea.vmem %s3, %s215
      %p217 = pneg %p152
      %p218 = pneg %p149
      %p219 = scmp.lt.s32.totalorder %s20, 1
      %s220 = scalar_select %p219, %s20, 1
      %s221 = smul.addr %s220, 8
      %s222 = scalar_lea.vmem %s4, %s221
      %p223 = scmp.lt.s32.totalorder %s20, 1
      %s224 = scalar_select %p223, %s20, 1
      %p225 = scmp.lt.s32.totalorder %s21, 0
      %s226 = scalar_select %p225, %s21, 0
      %s227 = sadd.s32 %s226, %s224
      %s228 = smul.addr %s227, 4
      %s229 = scalar_lea.vmem %s0, %s228
      %p230 = scmp.lt.s32.totalorder %s20, 1
      %s231 = scalar_select %p230, %s20, 1
      %p232 = scmp.lt.s32.totalorder %s21, 0
      %s233 = scalar_select %p232, %s21, 0
      %s234 = sadd.s32 %s233, %s231
      %s235 = smul.addr %s234, 4
      %s236 = scalar_lea.vmem %s2, %s235
      %p237 = scmp.lt.s32.totalorder %s20, 1
      %s238 = scalar_select %p237, %s20, 1
      %s239 = smul.addr %s238, 8
      %s240 = scalar_lea.vmem %s3, %s239
      %p241 = scmp.lt.s32.totalorder %s20, 1
      %s242 = scalar_select %p241, %s20, 1
      %s243 = smul.addr %s242, 8
      %s244 = scalar_lea.vmem %s4, %s243
      %v246 = vld [vmem:[%s1] sm:$0xf]
      %v247 = vld [vmem:[%s229] sm:$0xf]
      %vm248 = vcmask 64512
      %v250 = vsel %vm248, %v246, 0
      %vm252 = vcmask 1043456
      %v254 = vsel %vm252, %v247, 0
      %256 = vmatprep.subr.bf16.mxu0 0
      %257 = vmatpush1.bf16.msra.mxu0 %v254
      %258 = vmatprep.subr.bf16.mxu0 0
      %259 = vmatpush1.bf16.msra.mxu0 0
      %260 = vmatprep.subr.bf16.mxu0 0
      %261 = vmatpush1.bf16.msra.mxu0 0
      %262 = vmatprep.subr.bf16.mxu0 0
      %263 = vmatpush1.bf16.msra.mxu0 0
      %264 = vmatprep.subr.bf16.mxu0 0
      %265 = vmatpush1.bf16.msra.mxu0 0
      %266 = vmatprep.subr.bf16.mxu0 0
      %267 = vmatpush1.bf16.msra.mxu0 0
      %268 = vmatprep.subr.bf16.mxu0 0
      %269 = vmatpush1.bf16.msra.mxu0 0
      %270 = vmatprep.subr.bf16.mxu0 0
      %271 = vmatpush1.bf16.msra.mxu0 0
      %272 = vmatprep.subr.bf16.mxu0 0
      %273 = vmatpush1.bf16.msra.mxu0 0
      %274 = vmatprep.subr.bf16.mxu0 0
      %275 = vmatpush1.bf16.msra.mxu0 0
      %276 = vmatprep.subr.bf16.mxu0 0
      %277 = vmatpush1.bf16.msra.mxu0 0
      %278 = vmatprep.subr.bf16.mxu0 0
      %279 = vmatpush1.bf16.msra.mxu0 0
      %280 = vmatprep.subr.bf16.mxu0 0
      %281 = vmatpush1.bf16.msra.mxu0 0
      %282 = vmatprep.subr.bf16.mxu0 0
      %283 = vmatpush1.bf16.msra.mxu0 0
      %284 = vmatprep.subr.bf16.mxu0 0
      %285 = vmatpush1.bf16.msra.mxu0 0
      %286 = vmatprep.subr.bf16.mxu0 0
      %287 = vmatpush1.bf16.msra.mxu0 0
      %288 = vmatprep.mubr.bf16.mxu0 0
      %289 = vmatmul.mubr.bf16.gmra.mrb[0].mxu0 %v250
      %v290 = vpop.f32.mrb[0].mxu0
      %v291 = vadd.f32 0.0, %v290
      %v292 = vpop.f32.mrb[0].mxu0
      %v293 = vpop.f32.mrb[0].mxu0
      %v294 = vpop.f32.mrb[0].mxu0
      %295 = vdwg.mxu0
      %v296 = vpack.c.bf16 %v291, %v291
      %297 = vst [vmem:[%s236] sm:$0xf] %v296
      %p298 = scmp.eq.s32.totalorder %s21, 0
      // Predicated region
      $region29: #{spectral_transform.11} parent=27 // pred_check
        %p299 = pneg %p298
      $region30: #{spectral_transform.11} parent=27 // pred_check_branch
        %301 = sbr.rel (%p299) target = $region32
      $region31: #{spectral_transform.11} parent=27 // pred_region
        %vm302 = vcmask 7168
        %303 = vst.msk [vmem:[%s240] sm:$0xff] %vm302, 0.0
        %304 = vst.msk [vmem:[%s244] sm:$0xff] %vm302, 0.0
      $region32: #{spectral_transform.11} parent=27 // pred_fallthru
        _
      %v305 = vld [vmem:[%s240] sm:$0xff]
      %306 = vadd.xlane.f32.xlu0 %v291
      %v307 = vpop.xlane.xlu0 %306
      %v308 = vadd.f32 %v305, %v307
      %vm309 = vcmask 7168
      %310 = vst.msk [vmem:[%s240] sm:$0xff] %vm309, %v308
      %v311 = vld [vmem:[%s244] sm:$0xff]
      %v312 = vmul.f32 %v291, %v291
      %313 = vadd.xlane.f32.xlu0 %v312
      %v314 = vpop.xlane.xlu0 %313
      %v315 = vadd.f32 %v311, %v314
      %316 = vst.msk [vmem:[%s244] sm:$0xff] %vm309, %v315
      %p317 = scmp.lt.s32.totalorder %s20, 1
      %s318 = scalar_select %p317, %s20, 1
      %p319 = scmp.lt.s32.totalorder %s21, 0
      %s320 = scalar_select %p319, %s21, 0
      %s321 = sadd.s32 %s320, %s318
      %s322 = smul.addr %s321, 4
      %s323 = scalar_lea.vmem %s2, %s322
      %p324 = scmp.lt.s32.totalorder %s20, 1
      %s325 = scalar_select %p324, %s20, 1
      %s326 = smul.addr %s325, 8
      %s327 = scalar_lea.vmem %s3, %s326
      %p328 = scmp.lt.s32.totalorder %s20, 1
      %s329 = scalar_select %p328, %s20, 1
      %s330 = smul.addr %s329, 8
      %s331 = scalar_lea.vmem %s4, %s330
      // Predicated region
      $region33: #{spectral_transform.11} parent=27 // pred_check
        %p332 = pneg %p97
      $region34: #{spectral_transform.11} parent=27 // pred_check_branch
        %334 = sbr.rel (%p332) target = $region36
      $region35: #{spectral_transform.11} parent=27 // pred_region
        _
      $region36: #{spectral_transform.11} parent=27 // pred_fallthru
        _
      // Predicated region
      $region37: #{spectral_transform.11} parent=27 // pred_check
        %p335 = pneg %p123
      $region38: #{spectral_transform.11} parent=27 // pred_check_branch
        %337 = sbr.rel (%p335) target = $region40
      $region39: #{spectral_transform.11} parent=27 // pred_region
        _
      $region40: #{spectral_transform.11} parent=27 // pred_fallthru
        _
      // Predicated region
      $region41: #{spectral_transform.11} parent=27 // pred_check
        %p338 = pneg %p149
      $region42: #{spectral_transform.11} parent=27 // pred_check_branch
        %340 = sbr.rel (%p338) target = $region44
      $region43: #{spectral_transform.11} parent=27 // pred_region
        _
      $region44: #{spectral_transform.11} parent=27 // pred_fallthru
        _
    $region28: #{spectral_transform.11} parent=5 // pred_fallthru
      _
    %p341 = scmp.le.s32.totalorder 2, %s11
    // Predicated region
    $region45: #{spectral_transform.11} parent=5 // pred_check
      %p342 = pneg %p341
    $region46: #{spectral_transform.11} parent=5 // pred_check_branch
      %344 = sbr.rel (%p342) target = $region48
    $region47: #{spectral_transform.11} parent=5 // pred_region
      %s345 = ssub.s32 %s11, 2
      // Predicated region
      $region49: #{spectral_transform.11} parent=47 // pred_check
        %p346 = pneg %p103
      $region50: #{spectral_transform.11} parent=47 // pred_check_branch
        %348 = sbr.rel (%p346) target = $region52
      $region51: #{spectral_transform.11} parent=47 // pred_region
        %p349 = scmp.lt.s32.totalorder %s22, 1
        %s350 = scalar_select %p349, %s22, 1
        %p351 = scmp.lt.s32.totalorder %s23, 0
        %s352 = scalar_select %p351, %s23, 0
        %s353 = sadd.s32 %s352, %s350
        %s354 = smul.addr %s353, 4
        %s355 = scalar_lea.vmem %s2, %s354
      $region52: #{spectral_transform.11} parent=47 // pred_fallthru
        _
      // Predicated region
      $region53: #{spectral_transform.11} parent=47 // pred_check
        %p356 = pneg %p129
      $region54: #{spectral_transform.11} parent=47 // pred_check_branch
        %358 = sbr.rel (%p356) target = $region56
      $region55: #{spectral_transform.11} parent=47 // pred_region
        %p359 = scmp.lt.s32.totalorder %s22, 1
        %s360 = scalar_select %p359, %s22, 1
        %s361 = smul.addr %s360, 8
        %s362 = scalar_lea.vmem %s3, %s361
      $region56: #{spectral_transform.11} parent=47 // pred_fallthru
        _
      // Predicated region
      $region57: #{spectral_transform.11} parent=47 // pred_check
        %p363 = pneg %p155
      $region58: #{spectral_transform.11} parent=47 // pred_check_branch
        %365 = sbr.rel (%p363) target = $region60
      $region59: #{spectral_transform.11} parent=47 // pred_region
        %p366 = scmp.lt.s32.totalorder %s22, 1
        %s367 = scalar_select %p366, %s22, 1
        %s368 = smul.addr %s367, 8
        %s369 = scalar_lea.vmem %s4, %s368
      $region60: #{spectral_transform.11} parent=47 // pred_fallthru
        _
    $region48: #{spectral_transform.11} parent=5 // pred_fallthru
      _
  $region6: #{spectral_transform.11} parent=0 // loop_footer
    %s15 = sadd.s32 1, %s11
  $region7: #{spectral_transform.11} parent=0 // loop_footer_branch
    %10 = sbr.rel target = $region3
  $region8: #{spectral_transform.11} parent=0 // loop_exit
    _

// kernel: reverse.1
$region0: #{reverse.1}
  %s0 = inlined_call_operand.vmem [shape: f32[2,4,8,3], index: 0, kind: input, shape index: {}]
  %s1 = inlined_call_operand.vmem [shape: f32[2,4,8,3], index: 1, kind: output, shape index: {}]
  $region1: #{reverse.1} parent=0
    #allocation0 [shape = 'u8[65536]{0}', space=vmem, size = 0x10000, scoped, tag = 'operand span for operand 0']
    #allocation1 [shape = 'u8[32768]{0}', space=vmem, size = 0x8000, scoped, tag = 'packed  for operand 0']
    #allocation2 [shape = 'u8[32768]{0}', space=vmem, size = 0x8000, scoped, tag = 'operand span for operand 1']
    #allocation3 [shape = 'u8[16384]{0}', space=vmem, size = 0x4000, scoped, tag = 'packed  for operand 1']
    %s2 = scalar_lea.vmem [#allocation1], 4
    // Predicated region
    $region2: #{reverse.1} parent=1 // pred_check
      _
    $region3: #{reverse.1} parent=1 // pred_check_branch
      %4 = sbr.rel (0) target = $region5
    $region4: #{reverse.1} parent=1 // pred_region
      // Predicated region
      $region6: #{reverse.1} parent=4 // pred_check
        _
      $region7: #{reverse.1} parent=4 // pred_check_branch
        %6 = sbr.rel target = $region9
      $region8: #{reverse.1} parent=4 // pred_region
        // Predicated region
        $region21: #{reverse.1} parent=8 // pred_check
          _
        $region22: #{reverse.1} parent=8 // pred_check_branch
          %35 = sbr.rel (0) target = $region24
        $region23: #{reverse.1} parent=8 // pred_region
          loop: start=0, step=1, limit=1
          $region25: #{reverse.1} parent=23 // loop_pre_header
            _
          $region26: #{reverse.1} parent=23 // loop_header
            %s37 = sphi 0, %s41
            %p38 = scmp.ge.s32.totalorder %s37, 1
            %s42 = sphi %s0, %s0
            %s43 = sphi %s2, %s2
          $region27: #{reverse.1} parent=23 // loop_header_branch
            %40 = sbr.rel (%p38) target = $region31
          $region28: #{reverse.1} parent=23 // loop_body
            _
          $region29: #{reverse.1} parent=23 // loop_footer
            %s41 = sadd.s32 1, %s37
          $region30: #{reverse.1} parent=23 // loop_footer_branch
            %36 = sbr.rel target = $region26
          $region31: #{reverse.1} parent=23 // loop_exit
            _
          loop: start=0, step=1, limit=1
          $region32: #{reverse.1} parent=23 // loop_pre_header
            _
          $region33: #{reverse.1} parent=23 // loop_header
            %s46 = sphi 0, %s50
            %p47 = scmp.ge.s32.totalorder %s46, 1
            %s51 = sphi %s0, %s0
            %s52 = sphi %s2, %s2
          $region34: #{reverse.1} parent=23 // loop_header_branch
            %49 = sbr.rel (%p47) target = $region38
          $region35: #{reverse.1} parent=23 // loop_body
            %v53 = vld [vmem:[%s51] sm:$0xf]
            %54 = vst [vmem:[%s52] sm:$0xf] %v53
            %v55 = vld [vmem:[%s51 + $0x4] sm:$0xf]
            %56 = vst [vmem:[%s52 + $0x8] sm:$0xf] %v55
            %v57 = vld [vmem:[%s51 + $0x8] sm:$0xf]
            %58 = vst [vmem:[%s52 + $0x10] sm:$0xf] %v57
            %v59 = vld [vmem:[%s51 + $0xc] sm:$0xf]
            %60 = vst [vmem:[%s52 + $0x18] sm:$0xf] %v59
            %v61 = vld [vmem:[%s51 + $0x10] sm:$0xf]
            %62 = vst [vmem:[%s52 + $0x20] sm:$0xf] %v61
            %v63 = vld [vmem:[%s51 + $0x14] sm:$0xf]
            %64 = vst [vmem:[%s52 + $0x28] sm:$0xf] %v63
            %v65 = vld [vmem:[%s51 + $0x18] sm:$0xf]
            %66 = vst [vmem:[%s52 + $0x30] sm:$0xf] %v65
            %v67 = vld [vmem:[%s51 + $0x1c] sm:$0xf]
            %68 = vst [vmem:[%s52 + $0x38] sm:$0xf] %v67
          $region36: #{reverse.1} parent=23 // loop_footer
            %s50 = sadd.s32 1, %s46
          $region37: #{reverse.1} parent=23 // loop_footer_branch
            %45 = sbr.rel target = $region33
          $region38: #{reverse.1} parent=23 // loop_exit
            _
        $region24: #{reverse.1} parent=8 // pred_fallthru
          _
      $region9: #{reverse.1} parent=4 // pred_fallthru
        _
      // Predicated region
      $region10: #{reverse.1} parent=4 // pred_check
        _
      $region11: #{reverse.1} parent=4 // pred_check_branch
        %8 = sbr.rel (0) target = $region13
      $region12: #{reverse.1} parent=4 // pred_region
        loop: start=0, step=1, limit=1
        $region14: #{reverse.1} parent=12 // loop_pre_header
          _
        $region15: #{reverse.1} parent=12 // loop_header
          %s11 = sphi 0, %s15
          %p12 = scmp.ge.s32.totalorder %s11, 1
          %s16 = sphi %s0, %s0
          %s17 = sphi %s2, %s2
        $region16: #{reverse.1} parent=12 // loop_header_branch
          %14 = sbr.rel (%p12) target = $region20
        $region17: #{reverse.1} parent=12 // loop_body
          %v18 = vld [vmem:[%s16] sm:$0xf]
          %19 = vst [vmem:[%s17] sm:$0xf] %v18
          %v20 = vld [vmem:[%s16 + $0x4] sm:$0xf]
          %21 = vst [vmem:[%s17 + $0x8] sm:$0xf] %v20
          %v22 = vld [vmem:[%s16 + $0x8] sm:$0xf]
          %23 = vst [vmem:[%s17 + $0x10] sm:$0xf] %v22
          %v24 = vld [vmem:[%s16 + $0xc] sm:$0xf]
          %25 = vst [vmem:[%s17 + $0x18] sm:$0xf] %v24
          %v26 = vld [vmem:[%s16 + $0x10] sm:$0xf]
          %27 = vst [vmem:[%s17 + $0x20] sm:$0xf] %v26
          %v28 = vld [vmem:[%s16 + $0x14] sm:$0xf]
          %29 = vst [vmem:[%s17 + $0x28] sm:$0xf] %v28
          %v30 = vld [vmem:[%s16 + $0x18] sm:$0xf]
          %31 = vst [vmem:[%s17 + $0x30] sm:$0xf] %v30
          %v32 = vld [vmem:[%s16 + $0x1c] sm:$0xf]
          %33 = vst [vmem:[%s17 + $0x38] sm:$0xf] %v32
        $region18: #{reverse.1} parent=12 // loop_footer
          %s15 = sadd.s32 1, %s11
        $region19: #{reverse.1} parent=12 // loop_footer_branch
          %10 = sbr.rel target = $region15
        $region20: #{reverse.1} parent=12 // loop_exit
          _
      $region13: #{reverse.1} parent=4 // pred_fallthru
        _
    $region5: #{reverse.1} parent=1 // pred_fallthru
      _
    %69 = vnop
    %s71 = sshllo.u32 0, 4
    %s72 = smul.addr 4, 15
    %s73 = scalar_lea.vmem [#allocation1], %s72
    %v74 = vld [vmem:[%s73] sm:%s71]
    %s75 = scalar_lea.vmem [#allocation0], 120
    %76 = vst [vmem:[%s75] sm:%s71] %v74
    %s77 = smul.addr 4, 14
    %s78 = scalar_lea.vmem [#allocation1], %s77
    %v79 = vld [vmem:[%s78] sm:%s71]
    %s80 = scalar_lea.vmem [#allocation0], 112
    %81 = vst [vmem:[%s80] sm:%s71] %v79
    %s82 = smul.addr 4, 13
    %s83 = scalar_lea.vmem [#allocation1], %s82
    %v84 = vld [vmem:[%s83] sm:%s71]
    %s85 = scalar_lea.vmem [#allocation0], 104
    %86 = vst [vmem:[%s85] sm:%s71] %v84
    %s87 = smul.addr 4, 12
    %s88 = scalar_lea.vmem [#allocation1], %s87
    %v89 = vld [vmem:[%s88] sm:%s71]
    %s90 = scalar_lea.vmem [#allocation0], 96
    %91 = vst [vmem:[%s90] sm:%s71] %v89
    %s92 = smul.addr 4, 11
    %s93 = scalar_lea.vmem [#allocation1], %s92
    %v94 = vld [vmem:[%s93] sm:%s71]
    %s95 = scalar_lea.vmem [#allocation0], 88
    %96 = vst [vmem:[%s95] sm:%s71] %v94
    %s97 = smul.addr 4, 10
    %s98 = scalar_lea.vmem [#allocation1], %s97
    %v99 = vld [vmem:[%s98] sm:%s71]
    %s100 = scalar_lea.vmem [#allocation0], 80
    %101 = vst [vmem:[%s100] sm:%s71] %v99
    %s102 = smul.addr 4, 9
    %s103 = scalar_lea.vmem [#allocation1], %s102
    %v104 = vld [vmem:[%s103] sm:%s71]
    %s105 = scalar_lea.vmem [#allocation0], 72
    %106 = vst [vmem:[%s105] sm:%s71] %v104
    %s107 = smul.addr 4, 8
    %s108 = scalar_lea.vmem [#allocation1], %s107
    %v109 = vld [vmem:[%s108] sm:%s71]
    %s110 = scalar_lea.vmem [#allocation0], 64
    %111 = vst [vmem:[%s110] sm:%s71] %v109
    %s112 = smul.addr 4, 7
    %s113 = scalar_lea.vmem [#allocation1], %s112
    %v114 = vld [vmem:[%s113] sm:%s71]
    %s115 = scalar_lea.vmem [#allocation0], 56
    %116 = vst [vmem:[%s115] sm:%s71] %v114
    %s117 = smul.addr 4, 6
    %s118 = scalar_lea.vmem [#allocation1], %s117
    %v119 = vld [vmem:[%s118] sm:%s71]
    %s120 = scalar_lea.vmem [#allocation0], 48
    %121 = vst [vmem:[%s120] sm:%s71] %v119
    %s122 = smul.addr 4, 5
    %s123 = scalar_lea.vmem [#allocation1], %s122
    %v124 = vld [vmem:[%s123] sm:%s71]
    %s125 = scalar_lea.vmem [#allocation0], 40
    %126 = vst [vmem:[%s125] sm:%s71] %v124
    %s127 = smul.addr 4, 4
    %s128 = scalar_lea.vmem [#allocation1], %s127
    %v129 = vld [vmem:[%s128] sm:%s71]
    %s130 = scalar_lea.vmem [#allocation0], 32
    %131 = vst [vmem:[%s130] sm:%s71] %v129
    %s132 = smul.addr 4, 3
    %s133 = scalar_lea.vmem [#allocation1], %s132
    %v134 = vld [vmem:[%s133] sm:%s71]
    %s135 = scalar_lea.vmem [#allocation0], 24
    %136 = vst [vmem:[%s135] sm:%s71] %v134
    %s137 = smul.addr 4, 2
    %s138 = scalar_lea.vmem [#allocation1], %s137
    %v139 = vld [vmem:[%s138] sm:%s71]
    %s140 = scalar_lea.vmem [#allocation0], 16
    %141 = vst [vmem:[%s140] sm:%s71] %v139
    %s142 = scalar_lea.vmem [#allocation1], 4
    %v143 = vld [vmem:[%s142] sm:%s71]
    %s144 = scalar_lea.vmem [#allocation0], 8
    %145 = vst [vmem:[%s144] sm:%s71] %v143
    %v146 = vld [vmem:[#allocation1] sm:%s71]
    %147 = vst [vmem:[#allocation0] sm:%s71] %v146
    %s148 = scalar_lea.vmem [#allocation0], 7
    %v149 = vld [vmem:[%s148] ss:$-1 sm:$0xff]
    %v150 = vrot.slane %v149, 5
    %151 = vst [vmem:[#allocation2] sm:$0xff] %v150
    %s152 = scalar_lea.vmem [#allocation0], 8
    %s153 = scalar_lea.vmem %s152, 7 [#allocation0]
    %v154 = vld [vmem:[%s153] ss:$-1 sm:$0xff]
    %v155 = vrot.slane %v154, 5
    %v156 = vlaneseq
    %v157 = vshrl.u32 %v156, 7
    %vm158 = vcmp.lt.s32.totalorder %v157, 3
    %159 = vst.msk [vmem:[#allocation2] sm:$0xff] %vm158, %v155
    %s160 = scalar_lea.vmem [#allocation2], 8
    %s161 = scalar_lea.vmem [#allocation0], 16
    %s162 = scalar_lea.vmem %s161, 7 [#allocation0]
    %v163 = vld [vmem:[%s162] ss:$-1 sm:$0xff]
    %v164 = vrot.slane %v163, 5
    %165 = vst [vmem:[%s160] sm:$0xff] %v164
    %s166 = scalar_lea.vmem %s161, 8 [#allocation0]
    %s167 = scalar_lea.vmem %s166, 7 [#allocation0]
    %v168 = vld [vmem:[%s167] ss:$-1 sm:$0xff]
    %v169 = vrot.slane %v168, 5
    %v170 = vlaneseq
    %v171 = vshrl.u32 %v170, 7
    %vm172 = vcmp.lt.s32.totalorder %v171, 3
    %173 = vst.msk [vmem:[%s160] sm:$0xff] %vm172, %v169
    %s174 = scalar_lea.vmem [#allocation2], 16
    %s175 = scalar_lea.vmem [#allocation0], 32
    %s176 = scalar_lea.vmem %s175, 7 [#allocation0]
    %v177 = vld [vmem:[%s176] ss:$-1 sm:$0xff]
    %v178 = vrot.slane %v177, 5
    %179 = vst [vmem:[%s174] sm:$0xff] %v178
    %s180 = scalar_lea.vmem %s175, 8 [#allocation0]
    %s181 = scalar_lea.vmem %s180, 7 [#allocation0]
    %v182 = vld [vmem:[%s181] ss:$-1 sm:$0xff]
    %v183 = vrot.slane %v182, 5
    %v184 = vlaneseq
    %v185 = vshrl.u32 %v184, 7
    %vm186 = vcmp.lt.s32.totalorder %v185, 3
    %187 = vst.msk [vmem:[%s174] sm:$0xff] %vm186, %v183
    %s188 = scalar_lea.vmem [#allocation2], 24
    %s189 = scalar_lea.vmem [#allocation0], 48
    %s190 = scalar_lea.vmem %s189, 7 [#allocation0]
    %v191 = vld [vmem:[%s190] ss:$-1 sm:$0xff]
    %v192 = vrot.slane %v191, 5
    %193 = vst [vmem:[%s188] sm:$0xff] %v192
    %s194 = scalar_lea.vmem %s189, 8 [#allocation0]
    %s195 = scalar_lea.vmem %s194, 7 [#allocation0]
    %v196 = vld [vmem:[%s195] ss:$-1 sm:$0xff]
    %v197 = vrot.slane %v196, 5
    %v198 = vlaneseq
    %v199 = vshrl.u32 %v198, 7
    %vm200 = vcmp.lt.s32.totalorder %v199, 3
    %201 = vst.msk [vmem:[%s188] sm:$0xff] %vm200, %v197
    %s202 = scalar_lea.vmem [#allocation2], 32
    %s203 = scalar_lea.vmem [#allocation0], 64
    %s204 = scalar_lea.vmem %s203, 7 [#allocation0]
    %v205 = vld [vmem:[%s204] ss:$-1 sm:$0xff]
    %v206 = vrot.slane %v205, 5
    %207 = vst [vmem:[%s202] sm:$0xff] %v206
    %s208 = scalar_lea.vmem %s203, 8 [#allocation0]
    %s209 = scalar_lea.vmem %s208, 7 [#allocation0]
    %v210 = vld [vmem:[%s209] ss:$-1 sm:$0xff]
    %v211 = vrot.slane %v210, 5
    %v212 = vlaneseq
    %v213 = vshrl.u32 %v212, 7
    %vm214 = vcmp.lt.s32.totalorder %v213, 3
    %215 = vst.msk [vmem:[%s202] sm:$0xff] %vm214, %v211
    %s216 = scalar_lea.vmem [#allocation2], 40
    %s217 = scalar_lea.vmem [#allocation0], 80
    %s218 = scalar_lea.vmem %s217, 7 [#allocation0]
    %v219 = vld [vmem:[%s218] ss:$-1 sm:$0xff]
    %v220 = vrot.slane %v219, 5
    %221 = vst [vmem:[%s216] sm:$0xff] %v220
    %s222 = scalar_lea.vmem %s217, 8 [#allocation0]
    %s223 = scalar_lea.vmem %s222, 7 [#allocation0]
    %v224 = vld [vmem:[%s223] ss:$-1 sm:$0xff]
    %v225 = vrot.slane %v224, 5
    %v226 = vlaneseq
    %v227 = vshrl.u32 %v226, 7
    %vm228 = vcmp.lt.s32.totalorder %v227, 3
    %229 = vst.msk [vmem:[%s216] sm:$0xff] %vm228, %v225
    %s230 = scalar_lea.vmem [#allocation2], 48
    %s231 = scalar_lea.vmem [#allocation0], 96
    %s232 = scalar_lea.vmem %s231, 7 [#allocation0]
    %v233 = vld [vmem:[%s232] ss:$-1 sm:$0xff]
    %v234 = vrot.slane %v233, 5
    %235 = vst [vmem:[%s230] sm:$0xff] %v234
    %s236 = scalar_lea.vmem %s231, 8 [#allocation0]
    %s237 = scalar_lea.vmem %s236, 7 [#allocation0]
    %v238 = vld [vmem:[%s237] ss:$-1 sm:$0xff]
    %v239 = vrot.slane %v238, 5
    %v240 = vlaneseq
    %v241 = vshrl.u32 %v240, 7
    %vm242 = vcmp.lt.s32.totalorder %v241, 3
    %243 = vst.msk [vmem:[%s230] sm:$0xff] %vm242, %v239
    %s244 = scalar_lea.vmem [#allocation2], 56
    %s245 = scalar_lea.vmem [#allocation0], 112
    %s246 = scalar_lea.vmem %s245, 7 [#allocation0]
    %v247 = vld [vmem:[%s246] ss:$-1 sm:$0xff]
    %v248 = vrot.slane %v247, 5
    %249 = vst [vmem:[%s244] sm:$0xff] %v248
    %s250 = scalar_lea.vmem %s245, 8 [#allocation0]
    %s251 = scalar_lea.vmem %s250, 7 [#allocation0]
    %v252 = vld [vmem:[%s251] ss:$-1 sm:$0xff]
    %v253 = vrot.slane %v252, 5
    %v254 = vlaneseq
    %v255 = vshrl.u32 %v254, 7
    %vm256 = vcmp.lt.s32.totalorder %v255, 3
    %257 = vst.msk [vmem:[%s244] sm:$0xff] %vm256, %v253
    %s259 = sshllo.u32 0, 4
    %v261 = vld [vmem:[#allocation2] sm:%s259]
    %s262 = sshllo.u32 0, 4
    %263 = vst [vmem:[#allocation3] sm:%s262] %v261
    %s264 = scalar_lea.vmem [#allocation2], 8
    %v265 = vld [vmem:[%s264] sm:%s259]
    %s266 = sshllo.u32 0, 4
    %s267 = scalar_lea.vmem [#allocation3], 4
    %268 = vst [vmem:[%s267] sm:%s266] %v265
    %s269 = scalar_lea.vmem [#allocation2], 16
    %v270 = vld [vmem:[%s269] sm:%s259]
    %s271 = sshllo.u32 0, 4
    %s272 = smul.addr 4, 2
    %s273 = scalar_lea.vmem [#allocation3], %s272
    %274 = vst [vmem:[%s273] sm:%s271] %v270
    %s275 = scalar_lea.vmem [#allocation2], 24
    %v276 = vld [vmem:[%s275] sm:%s259]
    %s277 = sshllo.u32 0, 4
    %s278 = smul.addr 4, 3
    %s279 = scalar_lea.vmem [#allocation3], %s278
    %280 = vst [vmem:[%s279] sm:%s277] %v276
    %s281 = scalar_lea.vmem [#allocation2], 32
    %v282 = vld [vmem:[%s281] sm:%s259]
    %s283 = sshllo.u32 0, 4
    %s284 = smul.addr 4, 4
    %s285 = scalar_lea.vmem [#allocation3], %s284
    %286 = vst [vmem:[%s285] sm:%s283] %v282
    %s287 = scalar_lea.vmem [#allocation2], 40
    %v288 = vld [vmem:[%s287] sm:%s259]
    %s289 = sshllo.u32 0, 4
    %s290 = smul.addr 4, 5
    %s291 = scalar_lea.vmem [#allocation3], %s290
    %292 = vst [vmem:[%s291] sm:%s289] %v288
    %s293 = scalar_lea.vmem [#allocation2], 48
    %v294 = vld [vmem:[%s293] sm:%s259]
    %s295 = sshllo.u32 0, 4
    %s296 = smul.addr 4, 6
    %s297 = scalar_lea.vmem [#allocation3], %s296
    %298 = vst [vmem:[%s297] sm:%s295] %v294
    %s299 = scalar_lea.vmem [#allocation2], 56
    %v300 = vld [vmem:[%s299] sm:%s259]
    %s301 = sshllo.u32 0, 4
    %s302 = smul.addr 4, 7
    %s303 = scalar_lea.vmem [#allocation3], %s302
    %304 = vst [vmem:[%s303] sm:%s301] %v300
    // Predicated region
    $region39: #{reverse.1} parent=1 // pred_check
      _
    $region40: #{reverse.1} parent=1 // pred_check_branch
      %306 = sbr.rel (0) target = $region42
    $region41: #{reverse.1} parent=1 // pred_region
      // Predicated region
      $region43: #{reverse.1} parent=41 // pred_check
        _
      $region44: #{reverse.1} parent=41 // pred_check_branch
        %308 = sbr.rel target = $region46
      $region45: #{reverse.1} parent=41 // pred_region
        // Predicated region
        $region58: #{reverse.1} parent=45 // pred_check
          _
        $region59: #{reverse.1} parent=45 // pred_check_branch
          %337 = sbr.rel (0) target = $region61
        $region60: #{reverse.1} parent=45 // pred_region
          loop: start=0, step=1, limit=1
          $region62: #{reverse.1} parent=60 // loop_pre_header
            _
          $region63: #{reverse.1} parent=60 // loop_header
            %s339 = sphi 0, %s343
            %p340 = scmp.ge.s32.totalorder %s339, 1
            %s344 = sphi [#allocation3], [#allocation3]
            %s345 = sphi %s1, %s1
          $region64: #{reverse.1} parent=60 // loop_header_branch
            %342 = sbr.rel (%p340) target = $region68
          $region65: #{reverse.1} parent=60 // loop_body
            _
          $region66: #{reverse.1} parent=60 // loop_footer
            %s343 = sadd.s32 1, %s339
          $region67: #{reverse.1} parent=60 // loop_footer_branch
            %338 = sbr.rel target = $region63
          $region68: #{reverse.1} parent=60 // loop_exit
            _
          loop: start=0, step=1, limit=1
          $region69: #{reverse.1} parent=60 // loop_pre_header
            _
          $region70: #{reverse.1} parent=60 // loop_header
            %s348 = sphi 0, %s352
            %p349 = scmp.ge.s32.totalorder %s348, 1
            %s353 = sphi [#allocation3], [#allocation3]
            %s354 = sphi %s1, %s1
          $region71: #{reverse.1} parent=60 // loop_header_branch
            %351 = sbr.rel (%p349) target = $region75
          $region72: #{reverse.1} parent=60 // loop_body
            %v355 = vld [vmem:[%s353] sm:$0xf]
            %356 = vst [vmem:[%s354] sm:$0xf] %v355
            %v357 = vld [vmem:[%s353 + $0x4] sm:$0xf]
            %358 = vst [vmem:[%s354 + $0x4] sm:$0xf] %v357
            %v359 = vld [vmem:[%s353 + $0x8] sm:$0xf]
            %360 = vst [vmem:[%s354 + $0x8] sm:$0xf] %v359
            %v361 = vld [vmem:[%s353 + $0xc] sm:$0xf]
            %362 = vst [vmem:[%s354 + $0xc] sm:$0xf] %v361
            %v363 = vld [vmem:[%s353 + $0x10] sm:$0xf]
            %364 = vst [vmem:[%s354 + $0x10] sm:$0xf] %v363
            %v365 = vld [vmem:[%s353 + $0x14] sm:$0xf]
            %366 = vst [vmem:[%s354 + $0x14] sm:$0xf] %v365
            %v367 = vld [vmem:[%s353 + $0x18] sm:$0xf]
            %368 = vst [vmem:[%s354 + $0x18] sm:$0xf] %v367
            %v369 = vld [vmem:[%s353 + $0x1c] sm:$0xf]
            %370 = vst [vmem:[%s354 + $0x1c] sm:$0xf] %v369
          $region73: #{reverse.1} parent=60 // loop_footer
            %s352 = sadd.s32 1, %s348
          $region74: #{reverse.1} parent=60 // loop_footer_branch
            %347 = sbr.rel target = $region70
          $region75: #{reverse.1} parent=60 // loop_exit
            _
        $region61: #{reverse.1} parent=45 // pred_fallthru
          _
      $region46: #{reverse.1} parent=41 // pred_fallthru
        _
      // Predicated region
      $region47: #{reverse.1} parent=41 // pred_check
        _
      $region48: #{reverse.1} parent=41 // pred_check_branch
        %310 = sbr.rel (0) target = $region50
      $region49: #{reverse.1} parent=41 // pred_region
        loop: start=0, step=1, limit=1
        $region51: #{reverse.1} parent=49 // loop_pre_header
          _
        $region52: #{reverse.1} parent=49 // loop_header
          %s313 = sphi 0, %s317
          %p314 = scmp.ge.s32.totalorder %s313, 1
          %s318 = sphi [#allocation3], [#allocation3]
          %s319 = sphi %s1, %s1
        $region53: #{reverse.1} parent=49 // loop_header_branch
          %316 = sbr.rel (%p314) target = $region57
        $region54: #{reverse.1} parent=49 // loop_body
          %v320 = vld [vmem:[%s318] sm:$0xf]
          %321 = vst [vmem:[%s319] sm:$0xf] %v320
          %v322 = vld [vmem:[%s318 + $0x4] sm:$0xf]
          %323 = vst [vmem:[%s319 + $0x4] sm:$0xf] %v322
          %v324 = vld [vmem:[%s318 + $0x8] sm:$0xf]
          %325 = vst [vmem:[%s319 + $0x8] sm:$0xf] %v324
          %v326 = vld [vmem:[%s318 + $0xc] sm:$0xf]
          %327 = vst [vmem:[%s319 + $0xc] sm:$0xf] %v326
          %v328 = vld [vmem:[%s318 + $0x10] sm:$0xf]
          %329 = vst [vmem:[%s319 + $0x10] sm:$0xf] %v328
          %v330 = vld [vmem:[%s318 + $0x14] sm:$0xf]
          %331 = vst [vmem:[%s319 + $0x14] sm:$0xf] %v330
          %v332 = vld [vmem:[%s318 + $0x18] sm:$0xf]
          %333 = vst [vmem:[%s319 + $0x18] sm:$0xf] %v332
          %v334 = vld [vmem:[%s318 + $0x1c] sm:$0xf]
          %335 = vst [vmem:[%s319 + $0x1c] sm:$0xf] %v334
        $region55: #{reverse.1} parent=49 // loop_footer
          %s317 = sadd.s32 1, %s313
        $region56: #{reverse.1} parent=49 // loop_footer_branch
          %312 = sbr.rel target = $region52
        $region57: #{reverse.1} parent=49 // loop_exit
          _
      $region50: #{reverse.1} parent=41 // pred_fallthru
        _
    $region42: #{reverse.1} parent=1 // pred_fallthru
      _
    %371 = vnop

// kernel: spectral_transform.12
$region0: #{spectral_transform.12}
  #allocation0 [shape = 'u32[]', space=smem, size = 0x4, offset = 0x4, fixed_abs, tag = 'smem constant byte address 0x4 - core index']
  #allocation1 [shape = 'u32[144,128]{1,0:T(1,128)}', space=vmem, size = 0x12000, scoped, tag = 'internal scratch']
  %s0 = inlined_call_operand.vmem [shape: bf16[2,8,128], index: 0, kind: input, shape index: {}]
  %s1 = inlined_call_operand.vmem [shape: f32[8,1], index: 1, kind: input, shape index: {}]
  %s2 = inlined_call_operand.vmem [shape: f32[8,1], index: 2, kind: input, shape index: {}]
  %s3 = inlined_call_operand.vmem [shape: bf16[2,8,128], index: 3, kind: output, shape index: {}]
  %s4 = sld [smem:[#allocation0]]
  $region45: #{spectral_transform.12} parent=0
    _
  %s6 = ssub.s32 1, %s4
  %s7 = scalar_select 0, %s6, %s4
  loop: start=0, step=1, limit=4
  $region2: #{spectral_transform.12} parent=0 // loop_pre_header
    _
  $region3: #{spectral_transform.12} parent=0 // loop_header
    %s9 = sphi 0, %s13
    %p10 = scmp.ge.s32.totalorder %s9, 4
    %s16 = sphi 0, %s28
    %s17 = sphi 0, %s24
    %s18 = sphi 0, %s16
    %s19 = sphi 0, %s17
    %s20 = sphi 0, %s18
    %s21 = sphi 0, %s19
    %s33 = sphi 0, %s35
    %s36 = sphi 0, %s33
    %s37 = sphi 0, %s36
    %s53 = sphi 0, %s37
    %s57 = sphi 0, %s57
    %s59 = sphi 0, %s57
    %s60 = sphi 0, %s59
    %s74 = sphi 0, %s60
    %s78 = sphi 0, %s78
    %s80 = sphi 0, %s78
    %s81 = sphi 0, %s80
    %s95 = sphi 0, %s81
    %s103 = sphi 0, %s105
    %s106 = sphi 0, %s103
    %s107 = sphi 0, %s106
    %s123 = sphi 0, %s107
  $region4: #{spectral_transform.12} parent=0 // loop_header_branch
    %12 = sbr.rel (%p10) target = $region8
  $region5: #{spectral_transform.12} parent=0 // loop_body
    %s14 = ssub.s32 %s9, 1
    %s15 = ssub.s32 %s9, 2
    %s22 = sadd.s32 1, %s17
    %p23 = scmp.ge.s32.totalorder %s22, 1
    %s24 = scalar_select %p23, 0, %s22
    %s25 = sadd.s32 1, %s16
    %s26 = scalar_select %p23, %s25, %s16
    %p27 = scmp.ge.s32.totalorder %s26, 2
    %s28 = scalar_select %p27, 0, %s26
    %s29 = ssub.s32 %s16, %s28
    %s30 = ssub.s32 %s17, %s24
    %s31 = sor.u32 %s29, %s30
    %p32 = scmp.eq.s32.totalorder %s31, 0
    %s34 = sadd.s32 %s33, 1
    %s35 = scalar_select %p32, %s33, %s34
    %p38 = pneg %p32
    %p39 = scmp.eq.s32.totalorder %s9, 1
    %p40 = por %p38, %p39
    %p41 = scmp.ne.s32.totalorder %s33, %s36
    %p42 = scmp.eq.s32.totalorder %s9, 0
    %p43 = por %p41, %p42
    %p44 = scmp.ne.s32.totalorder %s33, %s36
    %p45 = scmp.eq.s32.totalorder %s14, 1
    %p46 = por %p44, %p45
    %p47 = scmp.ne.s32.totalorder %s36, %s37
    %p48 = scmp.eq.s32.totalorder %s14, 0
    %p49 = por %p47, %p48
    %p50 = scmp.ne.s32.totalorder %s36, %s37
    %p51 = scmp.eq.s32.totalorder %s15, 1
    %p52 = por %p50, %p51
    %p54 = scmp.ne.s32.totalorder %s37, %s53
    %p55 = scmp.eq.s32.totalorder %s15, 0
    %p56 = por %p54, %p55
    %s58 = sadd.s32 %s57, 1
    %p61 = scmp.eq.s32.totalorder %s9, 1
    %p62 = scmp.ne.s32.totalorder %s57, %s59
    %p63 = scmp.eq.s32.totalorder %s9, 0
    %p64 = por %p62, %p63
    %p65 = scmp.ne.s32.totalorder %s57, %s59
    %p66 = scmp.eq.s32.totalorder %s14, 1
    %p67 = por %p65, %p66
    %p68 = scmp.ne.s32.totalorder %s59, %s60
    %p69 = scmp.eq.s32.totalorder %s14, 0
    %p70 = por %p68, %p69
    %p71 = scmp.ne.s32.totalorder %s59, %s60
    %p72 = scmp.eq.s32.totalorder %s15, 1
    %p73 = por %p71, %p72
    %p75 = scmp.ne.s32.totalorder %s60, %s74
    %p76 = scmp.eq.s32.totalorder %s15, 0
    %p77 = por %p75, %p76
    %s79 = sadd.s32 %s78, 1
    %p82 = scmp.eq.s32.totalorder %s9, 1
    %p83 = scmp.ne.s32.totalorder %s78, %s80
    %p84 = scmp.eq.s32.totalorder %s9, 0
    %p85 = por %p83, %p84
    %p86 = scmp.ne.s32.totalorder %s78, %s80
    %p87 = scmp.eq.s32.totalorder %s14, 1
    %p88 = por %p86, %p87
    %p89 = scmp.ne.s32.totalorder %s80, %s81
    %p90 = scmp.eq.s32.totalorder %s14, 0
    %p91 = por %p89, %p90
    %p92 = scmp.ne.s32.totalorder %s80, %s81
    %p93 = scmp.eq.s32.totalorder %s15, 1
    %p94 = por %p92, %p93
    %p96 = scmp.ne.s32.totalorder %s81, %s95
    %p97 = scmp.eq.s32.totalorder %s15, 0
    %p98 = por %p96, %p97
    %s99 = ssub.s32 %s16, %s28
    %s100 = ssub.s32 %s17, %s24
    %s101 = sor.u32 %s99, %s100
    %p102 = scmp.eq.s32.totalorder %s101, 0
    %s104 = sadd.s32 %s103, 1
    %s105 = scalar_select %p102, %s103, %s104
    %p108 = pneg %p102
    %p109 = scmp.eq.s32.totalorder %s9, 1
    %p110 = por %p108, %p109
    %p111 = scmp.ne.s32.totalorder %s103, %s106
    %p112 = scmp.eq.s32.totalorder %s9, 0
    %p113 = por %p111, %p112
    %p114 = scmp.ne.s32.totalorder %s103, %s106
    %p115 = scmp.eq.s32.totalorder %s14, 1
    %p116 = por %p114, %p115
    %p117 = scmp.ne.s32.totalorder %s106, %s107
    %p118 = scmp.eq.s32.totalorder %s14, 0
    %p119 = por %p117, %p118
    %p120 = scmp.ne.s32.totalorder %s106, %s107
    %p121 = scmp.eq.s32.totalorder %s15, 1
    %p122 = por %p120, %p121
    %p124 = scmp.ne.s32.totalorder %s107, %s123
    %p125 = scmp.eq.s32.totalorder %s15, 0
    %p126 = por %p124, %p125
    %p127 = scmp.le.s32.totalorder 1, %s9
    %p128 = scmp.lt.s32.totalorder %s9, 3
    %p129 = pnand %p127, %p128
    %p130 = pneg %p129
    // Predicated region
    $region9: #{spectral_transform.12} parent=5 // pred_check
      _
    $region10: #{spectral_transform.12} parent=5 // pred_check_branch
      %132 = sbr.rel (%p129) target = $region12
    $region11: #{spectral_transform.12} parent=5 // pred_region
      %s133 = ssub.s32 %s9, 1
      // Predicated region
      $region13: #{spectral_transform.12} parent=11 // pred_check
        %p134 = pneg %p70
      $region14: #{spectral_transform.12} parent=11 // pred_check_branch
        %136 = sbr.rel (%p134) target = $region16
      $region15: #{spectral_transform.12} parent=11 // pred_region
        _
      $region16: #{spectral_transform.12} parent=11 // pred_fallthru
        _
      // Predicated region
      $region17: #{spectral_transform.12} parent=11 // pred_check
        %p137 = pneg %p91
      $region18: #{spectral_transform.12} parent=11 // pred_check_branch
        %139 = sbr.rel (%p137) target = $region20
      $region19: #{spectral_transform.12} parent=11 // pred_region
        _
      $region20: #{spectral_transform.12} parent=11 // pred_fallthru
        _
    $region12: #{spectral_transform.12} parent=5 // pred_fallthru
      _
    %p140 = scmp.lt.s32.totalorder %s9, 2
    // Predicated region
    $region21: #{spectral_transform.12} parent=5 // pred_check
      %p141 = pneg %p140
    $region22: #{spectral_transform.12} parent=5 // pred_check_branch
      %143 = sbr.rel (%p141) target = $region24
    $region23: #{spectral_transform.12} parent=5 // pred_region
      // Predicated region
      $region25: #{spectral_transform.12} parent=23 // pred_check
        %p144 = pneg %p43
      $region26: #{spectral_transform.12} parent=23 // pred_check_branch
        %146 = sbr.rel (%p144) target = $region28
      $region27: #{spectral_transform.12} parent=23 // pred_region
        %p147 = scmp.lt.s32.totalorder %s16, 1
        %s148 = scalar_select %p147, %s16, 1
        %p149 = scmp.lt.s32.totalorder %s17, 0
        %s150 = scalar_select %p149, %s17, 0
        %s151 = sadd.s32 %s150, %s148
        %s152 = smul.addr %s151, 4
        %s153 = scalar_lea.vmem %s0, %s152
      $region28: #{spectral_transform.12} parent=23 // pred_fallthru
        _
    $region24: #{spectral_transform.12} parent=5 // pred_fallthru
      _
    %p154 = scmp.le.s32.totalorder 1, %s9
    %p155 = scmp.lt.s32.totalorder %s9, 3
    %p156 = pnand %p154, %p155
    %p157 = pneg %p156
    // Predicated region
    $region29: #{spectral_transform.12} parent=5 // pred_check
      _
    $region30: #{spectral_transform.12} parent=5 // pred_check_branch
      %159 = sbr.rel (%p156) target = $region32
    $region31: #{spectral_transform.12} parent=5 // pred_region
      %s160 = ssub.s32 %s9, 1
      %p161 = scmp.lt.s32.totalorder %s18, 1
      %s162 = scalar_select %p161, %s18, 1
      %p163 = scmp.lt.s32.totalorder %s19, 0
      %s164 = scalar_select %p163, %s19, 0
      %s165 = sadd.s32 %s164, %s162
      %s166 = smul.addr %s165, 4
      %s167 = scalar_lea.vmem %s0, %s166
      %p168 = pneg %p49
      %p169 = pneg %p46
      %p170 = pneg %p70
      %p171 = pneg %p67
      %p172 = pneg %p91
      %p173 = pneg %p88
      %p174 = pneg %p119
      %p175 = pneg %p116
      %p176 = scmp.lt.s32.totalorder %s18, 1
      %s177 = scalar_select %p176, %s18, 1
      %p178 = scmp.lt.s32.totalorder %s19, 0
      %s179 = scalar_select %p178, %s19, 0
      %s180 = sadd.s32 %s179, %s177
      %s181 = smul.addr %s180, 4
      %s182 = scalar_lea.vmem %s3, %s181
      %p183 = scmp.lt.s32.totalorder %s18, 1
      %s184 = scalar_select %p183, %s18, 1
      %p185 = scmp.lt.s32.totalorder %s19, 0
      %s186 = scalar_select %p185, %s19, 0
      %s187 = sadd.s32 %s186, %s184
      %s188 = smul.addr %s187, 4
      %s189 = scalar_lea.vmem %s0, %s188
      %p190 = scmp.lt.s32.totalorder %s18, 1
      %s191 = scalar_select %p190, %s18, 1
      %p192 = scmp.lt.s32.totalorder %s19, 0
      %s193 = scalar_select %p192, %s19, 0
      %s194 = sadd.s32 %s193, %s191
      %s195 = smul.addr %s194, 4
      %s196 = scalar_lea.vmem %s3, %s195
      %v197 = vld [vmem:[%s189] sm:$0xf]
      %v198 = vunpack.c.l.bf16 %v197
      %v199 = vld [vmem:[%s1] sm:$0xff]
      %201 = vset.pattern.permute.xlu0 0
      %202 = vperm.xlu0 %201, %v199
      %v203 = vpop.permute.xlu0 %202
      %v205 = vmul.f32 %v198, %v203
      %v206 = vld [vmem:[%s2] sm:$0xff]
      %208 = vset.pattern.permute.xlu0 0
      %209 = vperm.xlu0 %208, %v206
      %v210 = vpop.permute.xlu0 %209
      %v212 = vadd.f32 %v205, %v210
      %v213 = vmax.f32 %v212, 0.0
      %v214 = vpack.c.bf16 %v213, %v213
      %215 = vst [vmem:[%s196] sm:$0xf] %v214
      %p216 = scmp.lt.s32.totalorder %s18, 1
      %s217 = scalar_select %p216, %s18, 1
      %p218 = scmp.lt.s32.totalorder %s19, 0
      %s219 = scalar_select %p218, %s19, 0
      %s220 = sadd.s32 %s219, %s217
      %s221 = smul.addr %s220, 4
      %s222 = scalar_lea.vmem %s3, %s221
      // Predicated region
      $region33: #{spectral_transform.12} parent=31 // pred_check
        %p223 = pneg %p116
      $region34: #{spectral_transform.12} parent=31 // pred_check_branch
        %225 = sbr.rel (%p223) target = $region36
      $region35: #{spectral_transform.12} parent=31 // pred_region
        _
      $region36: #{spectral_transform.12} parent=31 // pred_fallthru
        _
    $region32: #{spectral_transform.12} parent=5 // pred_fallthru
      _
    %p226 = scmp.le.s32.totalorder 2, %s9
    // Predicated region
    $region37: #{spectral_transform.12} parent=5 // pred_check
      %p227 = pneg %p226
    $region38: #{spectral_transform.12} parent=5 // pred_check_branch
      %229 = sbr.rel (%p227) target = $region40
    $region39: #{spectral_transform.12} parent=5 // pred_region
      %s230 = ssub.s32 %s9, 2
      // Predicated region
      $region41: #{spectral_transform.12} parent=39 // pred_check
        %p231 = pneg %p122
      $region42: #{spectral_transform.12} parent=39 // pred_check_branch
        %233 = sbr.rel (%p231) target = $region44
      $region43: #{spectral_transform.12} parent=39 // pred_region
        %p234 = scmp.lt.s32.totalorder %s20, 1
        %s235 = scalar_select %p234, %s20, 1
        %p236 = scmp.lt.s32.totalorder %s21, 0
        %s237 = scalar_select %p236, %s21, 0
        %s238 = sadd.s32 %s237, %s235
        %s239 = smul.addr %s238, 4
        %s240 = scalar_lea.vmem %s3, %s239
      $region44: #{spectral_transform.12} parent=39 // pred_fallthru
        _
    $region40: #{spectral_transform.12} parent=5 // pred_fallthru
      _
  $region6: #{spectral_transform.12} parent=0 // loop_footer
    %s13 = sadd.s32 1, %s9
  $region7: #{spectral_transform.12} parent=0 // loop_footer_branch
    %8 = sbr.rel target = $region3
  $region8: #{spectral_transform.12} parent=0 // loop_exit
    _

// kernel: spectral_transform.9
$region0: #{spectral_transform.9}
  #allocation0 [shape = 'u32[]', space=smem, size = 0x4, offset = 0x4, fixed_abs, tag = 'smem constant byte address 0x4 - core index']
  #allocation1 [shape = 'u32[144,128]{1,0:T(1,128)}', space=vmem, size = 0x12000, scoped, tag = 'internal scratch']
  %s0 = inlined_call_operand.vmem [shape: bf16[2,8,256], index: 0, kind: input, shape index: {}]
  %s1 = inlined_call_operand.vmem [shape: bf16[8,8], index: 1, kind: input, shape index: {}]
  %s2 = inlined_call_operand.vmem [shape: bf16[2,8,256], index: 2, kind: output, shape index: {0}]
  %s3 = inlined_call_operand.vmem [shape: f32[2,8,1], index: 3, kind: output, shape index: {1}]
  %s4 = inlined_call_operand.vmem [shape: f32[2,8,1], index: 4, kind: output, shape index: {2}]
  %5 = xla_tuple %s2, %s3, %s4
  %s6 = sld [smem:[#allocation0]]
  $region61: #{spectral_transform.9} parent=0
    _
  %s8 = ssub.s32 1, %s6
  %s9 = scalar_select 0, %s8, %s6
  loop: start=0, step=1, limit=4
  $region2: #{spectral_transform.9} parent=0 // loop_pre_header
    _
  $region3: #{spectral_transform.9} parent=0 // loop_header
    %s11 = sphi 0, %s15
    %p12 = scmp.ge.s32.totalorder %s11, 4
    %s18 = sphi 0, %s30
    %s19 = sphi 0, %s26
    %s20 = sphi 0, %s18
    %s21 = sphi 0, %s19
    %s22 = sphi 0, %s20
    %s23 = sphi 0, %s21
    %s35 = sphi 0, %s37
    %s38 = sphi 0, %s35
    %s39 = sphi 0, %s38
    %s55 = sphi 0, %s39
    %s59 = sphi 0, %s59
    %s61 = sphi 0, %s59
    %s62 = sphi 0, %s61
    %s76 = sphi 0, %s62
    %s84 = sphi 0, %s86
    %s87 = sphi 0, %s84
    %s88 = sphi 0, %s87
    %s104 = sphi 0, %s88
    %s110 = sphi 0, %s112
    %s113 = sphi 0, %s110
    %s114 = sphi 0, %s113
    %s130 = sphi 0, %s114
    %s136 = sphi 0, %s138
    %s139 = sphi 0, %s136
    %s140 = sphi 0, %s139
    %s156 = sphi 0, %s140
  $region4: #{spectral_transform.9} parent=0 // loop_header_branch
    %14 = sbr.rel (%p12) target = $region8
  $region5: #{spectral_transform.9} parent=0 // loop_body
    %s16 = ssub.s32 %s11, 1
    %s17 = ssub.s32 %s11, 2
    %s24 = sadd.s32 1, %s19
    %p25 = scmp.ge.s32.totalorder %s24, 1
    %s26 = scalar_select %p25, 0, %s24
    %s27 = sadd.s32 1, %s18
    %s28 = scalar_select %p25, %s27, %s18
    %p29 = scmp.ge.s32.totalorder %s28, 2
    %s30 = scalar_select %p29, 0, %s28
    %s31 = ssub.s32 %s18, %s30
    %s32 = ssub.s32 %s19, %s26
    %s33 = sor.u32 %s31, %s32
    %p34 = scmp.eq.s32.totalorder %s33, 0
    %s36 = sadd.s32 %s35, 1
    %s37 = scalar_select %p34, %s35, %s36
    %p40 = pneg %p34
    %p41 = scmp.eq.s32.totalorder %s11, 1
    %p42 = por %p40, %p41
    %p43 = scmp.ne.s32.totalorder %s35, %s38
    %p44 = scmp.eq.s32.totalorder %s11, 0
    %p45 = por %p43, %p44
    %p46 = scmp.ne.s32.totalorder %s35, %s38
    %p47 = scmp.eq.s32.totalorder %s16, 1
    %p48 = por %p46, %p47
    %p49 = scmp.ne.s32.totalorder %s38, %s39
    %p50 = scmp.eq.s32.totalorder %s16, 0
    %p51 = por %p49, %p50
    %p52 = scmp.ne.s32.totalorder %s38, %s39
    %p53 = scmp.eq.s32.totalorder %s17, 1
    %p54 = por %p52, %p53
    %p56 = scmp.ne.s32.totalorder %s39, %s55
    %p57 = scmp.eq.s32.totalorder %s17, 0
    %p58 = por %p56, %p57
    %s60 = sadd.s32 %s59, 1
    %p63 = scmp.eq.s32.totalorder %s11, 1
    %p64 = scmp.ne.s32.totalorder %s59, %s61
    %p65 = scmp.eq.s32.totalorder %s11, 0
    %p66 = por %p64, %p65
    %p67 = scmp.ne.s32.totalorder %s59, %s61
    %p68 = scmp.eq.s32.totalorder %s16, 1
    %p69 = por %p67, %p68
    %p70 = scmp.ne.s32.totalorder %s61, %s62
    %p71 = scmp.eq.s32.totalorder %s16, 0
    %p72 = por %p70, %p71
    %p73 = scmp.ne.s32.totalorder %s61, %s62
    %p74 = scmp.eq.s32.totalorder %s17, 1
    %p75 = por %p73, %p74
    %p77 = scmp.ne.s32.totalorder %s62, %s76
    %p78 = scmp.eq.s32.totalorder %s17, 0
    %p79 = por %p77, %p78
    %s80 = ssub.s32 %s18, %s30
    %s81 = ssub.s32 %s19, %s26
    %s82 = sor.u32 %s80, %s81
    %p83 = scmp.eq.s32.totalorder %s82, 0
    %s85 = sadd.s32 %s84, 1
    %s86 = scalar_select %p83, %s84, %s85
    %p89 = pneg %p83
    %p90 = scmp.eq.s32.totalorder %s11, 1
    %p91 = por %p89, %p90
    %p92 = scmp.ne.s32.totalorder %s84, %s87
    %p93 = scmp.eq.s32.totalorder %s11, 0
    %p94 = por %p92, %p93
    %p95 = scmp.ne.s32.totalorder %s84, %s87
    %p96 = scmp.eq.s32.totalorder %s16, 1
    %p97 = por %p95, %p96
    %p98 = scmp.ne.s32.totalorder %s87, %s88
    %p99 = scmp.eq.s32.totalorder %s16, 0
    %p100 = por %p98, %p99
    %p101 = scmp.ne.s32.totalorder %s87, %s88
    %p102 = scmp.eq.s32.totalorder %s17, 1
    %p103 = por %p101, %p102
    %p105 = scmp.ne.s32.totalorder %s88, %s104
    %p106 = scmp.eq.s32.totalorder %s17, 0
    %p107 = por %p105, %p106
    %s108 = ssub.s32 %s18, %s30
    %p109 = scmp.eq.s32.totalorder %s108, 0
    %s111 = sadd.s32 %s110, 1
    %s112 = scalar_select %p109, %s110, %s111
    %p115 = pneg %p109
    %p116 = scmp.eq.s32.totalorder %s11, 1
    %p117 = por %p115, %p116
    %p118 = scmp.ne.s32.totalorder %s110, %s113
    %p119 = scmp.eq.s32.totalorder %s11, 0
    %p120 = por %p118, %p119
    %p121 = scmp.ne.s32.totalorder %s110, %s113
    %p122 = scmp.eq.s32.totalorder %s16, 1
    %p123 = por %p121, %p122
    %p124 = scmp.ne.s32.totalorder %s113, %s114
    %p125 = scmp.eq.s32.totalorder %s16, 0
    %p126 = por %p124, %p125
    %p127 = scmp.ne.s32.totalorder %s113, %s114
    %p128 = scmp.eq.s32.totalorder %s17, 1
    %p129 = por %p127, %p128
    %p131 = scmp.ne.s32.totalorder %s114, %s130
    %p132 = scmp.eq.s32.totalorder %s17, 0
    %p133 = por %p131, %p132
    %s134 = ssub.s32 %s18, %s30
    %p135 = scmp.eq.s32.totalorder %s134, 0
    %s137 = sadd.s32 %s136, 1
    %s138 = scalar_select %p135, %s136, %s137
    %p141 = pneg %p135
    %p142 = scmp.eq.s32.totalorder %s11, 1
    %p143 = por %p141, %p142
    %p144 = scmp.ne.s32.totalorder %s136, %s139
    %p145 = scmp.eq.s32.totalorder %s11, 0
    %p146 = por %p144, %p145
    %p147 = scmp.ne.s32.totalorder %s136, %s139
    %p148 = scmp.eq.s32.totalorder %s16, 1
    %p149 = por %p147, %p148
    %p150 = scmp.ne.s32.totalorder %s139, %s140
    %p151 = scmp.eq.s32.totalorder %s16, 0
    %p152 = por %p150, %p151
    %p153 = scmp.ne.s32.totalorder %s139, %s140
    %p154 = scmp.eq.s32.totalorder %s17, 1
    %p155 = por %p153, %p154
    %p157 = scmp.ne.s32.totalorder %s140, %s156
    %p158 = scmp.eq.s32.totalorder %s17, 0
    %p159 = por %p157, %p158
    %p160 = scmp.le.s32.totalorder 1, %s11
    %p161 = scmp.lt.s32.totalorder %s11, 3
    %p162 = pnand %p160, %p161
    %p163 = pneg %p162
    // Predicated region
    $region9: #{spectral_transform.9} parent=5 // pred_check
      _
    $region10: #{spectral_transform.9} parent=5 // pred_check_branch
      %165 = sbr.rel (%p162) target = $region12
    $region11: #{spectral_transform.9} parent=5 // pred_region
      %s166 = ssub.s32 %s11, 1
      // Predicated region
      $region13: #{spectral_transform.9} parent=11 // pred_check
        %p167 = pneg %p72
      $region14: #{spectral_transform.9} parent=11 // pred_check_branch
        %169 = sbr.rel (%p167) target = $region16
      $region15: #{spectral_transform.9} parent=11 // pred_region
        _
      $region16: #{spectral_transform.9} parent=11 // pred_fallthru
        _
    $region12: #{spectral_transform.9} parent=5 // pred_fallthru
      _
    %p170 = scmp.lt.s32.totalorder %s11, 2
    // Predicated region
    $region17: #{spectral_transform.9} parent=5 // pred_check
      %p171 = pneg %p170
    $region18: #{spectral_transform.9} parent=5 // pred_check_branch
      %173 = sbr.rel (%p171) target = $region20
    $region19: #{spectral_transform.9} parent=5 // pred_region
      // Predicated region
      $region21: #{spectral_transform.9} parent=19 // pred_check
        %p174 = pneg %p45
      $region22: #{spectral_transform.9} parent=19 // pred_check_branch
        %176 = sbr.rel (%p174) target = $region24
      $region23: #{spectral_transform.9} parent=19 // pred_region
        %s177 = smul.u32 2, %s19
        %p178 = scmp.lt.s32.totalorder %s18, 1
        %s179 = scalar_select %p178, %s18, 1
        %p180 = scmp.lt.s32.totalorder %s177, 1
        %s181 = scalar_select %p180, %s177, 1
        %s182 = smul.addr %s179, 2
        %s183 = sadd.s32 %s181, %s182
        %s184 = smul.addr %s183, 4
        %s185 = scalar_lea.vmem %s0, %s184
        %s186 = smul.u32 2, %s19
      $region24: #{spectral_transform.9} parent=19 // pred_fallthru
        _
    $region20: #{spectral_transform.9} parent=5 // pred_fallthru
      _
    %p187 = scmp.le.s32.totalorder 1, %s11
    %p188 = scmp.lt.s32.totalorder %s11, 3
    %p189 = pnand %p187, %p188
    %p190 = pneg %p189
    // Predicated region
    $region25: #{spectral_transform.9} parent=5 // pred_check
      _
    $region26: #{spectral_transform.9} parent=5 // pred_check_branch
      %192 = sbr.rel (%p189) target = $region28
    $region27: #{spectral_transform.9} parent=5 // pred_region
      %s193 = ssub.s32 %s11, 1
      %s194 = smul.u32 2, %s21
      %p195 = scmp.lt.s32.totalorder %s20, 1
      %s196 = scalar_select %p195, %s20, 1
      %p197 = scmp.lt.s32.totalorder %s194, 1
      %s198 = scalar_select %p197, %s194, 1
      %s199 = smul.addr %s196, 2
      %s200 = sadd.s32 %s198, %s199
      %s201 = smul.addr %s200, 4
      %s202 = scalar_lea.vmem %s0, %s201
      %p203 = pneg %p51
      %p204 = pneg %p48
      %p205 = pneg %p72
      %p206 = pneg %p69
      %p207 = pneg %p100
      %p208 = pneg %p97
      %s209 = smul.u32 2, %s21
      %p210 = scmp.lt.s32.totalorder %s20, 1
      %s211 = scalar_select %p210, %s20, 1
      %p212 = scmp.lt.s32.totalorder %s209, 1
      %s213 = scalar_select %p212, %s209, 1
      %s214 = smul.addr %s211, 2
      %s215 = sadd.s32 %s213, %s214
      %s216 = smul.addr %s215, 4
      %s217 = scalar_lea.vmem %s2, %s216
      %p218 = pneg %p126
      %p219 = pneg %p123
      %p220 = scmp.lt.s32.totalorder %s20, 1
      %s221 = scalar_select %p220, %s20, 1
      %s222 = smul.addr %s221, 8
      %s223 = scalar_lea.vmem %s3, %s222
      %p224 = pneg %p152
      %p225 = pneg %p149
      %p226 = scmp.lt.s32.totalorder %s20, 1
      %s227 = scalar_select %p226, %s20, 1
      %s228 = smul.addr %s227, 8
      %s229 = scalar_lea.vmem %s4, %s228
      %s230 = smul.u32 2, %s21
      %p231 = scmp.lt.s32.totalorder %s20, 1
      %s232 = scalar_select %p231, %s20, 1
      %p233 = scmp.lt.s32.totalorder %s230, 1
      %s234 = scalar_select %p233, %s230, 1
      %s235 = smul.addr %s232, 2
      %s236 = sadd.s32 %s234, %s235
      %s237 = smul.addr %s236, 4
      %s238 = scalar_lea.vmem %s0, %s237
      %s239 = smul.u32 2, %s21
      %s240 = smul.u32 2, %s21
      %p241 = scmp.lt.s32.totalorder %s20, 1
      %s242 = scalar_select %p241, %s20, 1
      %p243 = scmp.lt.s32.totalorder %s240, 1
      %s244 = scalar_select %p243, %s240, 1
      %s245 = smul.addr %s242, 2
      %s246 = sadd.s32 %s244, %s245
      %s247 = smul.addr %s246, 4
      %s248 = scalar_lea.vmem %s2, %s247
      %s249 = smul.u32 2, %s21
      %p250 = scmp.lt.s32.totalorder %s20, 1
      %s251 = scalar_select %p250, %s20, 1
      %s252 = smul.addr %s251, 8
      %s253 = scalar_lea.vmem %s3, %s252
      %p254 = scmp.lt.s32.totalorder %s20, 1
      %s255 = scalar_select %p254, %s20, 1
      %s256 = smul.addr %s255, 8
      %s257 = scalar_lea.vmem %s4, %s256
      %v259 = vld [vmem:[%s1] sm:$0xf]
      %v260 = vld [vmem:[%s238] sm:$0xff]
      %v262 = vunpack.c.l.b16 %v260
      %v263 = vunpack.c.h.b16 %v260
      %v264 = vpack.c.b16 %v262, %v262
      %v265 = vpack.c.b16 %v263, %v263
      %vm266 = vcmask 64512
      %v268 = vsel %vm266, %v259, 0
      %vm270 = vcmask 1043456
      %v272 = vsel %vm270, %v264, 0
      %v275 = vsel %vm270, %v265, 0
      %277 = vmatprep.subr.bf16.mxu0 %v275
      %278 = vmatpush1.bf16.msra.mxu0 %v272
      %279 = vmatprep.subr.bf16.mxu0 0
      %280 = vmatpush1.bf16.msra.mxu0 0
      %281 = vmatprep.subr.bf16.mxu0 0
      %282 = vmatpush1.bf16.msra.mxu0 0
      %283 = vmatprep.subr.bf16.mxu0 0
      %284 = vmatpush1.bf16.msra.mxu0 0
      %285 = vmatprep.subr.bf16.mxu0 0
      %286 = vmatpush1.bf16.msra.mxu0 0
      %287 = vmatprep.subr.bf16.mxu0 0
      %288 = vmatpush1.bf16.msra.mxu0 0
      %289 = vmatprep.subr.bf16.mxu0 0
      %290 = vmatpush1.bf16.msra.mxu0 0
      %291 = vmatprep.subr.bf16.mxu0 0
      %292 = vmatpush1.bf16.msra.mxu0 0
      %293 = vmatprep.subr.bf16.mxu0 0
      %294 = vmatpush1.bf16.msra.mxu0 0
      %295 = vmatprep.subr.bf16.mxu0 0
      %296 = vmatpush1.bf16.msra.mxu0 0
      %297 = vmatprep.subr.bf16.mxu0 0
      %298 = vmatpush1.bf16.msra.mxu0 0
      %299 = vmatprep.subr.bf16.mxu0 0
      %300 = vmatpush1.bf16.msra.mxu0 0
      %301 = vmatprep.subr.bf16.mxu0 0
      %302 = vmatpush1.bf16.msra.mxu0 0
      %303 = vmatprep.subr.bf16.mxu0 0
      %304 = vmatpush1.bf16.msra.mxu0 0
      %305 = vmatprep.subr.bf16.mxu0 0
      %306 = vmatpush1.bf16.msra.mxu0 0
      %307 = vmatprep.subr.bf16.mxu0 0
      %308 = vmatpush1.bf16.msra.mxu0 0
      %309 = vmatprep.mubr.bf16.mxu0 0
      %310 = vmatmul.mubr.bf16.gmra.mrb[0].mxu0 %v268
      %v311 = vpop.f32.mrb[0].mxu0
      %v312 = vadd.f32 0.0, %v311
      %v313 = vpop.f32.mrb[0].mxu0
      %v314 = vadd.f32 0.0, %v313
      %v315 = vpop.f32.mrb[0].mxu0
      %v316 = vpop.f32.mrb[0].mxu0
      %317 = vdwg.mxu0
      %v318 = vpack.c.bf16 %v312, %v312
      %v319 = vpack.c.bf16 %v314, %v314
      %v322 = vunpack.c.l.b16 %v318
      %v323 = vunpack.c.l.b16 %v319
      %v324 = vpack.c.b16 %v323, %v322
      %326 = vst [vmem:[%s248] sm:$0xff] %v324
      %p327 = scmp.eq.s32.totalorder %s21, 0
      // Predicated region
      $region29: #{spectral_transform.9} parent=27 // pred_check
        %p328 = pneg %p327
      $region30: #{spectral_transform.9} parent=27 // pred_check_branch
        %330 = sbr.rel (%p328) target = $region32
      $region31: #{spectral_transform.9} parent=27 // pred_region
        %vm331 = vcmask 7168
        %332 = vst.msk [vmem:[%s253] sm:$0xff] %vm331, 0.0
        %333 = vst.msk [vmem:[%s257] sm:$0xff] %vm331, 0.0
      $region32: #{spectral_transform.9} parent=27 // pred_fallthru
        _
      %v334 = vld [vmem:[%s253] sm:$0xff]
      %v335 = vadd.f32 %v312, %v314
      %336 = vadd.xlane.f32.xlu0 %v335
      %v337 = vpop.xlane.xlu0 %336
      %v338 = vadd.f32 %v334, %v337
      %vm339 = vcmask 7168
      %340 = vst.msk [vmem:[%s253] sm:$0xff] %vm339, %v338
      %v341 = vld [vmem:[%s257] sm:$0xff]
      %v342 = vmul.f32 %v312, %v312
      %v343 = vmul.f32 %v314, %v314
      %v344 = vadd.f32 %v342, %v343
      %345 = vadd.xlane.f32.xlu0 %v344
      %v346 = vpop.xlane.xlu0 %345
      %v347 = vadd.f32 %v341, %v346
      %348 = vst.msk [vmem:[%s257] sm:$0xff] %vm339, %v347
      %s349 = smul.u32 2, %s21
      %p350 = scmp.lt.s32.totalorder %s20, 1
      %s351 = scalar_select %p350, %s20, 1
      %p352 = scmp.lt.s32.totalorder %s349, 1
      %s353 = scalar_select %p352, %s349, 1
      %s354 = smul.addr %s351, 2
      %s355 = sadd.s32 %s353, %s354
      %s356 = smul.addr %s355, 4
      %s357 = scalar_lea.vmem %s2, %s356
      %p358 = scmp.lt.s32.totalorder %s20, 1
      %s359 = scalar_select %p358, %s20, 1
      %s360 = smul.addr %s359, 8
      %s361 = scalar_lea.vmem %s3, %s360
      %p362 = scmp.lt.s32.totalorder %s20, 1
      %s363 = scalar_select %p362, %s20, 1
      %s364 = smul.addr %s363, 8
      %s365 = scalar_lea.vmem %s4, %s364
      // Predicated region
      $region33: #{spectral_transform.9} parent=27 // pred_check
        %p366 = pneg %p97
      $region34: #{spectral_transform.9} parent=27 // pred_check_branch
        %368 = sbr.rel (%p366) target = $region36
      $region35: #{spectral_transform.9} parent=27 // pred_region
        %s369 = smul.u32 2, %s21
      $region36: #{spectral_transform.9} parent=27 // pred_fallthru
        _
      // Predicated region
      $region37: #{spectral_transform.9} parent=27 // pred_check
        %p370 = pneg %p123
      $region38: #{spectral_transform.9} parent=27 // pred_check_branch
        %372 = sbr.rel (%p370) target = $region40
      $region39: #{spectral_transform.9} parent=27 // pred_region
        _
      $region40: #{spectral_transform.9} parent=27 // pred_fallthru
        _
      // Predicated region
      $region41: #{spectral_transform.9} parent=27 // pred_check
        %p373 = pneg %p149
      $region42: #{spectral_transform.9} parent=27 // pred_check_branch
        %375 = sbr.rel (%p373) target = $region44
      $region43: #{spectral_transform.9} parent=27 // pred_region
        _
      $region44: #{spectral_transform.9} parent=27 // pred_fallthru
        _
    $region28: #{spectral_transform.9} parent=5 // pred_fallthru
      _
    %p376 = scmp.le.s32.totalorder 2, %s11
    // Predicated region
    $region45: #{spectral_transform.9} parent=5 // pred_check
      %p377 = pneg %p376
    $region46: #{spectral_transform.9} parent=5 // pred_check_branch
      %379 = sbr.rel (%p377) target = $region48
    $region47: #{spectral_transform.9} parent=5 // pred_region
      %s380 = ssub.s32 %s11, 2
      // Predicated region
      $region49: #{spectral_transform.9} parent=47 // pred_check
        %p381 = pneg %p103
      $region50: #{spectral_transform.9} parent=47 // pred_check_branch
        %383 = sbr.rel (%p381) target = $region52
      $region51: #{spectral_transform.9} parent=47 // pred_region
        %s384 = smul.u32 2, %s23
        %p385 = scmp.lt.s32.totalorder %s22, 1
        %s386 = scalar_select %p385, %s22, 1
        %p387 = scmp.lt.s32.totalorder %s384, 1
        %s388 = scalar_select %p387, %s384, 1
        %s389 = smul.addr %s386, 2
        %s390 = sadd.s32 %s388, %s389
        %s391 = smul.addr %s390, 4
        %s392 = scalar_lea.vmem %s2, %s391
      $region52: #{spectral_transform.9} parent=47 // pred_fallthru
        _
      // Predicated region
      $region53: #{spectral_transform.9} parent=47 // pred_check
        %p393 = pneg %p129
      $region54: #{spectral_transform.9} parent=47 // pred_check_branch
        %395 = sbr.rel (%p393) target = $region56
      $region55: #{spectral_transform.9} parent=47 // pred_region
        %p396 = scmp.lt.s32.totalorder %s22, 1
        %s397 = scalar_select %p396, %s22, 1
        %s398 = smul.addr %s397, 8
        %s399 = scalar_lea.vmem %s3, %s398
      $region56: #{spectral_transform.9} parent=47 // pred_fallthru
        _
      // Predicated region
      $region57: #{spectral_transform.9} parent=47 // pred_check
        %p400 = pneg %p155
      $region58: #{spectral_transform.9} parent=47 // pred_check_branch
        %402 = sbr.rel (%p400) target = $region60
      $region59: #{spectral_transform.9} parent=47 // pred_region
        %p403 = scmp.lt.s32.totalorder %s22, 1
        %s404 = scalar_select %p403, %s22, 1
        %s405 = smul.addr %s404, 8
        %s406 = scalar_lea.vmem %s4, %s405
      $region60: #{spectral_transform.9} parent=47 // pred_fallthru
        _
    $region48: #{spectral_transform.9} parent=5 // pred_fallthru
      _
  $region6: #{spectral_transform.9} parent=0 // loop_footer
    %s15 = sadd.s32 1, %s11
  $region7: #{spectral_transform.9} parent=0 // loop_footer_branch
    %10 = sbr.rel target = $region3
  $region8: #{spectral_transform.9} parent=0 // loop_exit
    _

// kernel: spectral_transform.10
$region0: #{spectral_transform.10}
  #allocation0 [shape = 'u32[]', space=smem, size = 0x4, offset = 0x4, fixed_abs, tag = 'smem constant byte address 0x4 - core index']
  #allocation1 [shape = 'u32[144,128]{1,0:T(1,128)}', space=vmem, size = 0x12000, scoped, tag = 'internal scratch']
  %s0 = inlined_call_operand.vmem [shape: bf16[2,8,256], index: 0, kind: input, shape index: {}]
  %s1 = inlined_call_operand.vmem [shape: f32[8,1], index: 1, kind: input, shape index: {}]
  %s2 = inlined_call_operand.vmem [shape: f32[8,1], index: 2, kind: input, shape index: {}]
  %s3 = inlined_call_operand.vmem [shape: bf16[2,8,256], index: 3, kind: output, shape index: {}]
  %s4 = sld [smem:[#allocation0]]
  $region45: #{spectral_transform.10} parent=0
    _
  %s6 = ssub.s32 1, %s4
  %s7 = scalar_select 0, %s6, %s4
  loop: start=0, step=1, limit=4
  $region2: #{spectral_transform.10} parent=0 // loop_pre_header
    _
  $region3: #{spectral_transform.10} parent=0 // loop_header
    %s9 = sphi 0, %s13
    %p10 = scmp.ge.s32.totalorder %s9, 4
    %s16 = sphi 0, %s28
    %s17 = sphi 0, %s24
    %s18 = sphi 0, %s16
    %s19 = sphi 0, %s17
    %s20 = sphi 0, %s18
    %s21 = sphi 0, %s19
    %s33 = sphi 0, %s35
    %s36 = sphi 0, %s33
    %s37 = sphi 0, %s36
    %s53 = sphi 0, %s37
    %s57 = sphi 0, %s57
    %s59 = sphi 0, %s57
    %s60 = sphi 0, %s59
    %s74 = sphi 0, %s60
    %s78 = sphi 0, %s78
    %s80 = sphi 0, %s78
    %s81 = sphi 0, %s80
    %s95 = sphi 0, %s81
    %s103 = sphi 0, %s105
    %s106 = sphi 0, %s103
    %s107 = sphi 0, %s106
    %s123 = sphi 0, %s107
  $region4: #{spectral_transform.10} parent=0 // loop_header_branch
    %12 = sbr.rel (%p10) target = $region8
  $region5: #{spectral_transform.10} parent=0 // loop_body
    %s14 = ssub.s32 %s9, 1
    %s15 = ssub.s32 %s9, 2
    %s22 = sadd.s32 1, %s17
    %p23 = scmp.ge.s32.totalorder %s22, 1
    %s24 = scalar_select %p23, 0, %s22
    %s25 = sadd.s32 1, %s16
    %s26 = scalar_select %p23, %s25, %s16
    %p27 = scmp.ge.s32.totalorder %s26, 2
    %s28 = scalar_select %p27, 0, %s26
    %s29 = ssub.s32 %s16, %s28
    %s30 = ssub.s32 %s17, %s24
    %s31 = sor.u32 %s29, %s30
    %p32 = scmp.eq.s32.totalorder %s31, 0
    %s34 = sadd.s32 %s33, 1
    %s35 = scalar_select %p32, %s33, %s34
    %p38 = pneg %p32
    %p39 = scmp.eq.s32.totalorder %s9, 1
    %p40 = por %p38, %p39
    %p41 = scmp.ne.s32.totalorder %s33, %s36
    %p42 = scmp.eq.s32.totalorder %s9, 0
    %p43 = por %p41, %p42
    %p44 = scmp.ne.s32.totalorder %s33, %s36
    %p45 = scmp.eq.s32.totalorder %s14, 1
    %p46 = por %p44, %p45
    %p47 = scmp.ne.s32.totalorder %s36, %s37
    %p48 = scmp.eq.s32.totalorder %s14, 0
    %p49 = por %p47, %p48
    %p50 = scmp.ne.s32.totalorder %s36, %s37
    %p51 = scmp.eq.s32.totalorder %s15, 1
    %p52 = por %p50, %p51
    %p54 = scmp.ne.s32.totalorder %s37, %s53
    %p55 = scmp.eq.s32.totalorder %s15, 0
    %p56 = por %p54, %p55
    %s58 = sadd.s32 %s57, 1
    %p61 = scmp.eq.s32.totalorder %s9, 1
    %p62 = scmp.ne.s32.totalorder %s57, %s59
    %p63 = scmp.eq.s32.totalorder %s9, 0
    %p64 = por %p62, %p63
    %p65 = scmp.ne.s32.totalorder %s57, %s59
    %p66 = scmp.eq.s32.totalorder %s14, 1
    %p67 = por %p65, %p66
    %p68 = scmp.ne.s32.totalorder %s59, %s60
    %p69 = scmp.eq.s32.totalorder %s14, 0
    %p70 = por %p68, %p69
    %p71 = scmp.ne.s32.totalorder %s59, %s60
    %p72 = scmp.eq.s32.totalorder %s15, 1
    %p73 = por %p71, %p72
    %p75 = scmp.ne.s32.totalorder %s60, %s74
    %p76 = scmp.eq.s32.totalorder %s15, 0
    %p77 = por %p75, %p76
    %s79 = sadd.s32 %s78, 1
    %p82 = scmp.eq.s32.totalorder %s9, 1
    %p83 = scmp.ne.s32.totalorder %s78, %s80
    %p84 = scmp.eq.s32.totalorder %s9, 0
    %p85 = por %p83, %p84
    %p86 = scmp.ne.s32.totalorder %s78, %s80
    %p87 = scmp.eq.s32.totalorder %s14, 1
    %p88 = por %p86, %p87
    %p89 = scmp.ne.s32.totalorder %s80, %s81
    %p90 = scmp.eq.s32.totalorder %s14, 0
    %p91 = por %p89, %p90
    %p92 = scmp.ne.s32.totalorder %s80, %s81
    %p93 = scmp.eq.s32.totalorder %s15, 1
    %p94 = por %p92, %p93
    %p96 = scmp.ne.s32.totalorder %s81, %s95
    %p97 = scmp.eq.s32.totalorder %s15, 0
    %p98 = por %p96, %p97
    %s99 = ssub.s32 %s16, %s28
    %s100 = ssub.s32 %s17, %s24
    %s101 = sor.u32 %s99, %s100
    %p102 = scmp.eq.s32.totalorder %s101, 0
    %s104 = sadd.s32 %s103, 1
    %s105 = scalar_select %p102, %s103, %s104
    %p108 = pneg %p102
    %p109 = scmp.eq.s32.totalorder %s9, 1
    %p110 = por %p108, %p109
    %p111 = scmp.ne.s32.totalorder %s103, %s106
    %p112 = scmp.eq.s32.totalorder %s9, 0
    %p113 = por %p111, %p112
    %p114 = scmp.ne.s32.totalorder %s103, %s106
    %p115 = scmp.eq.s32.totalorder %s14, 1
    %p116 = por %p114, %p115
    %p117 = scmp.ne.s32.totalorder %s106, %s107
    %p118 = scmp.eq.s32.totalorder %s14, 0
    %p119 = por %p117, %p118
    %p120 = scmp.ne.s32.totalorder %s106, %s107
    %p121 = scmp.eq.s32.totalorder %s15, 1
    %p122 = por %p120, %p121
    %p124 = scmp.ne.s32.totalorder %s107, %s123
    %p125 = scmp.eq.s32.totalorder %s15, 0
    %p126 = por %p124, %p125
    %p127 = scmp.le.s32.totalorder 1, %s9
    %p128 = scmp.lt.s32.totalorder %s9, 3
    %p129 = pnand %p127, %p128
    %p130 = pneg %p129
    // Predicated region
    $region9: #{spectral_transform.10} parent=5 // pred_check
      _
    $region10: #{spectral_transform.10} parent=5 // pred_check_branch
      %132 = sbr.rel (%p129) target = $region12
    $region11: #{spectral_transform.10} parent=5 // pred_region
      %s133 = ssub.s32 %s9, 1
      // Predicated region
      $region13: #{spectral_transform.10} parent=11 // pred_check
        %p134 = pneg %p70
      $region14: #{spectral_transform.10} parent=11 // pred_check_branch
        %136 = sbr.rel (%p134) target = $region16
      $region15: #{spectral_transform.10} parent=11 // pred_region
        _
      $region16: #{spectral_transform.10} parent=11 // pred_fallthru
        _
      // Predicated region
      $region17: #{spectral_transform.10} parent=11 // pred_check
        %p137 = pneg %p91
      $region18: #{spectral_transform.10} parent=11 // pred_check_branch
        %139 = sbr.rel (%p137) target = $region20
      $region19: #{spectral_transform.10} parent=11 // pred_region
        _
      $region20: #{spectral_transform.10} parent=11 // pred_fallthru
        _
    $region12: #{spectral_transform.10} parent=5 // pred_fallthru
      _
    %p140 = scmp.lt.s32.totalorder %s9, 2
    // Predicated region
    $region21: #{spectral_transform.10} parent=5 // pred_check
      %p141 = pneg %p140
    $region22: #{spectral_transform.10} parent=5 // pred_check_branch
      %143 = sbr.rel (%p141) target = $region24
    $region23: #{spectral_transform.10} parent=5 // pred_region
      // Predicated region
      $region25: #{spectral_transform.10} parent=23 // pred_check
        %p144 = pneg %p43
      $region26: #{spectral_transform.10} parent=23 // pred_check_branch
        %146 = sbr.rel (%p144) target = $region28
      $region27: #{spectral_transform.10} parent=23 // pred_region
        %s147 = smul.u32 2, %s17
        %p148 = scmp.lt.s32.totalorder %s16, 1
        %s149 = scalar_select %p148, %s16, 1
        %p150 = scmp.lt.s32.totalorder %s147, 1
        %s151 = scalar_select %p150, %s147, 1
        %s152 = smul.addr %s149, 2
        %s153 = sadd.s32 %s151, %s152
        %s154 = smul.addr %s153, 4
        %s155 = scalar_lea.vmem %s0, %s154
        %s156 = smul.u32 2, %s17
      $region28: #{spectral_transform.10} parent=23 // pred_fallthru
        _
    $region24: #{spectral_transform.10} parent=5 // pred_fallthru
      _
    %p157 = scmp.le.s32.totalorder 1, %s9
    %p158 = scmp.lt.s32.totalorder %s9, 3
    %p159 = pnand %p157, %p158
    %p160 = pneg %p159
    // Predicated region
    $region29: #{spectral_transform.10} parent=5 // pred_check
      _
    $region30: #{spectral_transform.10} parent=5 // pred_check_branch
      %162 = sbr.rel (%p159) target = $region32
    $region31: #{spectral_transform.10} parent=5 // pred_region
      %s163 = ssub.s32 %s9, 1
      %s164 = smul.u32 2, %s19
      %p165 = scmp.lt.s32.totalorder %s18, 1
      %s166 = scalar_select %p165, %s18, 1
      %p167 = scmp.lt.s32.totalorder %s164, 1
      %s168 = scalar_select %p167, %s164, 1
      %s169 = smul.addr %s166, 2
      %s170 = sadd.s32 %s168, %s169
      %s171 = smul.addr %s170, 4
      %s172 = scalar_lea.vmem %s0, %s171
      %p173 = pneg %p49
      %p174 = pneg %p46
      %p175 = pneg %p70
      %p176 = pneg %p67
      %p177 = pneg %p91
      %p178 = pneg %p88
      %p179 = pneg %p119
      %p180 = pneg %p116
      %s181 = smul.u32 2, %s19
      %p182 = scmp.lt.s32.totalorder %s18, 1
      %s183 = scalar_select %p182, %s18, 1
      %p184 = scmp.lt.s32.totalorder %s181, 1
      %s185 = scalar_select %p184, %s181, 1
      %s186 = smul.addr %s183, 2
      %s187 = sadd.s32 %s185, %s186
      %s188 = smul.addr %s187, 4
      %s189 = scalar_lea.vmem %s3, %s188
      %s190 = smul.u32 2, %s19
      %p191 = scmp.lt.s32.totalorder %s18, 1
      %s192 = scalar_select %p191, %s18, 1
      %p193 = scmp.lt.s32.totalorder %s190, 1
      %s194 = scalar_select %p193, %s190, 1
      %s195 = smul.addr %s192, 2
      %s196 = sadd.s32 %s194, %s195
      %s197 = smul.addr %s196, 4
      %s198 = scalar_lea.vmem %s0, %s197
      %s199 = smul.u32 2, %s19
      %s200 = smul.u32 2, %s19
      %p201 = scmp.lt.s32.totalorder %s18, 1
      %s202 = scalar_select %p201, %s18, 1
      %p203 = scmp.lt.s32.totalorder %s200, 1
      %s204 = scalar_select %p203, %s200, 1
      %s205 = smul.addr %s202, 2
      %s206 = sadd.s32 %s204, %s205
      %s207 = smul.addr %s206, 4
      %s208 = scalar_lea.vmem %s3, %s207
      %s209 = smul.u32 2, %s19
      %v210 = vld [vmem:[%s198] sm:$0xff]
      %v211 = vunpack.c.l.bf16 %v210
      %v212 = vunpack.c.h.bf16 %v210
      %v213 = vld [vmem:[%s1] sm:$0xff]
      %215 = vset.pattern.permute.xlu0 0
      %216 = vperm.xlu0 %215, %v213
      %v217 = vpop.permute.xlu0 %216
      %v219 = vmul.f32 %v211, %v217
      %v220 = vmul.f32 %v212, %v217
      %v221 = vld [vmem:[%s2] sm:$0xff]
      %223 = vset.pattern.permute.xlu0 0
      %224 = vperm.xlu0 %223, %v221
      %v225 = vpop.permute.xlu0 %224
      %v227 = vadd.f32 %v219, %v225
      %v228 = vadd.f32 %v220, %v225
      %v229 = vmax.f32 %v227, 0.0
      %v230 = vmax.f32 %v228, 0.0
      %v231 = vpack.c.bf16 %v229, %v229
      %v232 = vpack.c.bf16 %v230, %v230
      %v235 = vunpack.c.l.b16 %v231
      %v236 = vunpack.c.l.b16 %v232
      %v237 = vpack.c.b16 %v236, %v235
      %239 = vst [vmem:[%s208] sm:$0xff] %v237
      %s240 = smul.u32 2, %s19
      %p241 = scmp.lt.s32.totalorder %s18, 1
      %s242 = scalar_select %p241, %s18, 1
      %p243 = scmp.lt.s32.totalorder %s240, 1
      %s244 = scalar_select %p243, %s240, 1
      %s245 = smul.addr %s242, 2
      %s246 = sadd.s32 %s244, %s245
      %s247 = smul.addr %s246, 4
      %s248 = scalar_lea.vmem %s3, %s247
      // Predicated region
      $region33: #{spectral_transform.10} parent=31 // pred_check
        %p249 = pneg %p116
      $region34: #{spectral_transform.10} parent=31 // pred_check_branch
        %251 = sbr.rel (%p249) target = $region36
      $region35: #{spectral_transform.10} parent=31 // pred_region
        %s252 = smul.u32 2, %s19
      $region36: #{spectral_transform.10} parent=31 // pred_fallthru
        _
    $region32: #{spectral_transform.10} parent=5 // pred_fallthru
      _
    %p253 = scmp.le.s32.totalorder 2, %s9
    // Predicated region
    $region37: #{spectral_transform.10} parent=5 // pred_check
      %p254 = pneg %p253
    $region38: #{spectral_transform.10} parent=5 // pred_check_branch
      %256 = sbr.rel (%p254) target = $region40
    $region39: #{spectral_transform.10} parent=5 // pred_region
      %s257 = ssub.s32 %s9, 2
      // Predicated region
      $region41: #{spectral_transform.10} parent=39 // pred_check
        %p258 = pneg %p122
      $region42: #{spectral_transform.10} parent=39 // pred_check_branch
        %260 = sbr.rel (%p258) target = $region44
      $region43: #{spectral_transform.10} parent=39 // pred_region
        %s261 = smul.u32 2, %s21
        %p262 = scmp.lt.s32.totalorder %s20, 1
        %s263 = scalar_select %p262, %s20, 1
        %p264 = scmp.lt.s32.totalorder %s261, 1
        %s265 = scalar_select %p264, %s261, 1
        %s266 = smul.addr %s263, 2
        %s267 = sadd.s32 %s265, %s266
        %s268 = smul.addr %s267, 4
        %s269 = scalar_lea.vmem %s3, %s268
      $region44: #{spectral_transform.10} parent=39 // pred_fallthru
        _
    $region40: #{spectral_transform.10} parent=5 // pred_fallthru
      _
  $region6: #{spectral_transform.10} parent=0 // loop_footer
    %s13 = sadd.s32 1, %s9
  $region7: #{spectral_transform.10} parent=0 // loop_footer_branch
    %8 = sbr.rel target = $region3
  $region8: #{spectral_transform.10} parent=0 // loop_exit
    _

// kernel: reverse.0
$region0: #{reverse.0}
  %s0 = inlined_call_operand.vmem [shape: f32[2,4,16,7], index: 0, kind: input, shape index: {}]
  %s1 = inlined_call_operand.vmem [shape: f32[2,4,16,7], index: 1, kind: output, shape index: {}]
  $region1: #{reverse.0} parent=0
    #allocation0 [shape = 'u8[65536]{0}', space=vmem, size = 0x10000, scoped, tag = 'operand span for operand 0']
    #allocation1 [shape = 'u8[32768]{0}', space=vmem, size = 0x8000, scoped, tag = 'operand span for operand 1']
    %s2 = scalar_lea.vmem [#allocation0], 8
    // Predicated region
    $region2: #{reverse.0} parent=1 // pred_check
      _
    $region3: #{reverse.0} parent=1 // pred_check_branch
      %4 = sbr.rel (0) target = $region5
    $region4: #{reverse.0} parent=1 // pred_region
      // Predicated region
      $region6: #{reverse.0} parent=4 // pred_check
        _
      $region7: #{reverse.0} parent=4 // pred_check_branch
        %6 = sbr.rel (0) target = $region9
      $region8: #{reverse.0} parent=4 // pred_region
        // Predicated region
        $region21: #{reverse.0} parent=8 // pred_check
          _
        $region22: #{reverse.0} parent=8 // pred_check_branch
          %35 = sbr.rel (0) target = $region24
        $region23: #{reverse.0} parent=8 // pred_region
          loop: start=0, step=1, limit=1
          $region25: #{reverse.0} parent=23 // loop_pre_header
            _
          $region26: #{reverse.0} parent=23 // loop_header
            %s37 = sphi 0, %s41
            %p38 = scmp.ge.s32.totalorder %s37, 1
            %s42 = sphi %s0, %s0
            %s43 = sphi %s2, %s2
          $region27: #{reverse.0} parent=23 // loop_header_branch
            %40 = sbr.rel (%p38) target = $region31
          $region28: #{reverse.0} parent=23 // loop_body
            %v44 = vld [vmem:[%s42] sm:$0xff]
            %45 = vst [vmem:[%s43] sm:$0xff] %v44
            %v46 = vld [vmem:[%s42 + $0x8] sm:$0xff]
            %47 = vst [vmem:[%s43 + $0x10] sm:$0xff] %v46
            %v48 = vld [vmem:[%s42 + $0x10] sm:$0xff]
            %49 = vst [vmem:[%s43 + $0x20] sm:$0xff] %v48
            %v50 = vld [vmem:[%s42 + $0x18] sm:$0xff]
            %51 = vst [vmem:[%s43 + $0x30] sm:$0xff] %v50
            %v52 = vld [vmem:[%s42 + $0x20] sm:$0xff]
            %53 = vst [vmem:[%s43 + $0x40] sm:$0xff] %v52
            %v54 = vld [vmem:[%s42 + $0x28] sm:$0xff]
            %55 = vst [vmem:[%s43 + $0x50] sm:$0xff] %v54
            %v56 = vld [vmem:[%s42 + $0x30] sm:$0xff]
            %57 = vst [vmem:[%s43 + $0x60] sm:$0xff] %v56
            %v58 = vld [vmem:[%s42 + $0x38] sm:$0xff]
            %59 = vst [vmem:[%s43 + $0x70] sm:$0xff] %v58
          $region29: #{reverse.0} parent=23 // loop_footer
            %s41 = sadd.s32 1, %s37
          $region30: #{reverse.0} parent=23 // loop_footer_branch
            %36 = sbr.rel target = $region26
          $region31: #{reverse.0} parent=23 // loop_exit
            _
        $region24: #{reverse.0} parent=8 // pred_fallthru
          _
        // Predicated region
        $region32: #{reverse.0} parent=8 // pred_check
          _
        $region33: #{reverse.0} parent=8 // pred_check_branch
          %61 = sbr.rel target = $region35
        $region34: #{reverse.0} parent=8 // pred_region
          _
        $region35: #{reverse.0} parent=8 // pred_fallthru
          _
      $region9: #{reverse.0} parent=4 // pred_fallthru
        _
      // Predicated region
      $region10: #{reverse.0} parent=4 // pred_check
        _
      $region11: #{reverse.0} parent=4 // pred_check_branch
        %8 = sbr.rel target = $region13
      $region12: #{reverse.0} parent=4 // pred_region
        loop: start=0, step=1, limit=1
        $region14: #{reverse.0} parent=12 // loop_pre_header
          _
        $region15: #{reverse.0} parent=12 // loop_header
          %s11 = sphi 0, %s15
          %p12 = scmp.ge.s32.totalorder %s11, 1
          %s16 = sphi %s0, %s0
          %s17 = sphi %s2, %s2
        $region16: #{reverse.0} parent=12 // loop_header_branch
          %14 = sbr.rel (%p12) target = $region20
        $region17: #{reverse.0} parent=12 // loop_body
          %v18 = vld [vmem:[%s16] sm:$0xff]
          %19 = vst [vmem:[%s17] sm:$0xff] %v18
          %v20 = vld [vmem:[%s16 + $0x8] sm:$0xff]
          %21 = vst [vmem:[%s17 + $0x10] sm:$0xff] %v20
          %v22 = vld [vmem:[%s16 + $0x10] sm:$0xff]
          %23 = vst [vmem:[%s17 + $0x20] sm:$0xff] %v22
          %v24 = vld [vmem:[%s16 + $0x18] sm:$0xff]
          %25 = vst [vmem:[%s17 + $0x30] sm:$0xff] %v24
          %v26 = vld [vmem:[%s16 + $0x20] sm:$0xff]
          %27 = vst [vmem:[%s17 + $0x40] sm:$0xff] %v26
          %v28 = vld [vmem:[%s16 + $0x28] sm:$0xff]
          %29 = vst [vmem:[%s17 + $0x50] sm:$0xff] %v28
          %v30 = vld [vmem:[%s16 + $0x30] sm:$0xff]
          %31 = vst [vmem:[%s17 + $0x60] sm:$0xff] %v30
          %v32 = vld [vmem:[%s16 + $0x38] sm:$0xff]
          %33 = vst [vmem:[%s17 + $0x70] sm:$0xff] %v32
        $region18: #{reverse.0} parent=12 // loop_footer
          %s15 = sadd.s32 1, %s11
        $region19: #{reverse.0} parent=12 // loop_footer_branch
          %10 = sbr.rel target = $region15
        $region20: #{reverse.0} parent=12 // loop_exit
          _
      $region13: #{reverse.0} parent=4 // pred_fallthru
        _
    $region5: #{reverse.0} parent=1 // pred_fallthru
      _
    %62 = vnop
    %s63 = scalar_lea.vmem [#allocation0], 7
    %v64 = vld [vmem:[%s63] ss:$-1 sm:$0xff]
    %v65 = vrot.slane %v64, 1
    %66 = vst [vmem:[#allocation1] sm:$0xff] %v65
    %s67 = scalar_lea.vmem [#allocation0], 8
    %s68 = scalar_lea.vmem %s67, 7 [#allocation0]
    %v69 = vld [vmem:[%s68] ss:$-1 sm:$0xff]
    %v70 = vrot.slane %v69, 1
    %v71 = vlaneseq
    %v72 = vshrl.u32 %v71, 7
    %vm73 = vcmp.lt.s32.totalorder %v72, 7
    %74 = vst.msk [vmem:[#allocation1] sm:$0xff] %vm73, %v70
    %s75 = scalar_lea.vmem [#allocation1], 8
    %s76 = scalar_lea.vmem [#allocation0], 16
    %s77 = scalar_lea.vmem %s76, 7 [#allocation0]
    %v78 = vld [vmem:[%s77] ss:$-1 sm:$0xff]
    %v79 = vrot.slane %v78, 1
    %80 = vst [vmem:[%s75] sm:$0xff] %v79
    %s81 = scalar_lea.vmem %s76, 8 [#allocation0]
    %s82 = scalar_lea.vmem %s81, 7 [#allocation0]
    %v83 = vld [vmem:[%s82] ss:$-1 sm:$0xff]
    %v84 = vrot.slane %v83, 1
    %v85 = vlaneseq
    %v86 = vshrl.u32 %v85, 7
    %vm87 = vcmp.lt.s32.totalorder %v86, 7
    %88 = vst.msk [vmem:[%s75] sm:$0xff] %vm87, %v84
    %s89 = scalar_lea.vmem [#allocation1], 16
    %s90 = scalar_lea.vmem [#allocation0], 32
    %s91 = scalar_lea.vmem %s90, 7 [#allocation0]
    %v92 = vld [vmem:[%s91] ss:$-1 sm:$0xff]
    %v93 = vrot.slane %v92, 1
    %94 = vst [vmem:[%s89] sm:$0xff] %v93
    %s95 = scalar_lea.vmem %s90, 8 [#allocation0]
    %s96 = scalar_lea.vmem %s95, 7 [#allocation0]
    %v97 = vld [vmem:[%s96] ss:$-1 sm:$0xff]
    %v98 = vrot.slane %v97, 1
    %v99 = vlaneseq
    %v100 = vshrl.u32 %v99, 7
    %vm101 = vcmp.lt.s32.totalorder %v100, 7
    %102 = vst.msk [vmem:[%s89] sm:$0xff] %vm101, %v98
    %s103 = scalar_lea.vmem [#allocation1], 24
    %s104 = scalar_lea.vmem [#allocation0], 48
    %s105 = scalar_lea.vmem %s104, 7 [#allocation0]
    %v106 = vld [vmem:[%s105] ss:$-1 sm:$0xff]
    %v107 = vrot.slane %v106, 1
    %108 = vst [vmem:[%s103] sm:$0xff] %v107
    %s109 = scalar_lea.vmem %s104, 8 [#allocation0]
    %s110 = scalar_lea.vmem %s109, 7 [#allocation0]
    %v111 = vld [vmem:[%s110] ss:$-1 sm:$0xff]
    %v112 = vrot.slane %v111, 1
    %v113 = vlaneseq
    %v114 = vshrl.u32 %v113, 7
    %vm115 = vcmp.lt.s32.totalorder %v114, 7
    %116 = vst.msk [vmem:[%s103] sm:$0xff] %vm115, %v112
    %s117 = scalar_lea.vmem [#allocation1], 32
    %s118 = scalar_lea.vmem [#allocation0], 64
    %s119 = scalar_lea.vmem %s118, 7 [#allocation0]
    %v120 = vld [vmem:[%s119] ss:$-1 sm:$0xff]
    %v121 = vrot.slane %v120, 1
    %122 = vst [vmem:[%s117] sm:$0xff] %v121
    %s123 = scalar_lea.vmem %s118, 8 [#allocation0]
    %s124 = scalar_lea.vmem %s123, 7 [#allocation0]
    %v125 = vld [vmem:[%s124] ss:$-1 sm:$0xff]
    %v126 = vrot.slane %v125, 1
    %v127 = vlaneseq
    %v128 = vshrl.u32 %v127, 7
    %vm129 = vcmp.lt.s32.totalorder %v128, 7
    %130 = vst.msk [vmem:[%s117] sm:$0xff] %vm129, %v126
    %s131 = scalar_lea.vmem [#allocation1], 40
    %s132 = scalar_lea.vmem [#allocation0], 80
    %s133 = scalar_lea.vmem %s132, 7 [#allocation0]
    %v134 = vld [vmem:[%s133] ss:$-1 sm:$0xff]
    %v135 = vrot.slane %v134, 1
    %136 = vst [vmem:[%s131] sm:$0xff] %v135
    %s137 = scalar_lea.vmem %s132, 8 [#allocation0]
    %s138 = scalar_lea.vmem %s137, 7 [#allocation0]
    %v139 = vld [vmem:[%s138] ss:$-1 sm:$0xff]
    %v140 = vrot.slane %v139, 1
    %v141 = vlaneseq
    %v142 = vshrl.u32 %v141, 7
    %vm143 = vcmp.lt.s32.totalorder %v142, 7
    %144 = vst.msk [vmem:[%s131] sm:$0xff] %vm143, %v140
    %s145 = scalar_lea.vmem [#allocation1], 48
    %s146 = scalar_lea.vmem [#allocation0], 96
    %s147 = scalar_lea.vmem %s146, 7 [#allocation0]
    %v148 = vld [vmem:[%s147] ss:$-1 sm:$0xff]
    %v149 = vrot.slane %v148, 1
    %150 = vst [vmem:[%s145] sm:$0xff] %v149
    %s151 = scalar_lea.vmem %s146, 8 [#allocation0]
    %s152 = scalar_lea.vmem %s151, 7 [#allocation0]
    %v153 = vld [vmem:[%s152] ss:$-1 sm:$0xff]
    %v154 = vrot.slane %v153, 1
    %v155 = vlaneseq
    %v156 = vshrl.u32 %v155, 7
    %vm157 = vcmp.lt.s32.totalorder %v156, 7
    %158 = vst.msk [vmem:[%s145] sm:$0xff] %vm157, %v154
    %s159 = scalar_lea.vmem [#allocation1], 56
    %s160 = scalar_lea.vmem [#allocation0], 112
    %s161 = scalar_lea.vmem %s160, 7 [#allocation0]
    %v162 = vld [vmem:[%s161] ss:$-1 sm:$0xff]
    %v163 = vrot.slane %v162, 1
    %164 = vst [vmem:[%s159] sm:$0xff] %v163
    %s165 = scalar_lea.vmem %s160, 8 [#allocation0]
    %s166 = scalar_lea.vmem %s165, 7 [#allocation0]
    %v167 = vld [vmem:[%s166] ss:$-1 sm:$0xff]
    %v168 = vrot.slane %v167, 1
    %v169 = vlaneseq
    %v170 = vshrl.u32 %v169, 7
    %vm171 = vcmp.lt.s32.totalorder %v170, 7
    %172 = vst.msk [vmem:[%s159] sm:$0xff] %vm171, %v168
    // Predicated region
    $region36: #{reverse.0} parent=1 // pred_check
      _
    $region37: #{reverse.0} parent=1 // pred_check_branch
      %174 = sbr.rel (0) target = $region39
    $region38: #{reverse.0} parent=1 // pred_region
      // Predicated region
      $region40: #{reverse.0} parent=38 // pred_check
        _
      $region41: #{reverse.0} parent=38 // pred_check_branch
        %176 = sbr.rel (0) target = $region43
      $region42: #{reverse.0} parent=38 // pred_region
        // Predicated region
        $region55: #{reverse.0} parent=42 // pred_check
          _
        $region56: #{reverse.0} parent=42 // pred_check_branch
          %205 = sbr.rel (0) target = $region58
        $region57: #{reverse.0} parent=42 // pred_region
          loop: start=0, step=1, limit=1
          $region59: #{reverse.0} parent=57 // loop_pre_header
            _
          $region60: #{reverse.0} parent=57 // loop_header
            %s207 = sphi 0, %s211
            %p208 = scmp.ge.s32.totalorder %s207, 1
            %s212 = sphi [#allocation1], [#allocation1]
            %s213 = sphi %s1, %s1
          $region61: #{reverse.0} parent=57 // loop_header_branch
            %210 = sbr.rel (%p208) target = $region65
          $region62: #{reverse.0} parent=57 // loop_body
            %v214 = vld [vmem:[%s212] sm:$0xff]
            %215 = vst [vmem:[%s213] sm:$0xff] %v214
            %v216 = vld [vmem:[%s212 + $0x8] sm:$0xff]
            %217 = vst [vmem:[%s213 + $0x8] sm:$0xff] %v216
            %v218 = vld [vmem:[%s212 + $0x10] sm:$0xff]
            %219 = vst [vmem:[%s213 + $0x10] sm:$0xff] %v218
            %v220 = vld [vmem:[%s212 + $0x18] sm:$0xff]
            %221 = vst [vmem:[%s213 + $0x18] sm:$0xff] %v220
            %v222 = vld [vmem:[%s212 + $0x20] sm:$0xff]
            %223 = vst [vmem:[%s213 + $0x20] sm:$0xff] %v222
            %v224 = vld [vmem:[%s212 + $0x28] sm:$0xff]
            %225 = vst [vmem:[%s213 + $0x28] sm:$0xff] %v224
            %v226 = vld [vmem:[%s212 + $0x30] sm:$0xff]
            %227 = vst [vmem:[%s213 + $0x30] sm:$0xff] %v226
            %v228 = vld [vmem:[%s212 + $0x38] sm:$0xff]
            %229 = vst [vmem:[%s213 + $0x38] sm:$0xff] %v228
          $region63: #{reverse.0} parent=57 // loop_footer
            %s211 = sadd.s32 1, %s207
          $region64: #{reverse.0} parent=57 // loop_footer_branch
            %206 = sbr.rel target = $region60
          $region65: #{reverse.0} parent=57 // loop_exit
            _
        $region58: #{reverse.0} parent=42 // pred_fallthru
          _
        // Predicated region
        $region66: #{reverse.0} parent=42 // pred_check
          _
        $region67: #{reverse.0} parent=42 // pred_check_branch
          %231 = sbr.rel target = $region69
        $region68: #{reverse.0} parent=42 // pred_region
          _
        $region69: #{reverse.0} parent=42 // pred_fallthru
          _
      $region43: #{reverse.0} parent=38 // pred_fallthru
        _
      // Predicated region
      $region44: #{reverse.0} parent=38 // pred_check
        _
      $region45: #{reverse.0} parent=38 // pred_check_branch
        %178 = sbr.rel target = $region47
      $region46: #{reverse.0} parent=38 // pred_region
        loop: start=0, step=1, limit=1
        $region48: #{reverse.0} parent=46 // loop_pre_header
          _
        $region49: #{reverse.0} parent=46 // loop_header
          %s181 = sphi 0, %s185
          %p182 = scmp.ge.s32.totalorder %s181, 1
          %s186 = sphi [#allocation1], [#allocation1]
          %s187 = sphi %s1, %s1
        $region50: #{reverse.0} parent=46 // loop_header_branch
          %184 = sbr.rel (%p182) target = $region54
        $region51: #{reverse.0} parent=46 // loop_body
          %v188 = vld [vmem:[%s186] sm:$0xff]
          %189 = vst [vmem:[%s187] sm:$0xff] %v188
          %v190 = vld [vmem:[%s186 + $0x8] sm:$0xff]
          %191 = vst [vmem:[%s187 + $0x8] sm:$0xff] %v190
          %v192 = vld [vmem:[%s186 + $0x10] sm:$0xff]
          %193 = vst [vmem:[%s187 + $0x10] sm:$0xff] %v192
          %v194 = vld [vmem:[%s186 + $0x18] sm:$0xff]
          %195 = vst [vmem:[%s187 + $0x18] sm:$0xff] %v194
          %v196 = vld [vmem:[%s186 + $0x20] sm:$0xff]
          %197 = vst [vmem:[%s187 + $0x20] sm:$0xff] %v196
          %v198 = vld [vmem:[%s186 + $0x28] sm:$0xff]
          %199 = vst [vmem:[%s187 + $0x28] sm:$0xff] %v198
          %v200 = vld [vmem:[%s186 + $0x30] sm:$0xff]
          %201 = vst [vmem:[%s187 + $0x30] sm:$0xff] %v200
          %v202 = vld [vmem:[%s186 + $0x38] sm:$0xff]
          %203 = vst [vmem:[%s187 + $0x38] sm:$0xff] %v202
        $region52: #{reverse.0} parent=46 // loop_footer
          %s185 = sadd.s32 1, %s181
        $region53: #{reverse.0} parent=46 // loop_footer_branch
          %180 = sbr.rel target = $region49
        $region54: #{reverse.0} parent=46 // loop_exit
          _
      $region47: #{reverse.0} parent=38 // pred_fallthru
        _
    $region39: #{reverse.0} parent=1 // pred_fallthru
      _
    %232 = vnop

// kernel: spectral_transform.13
$region0: #{spectral_transform.13}
  #allocation0 [shape = 'u32[]', space=smem, size = 0x4, offset = 0x4, fixed_abs, tag = 'smem constant byte address 0x4 - core index']
  #allocation1 [shape = 'u32[144,128]{1,0:T(1,128)}', space=vmem, size = 0x12000, scoped, tag = 'internal scratch']
  %s0 = inlined_call_operand.vmem [shape: bf16[2,4,256], index: 0, kind: input, shape index: {}]
  %s1 = inlined_call_operand.vmem [shape: bf16[2,4,256], index: 1, kind: input, shape index: {}]
  %s2 = inlined_call_operand.vmem [shape: bf16[2,4,256], index: 2, kind: input, shape index: {}]
  %s3 = inlined_call_operand.vmem [shape: bf16[8,4], index: 3, kind: input, shape index: {}]
  %s4 = inlined_call_operand.vmem [shape: f32[2,8,256], index: 4, kind: output, shape index: {}]
  %s5 = sld [smem:[#allocation0]]
  $region49: #{spectral_transform.13} parent=0
    _
  %s7 = ssub.s32 1, %s5
  %s8 = scalar_select 0, %s7, %s5
  loop: start=0, step=1, limit=4
  $region2: #{spectral_transform.13} parent=0 // loop_pre_header
    _
  $region3: #{spectral_transform.13} parent=0 // loop_header
    %s10 = sphi 0, %s14
    %p11 = scmp.ge.s32.totalorder %s10, 4
    %s17 = sphi 0, %s29
    %s18 = sphi 0, %s25
    %s19 = sphi 0, %s17
    %s20 = sphi 0, %s18
    %s21 = sphi 0, %s19
    %s22 = sphi 0, %s20
    %s34 = sphi 0, %s36
    %s37 = sphi 0, %s34
    %s38 = sphi 0, %s37
    %s54 = sphi 0, %s38
    %s62 = sphi 0, %s64
    %s65 = sphi 0, %s62
    %s66 = sphi 0, %s65
    %s82 = sphi 0, %s66
    %s90 = sphi 0, %s92
    %s93 = sphi 0, %s90
    %s94 = sphi 0, %s93
    %s110 = sphi 0, %s94
    %s114 = sphi 0, %s114
    %s116 = sphi 0, %s114
    %s117 = sphi 0, %s116
    %s131 = sphi 0, %s117
    %s139 = sphi 0, %s141
    %s142 = sphi 0, %s139
    %s143 = sphi 0, %s142
    %s159 = sphi 0, %s143
  $region4: #{spectral_transform.13} parent=0 // loop_header_branch
    %13 = sbr.rel (%p11) target = $region8
  $region5: #{spectral_transform.13} parent=0 // loop_body
    %s15 = ssub.s32 %s10, 1
    %s16 = ssub.s32 %s10, 2
    %s23 = sadd.s32 1, %s18
    %p24 = scmp.ge.s32.totalorder %s23, 1
    %s25 = scalar_select %p24, 0, %s23
    %s26 = sadd.s32 1, %s17
    %s27 = scalar_select %p24, %s26, %s17
    %p28 = scmp.ge.s32.totalorder %s27, 2
    %s29 = scalar_select %p28, 0, %s27
    %s30 = ssub.s32 %s17, %s29
    %s31 = ssub.s32 %s18, %s25
    %s32 = sor.u32 %s30, %s31
    %p33 = scmp.eq.s32.totalorder %s32, 0
    %s35 = sadd.s32 %s34, 1
    %s36 = scalar_select %p33, %s34, %s35
    %p39 = pneg %p33
    %p40 = scmp.eq.s32.totalorder %s10, 1
    %p41 = por %p39, %p40
    %p42 = scmp.ne.s32.totalorder %s34, %s37
    %p43 = scmp.eq.s32.totalorder %s10, 0
    %p44 = por %p42, %p43
    %p45 = scmp.ne.s32.totalorder %s34, %s37
    %p46 = scmp.eq.s32.totalorder %s15, 1
    %p47 = por %p45, %p46
    %p48 = scmp.ne.s32.totalorder %s37, %s38
    %p49 = scmp.eq.s32.totalorder %s15, 0
    %p50 = por %p48, %p49
    %p51 = scmp.ne.s32.totalorder %s37, %s38
    %p52 = scmp.eq.s32.totalorder %s16, 1
    %p53 = por %p51, %p52
    %p55 = scmp.ne.s32.totalorder %s38, %s54
    %p56 = scmp.eq.s32.totalorder %s16, 0
    %p57 = por %p55, %p56
    %s58 = ssub.s32 %s17, %s29
    %s59 = ssub.s32 %s18, %s25
    %s60 = sor.u32 %s58, %s59
    %p61 = scmp.eq.s32.totalorder %s60, 0
    %s63 = sadd.s32 %s62, 1
    %s64 = scalar_select %p61, %s62, %s63
    %p67 = pneg %p61
    %p68 = scmp.eq.s32.totalorder %s10, 1
    %p69 = por %p67, %p68
    %p70 = scmp.ne.s32.totalorder %s62, %s65
    %p71 = scmp.eq.s32.totalorder %s10, 0
    %p72 = por %p70, %p71
    %p73 = scmp.ne.s32.totalorder %s62, %s65
    %p74 = scmp.eq.s32.totalorder %s15, 1
    %p75 = por %p73, %p74
    %p76 = scmp.ne.s32.totalorder %s65, %s66
    %p77 = scmp.eq.s32.totalorder %s15, 0
    %p78 = por %p76, %p77
    %p79 = scmp.ne.s32.totalorder %s65, %s66
    %p80 = scmp.eq.s32.totalorder %s16, 1
    %p81 = por %p79, %p80
    %p83 = scmp.ne.s32.totalorder %s66, %s82
    %p84 = scmp.eq.s32.totalorder %s16, 0
    %p85 = por %p83, %p84
    %s86 = ssub.s32 %s17, %s29
    %s87 = ssub.s32 %s18, %s25
    %s88 = sor.u32 %s86, %s87
    %p89 = scmp.eq.s32.totalorder %s88, 0
    %s91 = sadd.s32 %s90, 1
    %s92 = scalar_select %p89, %s90, %s91
    %p95 = pneg %p89
    %p96 = scmp.eq.s32.totalorder %s10, 1
    %p97 = por %p95, %p96
    %p98 = scmp.ne.s32.totalorder %s90, %s93
    %p99 = scmp.eq.s32.totalorder %s10, 0
    %p100 = por %p98, %p99
    %p101 = scmp.ne.s32.totalorder %s90, %s93
    %p102 = scmp.eq.s32.totalorder %s15, 1
    %p103 = por %p101, %p102
    %p104 = scmp.ne.s32.totalorder %s93, %s94
    %p105 = scmp.eq.s32.totalorder %s15, 0
    %p106 = por %p104, %p105
    %p107 = scmp.ne.s32.totalorder %s93, %s94
    %p108 = scmp.eq.s32.totalorder %s16, 1
    %p109 = por %p107, %p108
    %p111 = scmp.ne.s32.totalorder %s94, %s110
    %p112 = scmp.eq.s32.totalorder %s16, 0
    %p113 = por %p111, %p112
    %s115 = sadd.s32 %s114, 1
    %p118 = scmp.eq.s32.totalorder %s10, 1
    %p119 = scmp.ne.s32.totalorder %s114, %s116
    %p120 = scmp.eq.s32.totalorder %s10, 0
    %p121 = por %p119, %p120
    %p122 = scmp.ne.s32.totalorder %s114, %s116
    %p123 = scmp.eq.s32.totalorder %s15, 1
    %p124 = por %p122, %p123
    %p125 = scmp.ne.s32.totalorder %s116, %s117
    %p126 = scmp.eq.s32.totalorder %s15, 0
    %p127 = por %p125, %p126
    %p128 = scmp.ne.s32.totalorder %s116, %s117
    %p129 = scmp.eq.s32.totalorder %s16, 1
    %p130 = por %p128, %p129
    %p132 = scmp.ne.s32.totalorder %s117, %s131
    %p133 = scmp.eq.s32.totalorder %s16, 0
    %p134 = por %p132, %p133
    %s135 = ssub.s32 %s17, %s29
    %s136 = ssub.s32 %s18, %s25
    %s137 = sor.u32 %s135, %s136
    %p138 = scmp.eq.s32.totalorder %s137, 0
    %s140 = sadd.s32 %s139, 1
    %s141 = scalar_select %p138, %s139, %s140
    %p144 = pneg %p138
    %p145 = scmp.eq.s32.totalorder %s10, 1
    %p146 = por %p144, %p145
    %p147 = scmp.ne.s32.totalorder %s139, %s142
    %p148 = scmp.eq.s32.totalorder %s10, 0
    %p149 = por %p147, %p148
    %p150 = scmp.ne.s32.totalorder %s139, %s142
    %p151 = scmp.eq.s32.totalorder %s15, 1
    %p152 = por %p150, %p151
    %p153 = scmp.ne.s32.totalorder %s142, %s143
    %p154 = scmp.eq.s32.totalorder %s15, 0
    %p155 = por %p153, %p154
    %p156 = scmp.ne.s32.totalorder %s142, %s143
    %p157 = scmp.eq.s32.totalorder %s16, 1
    %p158 = por %p156, %p157
    %p160 = scmp.ne.s32.totalorder %s143, %s159
    %p161 = scmp.eq.s32.totalorder %s16, 0
    %p162 = por %p160, %p161
    %p163 = scmp.le.s32.totalorder 1, %s10
    %p164 = scmp.lt.s32.totalorder %s10, 3
    %p165 = pnand %p163, %p164
    %p166 = pneg %p165
    // Predicated region
    $region9: #{spectral_transform.13} parent=5 // pred_check
      _
    $region10: #{spectral_transform.13} parent=5 // pred_check_branch
      %168 = sbr.rel (%p165) target = $region12
    $region11: #{spectral_transform.13} parent=5 // pred_region
      %s169 = ssub.s32 %s10, 1
      // Predicated region
      $region13: #{spectral_transform.13} parent=11 // pred_check
        %p170 = pneg %p127
      $region14: #{spectral_transform.13} parent=11 // pred_check_branch
        %172 = sbr.rel (%p170) target = $region16
      $region15: #{spectral_transform.13} parent=11 // pred_region
        _
      $region16: #{spectral_transform.13} parent=11 // pred_fallthru
        _
    $region12: #{spectral_transform.13} parent=5 // pred_fallthru
      _
    %p173 = scmp.lt.s32.totalorder %s10, 2
    // Predicated region
    $region17: #{spectral_transform.13} parent=5 // pred_check
      %p174 = pneg %p173
    $region18: #{spectral_transform.13} parent=5 // pred_check_branch
      %176 = sbr.rel (%p174) target = $region20
    $region19: #{spectral_transform.13} parent=5 // pred_region
      // Predicated region
      $region21: #{spectral_transform.13} parent=19 // pred_check
        %p177 = pneg %p44
      $region22: #{spectral_transform.13} parent=19 // pred_check_branch
        %179 = sbr.rel (%p177) target = $region24
      $region23: #{spectral_transform.13} parent=19 // pred_region
        %s180 = smul.u32 2, %s18
        %p181 = scmp.lt.s32.totalorder %s17, 1
        %s182 = scalar_select %p181, %s17, 1
        %p183 = scmp.lt.s32.totalorder %s180, 1
        %s184 = scalar_select %p183, %s180, 1
        %s185 = smul.addr %s182, 2
        %s186 = sadd.s32 %s184, %s185
        %s187 = smul.addr %s186, 2
        %s188 = scalar_lea.vmem %s0, %s187
        %s189 = smul.u32 2, %s18
      $region24: #{spectral_transform.13} parent=19 // pred_fallthru
        _
      // Predicated region
      $region25: #{spectral_transform.13} parent=19 // pred_check
        %p190 = pneg %p72
      $region26: #{spectral_transform.13} parent=19 // pred_check_branch
        %192 = sbr.rel (%p190) target = $region28
      $region27: #{spectral_transform.13} parent=19 // pred_region
        %s193 = smul.u32 2, %s18
        %p194 = scmp.lt.s32.totalorder %s17, 1
        %s195 = scalar_select %p194, %s17, 1
        %p196 = scmp.lt.s32.totalorder %s193, 1
        %s197 = scalar_select %p196, %s193, 1
        %s198 = smul.addr %s195, 2
        %s199 = sadd.s32 %s197, %s198
        %s200 = smul.addr %s199, 2
        %s201 = scalar_lea.vmem %s1, %s200
        %s202 = smul.u32 2, %s18
      $region28: #{spectral_transform.13} parent=19 // pred_fallthru
        _
      // Predicated region
      $region29: #{spectral_transform.13} parent=19 // pred_check
        %p203 = pneg %p100
      $region30: #{spectral_transform.13} parent=19 // pred_check_branch
        %205 = sbr.rel (%p203) target = $region32
      $region31: #{spectral_transform.13} parent=19 // pred_region
        %s206 = smul.u32 2, %s18
        %p207 = scmp.lt.s32.totalorder %s17, 1
        %s208 = scalar_select %p207, %s17, 1
        %p209 = scmp.lt.s32.totalorder %s206, 1
        %s210 = scalar_select %p209, %s206, 1
        %s211 = smul.addr %s208, 2
        %s212 = sadd.s32 %s210, %s211
        %s213 = smul.addr %s212, 2
        %s214 = scalar_lea.vmem %s2, %s213
        %s215 = smul.u32 2, %s18
      $region32: #{spectral_transform.13} parent=19 // pred_fallthru
        _
    $region20: #{spectral_transform.13} parent=5 // pred_fallthru
      _
    %p216 = scmp.le.s32.totalorder 1, %s10
    %p217 = scmp.lt.s32.totalorder %s10, 3
    %p218 = pnand %p216, %p217
    %p219 = pneg %p218
    // Predicated region
    $region33: #{spectral_transform.13} parent=5 // pred_check
      _
    $region34: #{spectral_transform.13} parent=5 // pred_check_branch
      %221 = sbr.rel (%p218) target = $region36
    $region35: #{spectral_transform.13} parent=5 // pred_region
      %s222 = ssub.s32 %s10, 1
      %s223 = smul.u32 2, %s20
      %p224 = scmp.lt.s32.totalorder %s19, 1
      %s225 = scalar_select %p224, %s19, 1
      %p226 = scmp.lt.s32.totalorder %s223, 1
      %s227 = scalar_select %p226, %s223, 1
      %s228 = smul.addr %s225, 2
      %s229 = sadd.s32 %s227, %s228
      %s230 = smul.addr %s229, 2
      %s231 = scalar_lea.vmem %s0, %s230
      %p232 = pneg %p50
      %p233 = pneg %p47
      %s234 = smul.u32 2, %s20
      %p235 = scmp.lt.s32.totalorder %s19, 1
      %s236 = scalar_select %p235, %s19, 1
      %p237 = scmp.lt.s32.totalorder %s234, 1
      %s238 = scalar_select %p237, %s234, 1
      %s239 = smul.addr %s236, 2
      %s240 = sadd.s32 %s238, %s239
      %s241 = smul.addr %s240, 2
      %s242 = scalar_lea.vmem %s1, %s241
      %p243 = pneg %p78
      %p244 = pneg %p75
      %s245 = smul.u32 2, %s20
      %p246 = scmp.lt.s32.totalorder %s19, 1
      %s247 = scalar_select %p246, %s19, 1
      %p248 = scmp.lt.s32.totalorder %s245, 1
      %s249 = scalar_select %p248, %s245, 1
      %s250 = smul.addr %s247, 2
      %s251 = sadd.s32 %s249, %s250
      %s252 = smul.addr %s251, 2
      %s253 = scalar_lea.vmem %s2, %s252
      %p254 = pneg %p106
      %p255 = pneg %p103
      %p256 = pneg %p127
      %p257 = pneg %p124
      %p258 = pneg %p155
      %p259 = pneg %p152
      %s260 = smul.u32 2, %s20
      %p261 = scmp.lt.s32.totalorder %s19, 1
      %s262 = scalar_select %p261, %s19, 1
      %p263 = scmp.lt.s32.totalorder %s260, 1
      %s264 = scalar_select %p263, %s260, 1
      %s265 = smul.addr %s262, 2
      %s266 = sadd.s32 %s264, %s265
      %s267 = smul.addr %s266, 8
      %s268 = scalar_lea.vmem %s4, %s267
      %s269 = smul.u32 2, %s20
      %p270 = scmp.lt.s32.totalorder %s19, 1
      %s271 = scalar_select %p270, %s19, 1
      %p272 = scmp.lt.s32.totalorder %s269, 1
      %s273 = scalar_select %p272, %s269, 1
      %s274 = smul.addr %s271, 2
      %s275 = sadd.s32 %s273, %s274
      %s276 = smul.addr %s275, 2
      %s277 = scalar_lea.vmem %s0, %s276
      %s278 = smul.u32 2, %s20
      %s279 = smul.u32 2, %s20
      %p280 = scmp.lt.s32.totalorder %s19, 1
      %s281 = scalar_select %p280, %s19, 1
      %p282 = scmp.lt.s32.totalorder %s279, 1
      %s283 = scalar_select %p282, %s279, 1
      %s284 = smul.addr %s281, 2
      %s285 = sadd.s32 %s283, %s284
      %s286 = smul.addr %s285, 2
      %s287 = scalar_lea.vmem %s1, %s286
      %s288 = smul.u32 2, %s20
      %s289 = smul.u32 2, %s20
      %p290 = scmp.lt.s32.totalorder %s19, 1
      %s291 = scalar_select %p290, %s19, 1
      %p292 = scmp.lt.s32.totalorder %s289, 1
      %s293 = scalar_select %p292, %s289, 1
      %s294 = smul.addr %s291, 2
      %s295 = sadd.s32 %s293, %s294
      %s296 = smul.addr %s295, 2
      %s297 = scalar_lea.vmem %s2, %s296
      %s298 = smul.u32 2, %s20
      %s299 = smul.u32 2, %s20
      %p300 = scmp.lt.s32.totalorder %s19, 1
      %s301 = scalar_select %p300, %s19, 1
      %p302 = scmp.lt.s32.totalorder %s299, 1
      %s303 = scalar_select %p302, %s299, 1
      %s304 = smul.addr %s301, 2
      %s305 = sadd.s32 %s303, %s304
      %s306 = smul.addr %s305, 8
      %s307 = scalar_lea.vmem %s4, %s306
      %s308 = smul.u32 2, %s20
      %v310 = vld [vmem:[%s277] sm:$0xf]
      %v311 = vld [vmem:[%s287] sm:$0xf]
      %v312 = vadd.bf16 %v310, %v311
      %v313 = vld [vmem:[%s297] sm:$0xf]
      %v314 = vadd.bf16 %v312, %v313
      %v315 = vld [vmem:[%s3] sm:$0xf]
      %v318 = vunpack.c.l.s4 1983009808
      %v319 = vunpack.c.0.s8 %v318
      %v320 = vlaneseq
      %v321 = vshrl.u32 %v320, 7
      %v322 = vsub.s32 %v319, %v321
      %v323 = vrot.slane %v314, %v322
      %v324 = vcombine.high %v323, %v323
      %vm325 = vcmask 31744
      %v327 = vsel %vm325, %v315, 0
      %vm329 = vcmask 1041408
      %v331 = vsel %vm329, %v323, 0
      %v334 = vsel %vm329, %v324, 0
      %336 = vmatprep.subr.bf16.mxu0 %v334
      %337 = vmatpush1.bf16.msra.mxu0 %v331
      %338 = vmatprep.subr.bf16.mxu0 0
      %339 = vmatpush1.bf16.msra.mxu0 0
      %340 = vmatprep.subr.bf16.mxu0 0
      %341 = vmatpush1.bf16.msra.mxu0 0
      %342 = vmatprep.subr.bf16.mxu0 0
      %343 = vmatpush1.bf16.msra.mxu0 0
      %344 = vmatprep.subr.bf16.mxu0 0
      %345 = vmatpush1.bf16.msra.mxu0 0
      %346 = vmatprep.subr.bf16.mxu0 0
      %347 = vmatpush1.bf16.msra.mxu0 0
      %348 = vmatprep.subr.bf16.mxu0 0
      %349 = vmatpush1.bf16.msra.mxu0 0
      %350 = vmatprep.subr.bf16.mxu0 0
      %351 = vmatpush1.bf16.msra.mxu0 0
      %352 = vmatprep.subr.bf16.mxu0 0
      %353 = vmatpush1.bf16.msra.mxu0 0
      %354 = vmatprep.subr.bf16.mxu0 0
      %355 = vmatpush1.bf16.msra.mxu0 0
      %356 = vmatprep.subr.bf16.mxu0 0
      %357 = vmatpush1.bf16.msra.mxu0 0
      %358 = vmatprep.subr.bf16.mxu0 0
      %359 = vmatpush1.bf16.msra.mxu0 0
      %360 = vmatprep.subr.bf16.mxu0 0
      %361 = vmatpush1.bf16.msra.mxu0 0
      %362 = vmatprep.subr.bf16.mxu0 0
      %363 = vmatpush1.bf16.msra.mxu0 0
      %364 = vmatprep.subr.bf16.mxu0 0
      %365 = vmatpush1.bf16.msra.mxu0 0
      %366 = vmatprep.subr.bf16.mxu0 0
      %367 = vmatpush1.bf16.msra.mxu0 0
      %368 = vmatprep.mubr.bf16.mxu0 0
      %369 = vmatmul.mubr.bf16.gmra.mrb[0].mxu0 %v327
      %v370 = vpop.f32.mrb[0].mxu0
      %v371 = vadd.f32 0.0, %v370
      %v372 = vpop.f32.mrb[0].mxu0
      %v373 = vadd.f32 0.0, %v372
      %v374 = vpop.f32.mrb[0].mxu0
      %v375 = vpop.f32.mrb[0].mxu0
      %376 = vdwg.mxu0
      %377 = vst [vmem:[%s307] sm:$0xff] %v371
      %378 = vst [vmem:[%s307 + $0x8] sm:$0xff] %v373
      %s379 = smul.u32 2, %s20
      %p380 = scmp.lt.s32.totalorder %s19, 1
      %s381 = scalar_select %p380, %s19, 1
      %p382 = scmp.lt.s32.totalorder %s379, 1
      %s383 = scalar_select %p382, %s379, 1
      %s384 = smul.addr %s381, 2
      %s385 = sadd.s32 %s383, %s384
      %s386 = smul.addr %s385, 8
      %s387 = scalar_lea.vmem %s4, %s386
      // Predicated region
      $region37: #{spectral_transform.13} parent=35 // pred_check
        %p388 = pneg %p152
      $region38: #{spectral_transform.13} parent=35 // pred_check_branch
        %390 = sbr.rel (%p388) target = $region40
      $region39: #{spectral_transform.13} parent=35 // pred_region
        %s391 = smul.u32 2, %s20
      $region40: #{spectral_transform.13} parent=35 // pred_fallthru
        _
    $region36: #{spectral_transform.13} parent=5 // pred_fallthru
      _
    %p392 = scmp.le.s32.totalorder 2, %s10
    // Predicated region
    $region41: #{spectral_transform.13} parent=5 // pred_check
      %p393 = pneg %p392
    $region42: #{spectral_transform.13} parent=5 // pred_check_branch
      %395 = sbr.rel (%p393) target = $region44
    $region43: #{spectral_transform.13} parent=5 // pred_region
      %s396 = ssub.s32 %s10, 2
      // Predicated region
      $region45: #{spectral_transform.13} parent=43 // pred_check
        %p397 = pneg %p158
      $region46: #{spectral_transform.13} parent=43 // pred_check_branch
        %399 = sbr.rel (%p397) target = $region48
      $region47: #{spectral_transform.13} parent=43 // pred_region
        %s400 = smul.u32 2, %s22
        %p401 = scmp.lt.s32.totalorder %s21, 1
        %s402 = scalar_select %p401, %s21, 1
        %p403 = scmp.lt.s32.totalorder %s400, 1
        %s404 = scalar_select %p403, %s400, 1
        %s405 = smul.addr %s402, 2
        %s406 = sadd.s32 %s404, %s405
        %s407 = smul.addr %s406, 8
        %s408 = scalar_lea.vmem %s4, %s407
      $region48: #{spectral_transform.13} parent=43 // pred_fallthru
        _
    $region44: #{spectral_transform.13} parent=5 // pred_fallthru
      _
  $region6: #{spectral_transform.13} parent=0 // loop_footer
    %s14 = sadd.s32 1, %s10
  $region7: #{spectral_transform.13} parent=0 // loop_footer_branch
    %9 = sbr.rel target = $region3
  $region8: #{spectral_transform.13} parent=0 // loop_exit
    _

</llo_original>
